<compile_context>
chip_gen: v7x
topology: tpu7x:2x2x1
jax: 0.10.0
libtpu: 0.0.40
codegen_flags: <defaults>
</compile_context>

<pallas_src>
import jax
import jax.numpy as jnp
from jax.experimental import pallas as pl
from jax.experimental.pallas import tpu as pltpu


def _round_up(x, m):
    return ((x + m - 1) // m) * m


def _make_head_kernel(n_layers, n_hw_steps, thw, hw_rem):
    """Pool (accumulated over hw grid steps) + (Linear,ReLU)* + Linear."""

    def kernel(x_ref, *refs):
        # refs = (w1, b1, ..., wL, bL, o_ref, pooled_scratch)
        pooled = refs[-1]                       # (tn, C) f32 VMEM scratch
        o_ref = refs[-2]
        wb = refs[:-2]
        hw_i = pl.program_id(1)

        @pl.when(hw_i == 0)
        def _():
            pooled[...] = jnp.zeros_like(pooled)

        x = x_ref[...]                          # (tn, thw, C) in input dtype
        if hw_rem:                              # static: HW % thw != 0 -> mask tail
            valid = jnp.where(hw_i == n_hw_steps - 1, hw_rem, thw)
            pos = jax.lax.broadcasted_iota(jnp.int32, (1, thw, 1), 1)
            x = jnp.where(pos < valid, x, jnp.zeros((), x.dtype))

        # f32-accumulating spatial sum (1/HW scale is folded into W1).
        pooled[...] += jnp.sum(x, axis=1, dtype=jnp.float32)

        @pl.when(hw_i == n_hw_steps - 1)
        def _():
            h = pooled[...]                     # (tn, C) f32
            for li in range(n_layers):
                w = wb[2 * li][...]             # (in, out) bf16 -> MXU
                b = wb[2 * li + 1][...]         # (1, out)  f32  -> VPU
                h = jnp.dot(h.astype(jnp.bfloat16), w,
                            preferred_element_type=jnp.float32) + b
                if li < n_layers - 1:
                    h = jnp.maximum(h, 0.0)
            o_ref[...] = h                      # lane-dense padded slab

    return kernel


def prepare_fc_params(weights, biases, hw):
    """One-time parameter prep (at init, NOT per forward).

    - transpose PyTorch (out, in) weights to (in, out), cast to bf16
    - fold the 1/HW average-pool scale into the first layer's weight
    - biases to lane-dense (1, out) f32
    - pad the classifier output dim to a multiple of 128 (lane-dense vst)
    """
    prepped_w, prepped_b = [], []
    n_layers = len(weights)
    for li, (w, b) in enumerate(zip(weights, biases)):
        wt = jnp.transpose(w).astype(jnp.float32)      # (in, out)
        if li == 0:
            wt = wt * (1.0 / float(hw))                # fold avg-pool divisor
        bt = b.reshape(1, -1).astype(jnp.float32)
        if li == n_layers - 1:
            out = wt.shape[1]
            out_pad = _round_up(out, 128)
            if out_pad != out:
                wt = jnp.pad(wt, ((0, 0), (0, out_pad - out)))
                bt = jnp.pad(bt, ((0, 0), (0, out_pad - out)))
        prepped_w.append(wt.astype(jnp.bfloat16))
        prepped_b.append(bt)
    return prepped_w, prepped_b


def custom_resnet_head_forward(x_feats, prepped_params, num_classes, *,
                               block_n=128,
                               input_block_bytes=4 * 1024 * 1024):
    """Pool + flatten + FC head in one tiled Pallas kernel.

    x_feats        : (N, H*W, C) feature map, channels-last (C on lane axis),
                     bf16 (preferred) or f32 — streamed as-is, no wrapper pass.
    prepped_params : output of prepare_fc_params().
    num_classes    : logical number of output classes (output sliced to it).
    block_n        : max batch-tile rows.
    input_block_bytes : per-buffer budget for the streamed input block
                     (keep ~4 MiB on v7x; may be raised on v5e/v6e's 128 MiB VMEM).
    """
    weights, biases = prepped_params
    N, HW, C = x_feats.shape
    n_layers = len(weights)
    out_pad = weights[-1].shape[1]                     # multiple of 128

    # --- batch tiling: >=2 tiles when N allows (v7x 2-TC sharding), no input pad.
    tn = max(8, min(block_n, _round_up(pl.cdiv(N, 2), 8)))
    n_tiles = pl.cdiv(N, tn)
    n_rows_out = n_tiles * tn                          # padded output alloc only

    # --- spatial tiling: bound the streamed block so VMEM stays small for any HW.
    itemsize = jnp.dtype(x_feats.dtype).itemsize
    thw_budget = max(8, input_block_bytes // (tn * C * itemsize))
    if HW <= thw_budget:
        thw = HW
    else:
        thw = (thw_budget // 16) * 16 or 8             # bf16-sublane friendly
    hw_tiles = pl.cdiv(HW, thw)
    hw_rem = HW - (hw_tiles - 1) * thw
    hw_rem = 0 if hw_rem == thw else hw_rem            # 0 => divides evenly

    kernel = _make_head_kernel(n_layers, hw_tiles, thw, hw_rem)

    flat_inputs = [x_feats]
    in_specs = [pl.BlockSpec((tn, thw, C), lambda i, j: (i, j, 0))]
    for w, b in zip(weights, biases):
        flat_inputs += [w, b]
        in_specs += [pl.BlockSpec(w.shape, lambda i, j: (0, 0)),   # resident
                     pl.BlockSpec(b.shape, lambda i, j: (0, 0))]   # resident

    # VMEM budget: double-buffered input + weights + output + pooled scratch.
    in_blk = tn * thw * C * itemsize
    w_bytes = sum(int(w.size) * w.dtype.itemsize + int(b.size) * b.dtype.itemsize
                  for w, b in zip(weights, biases))
    out_blk = tn * out_pad * 4
    need = 2 * in_blk + 2 * w_bytes + 2 * out_blk + tn * C * 4
    vmem_limit = int(min(96 << 20, max(32 << 20, 2 * need)))

    out = pl.pallas_call(
        kernel,
        out_shape=jax.ShapeDtypeStruct((n_rows_out, out_pad), jnp.float32),
        grid=(n_tiles, hw_tiles),
        in_specs=in_specs,
        out_specs=pl.BlockSpec((tn, out_pad), lambda i, j: (i, 0)),
        scratch_shapes=[pltpu.VMEM((tn, C), jnp.float32)],
        compiler_params=pltpu.CompilerParams(
            dimension_semantics=("parallel", "arbitrary"),
            vmem_limit_bytes=vmem_limit),
    )(*flat_inputs)

    return out[:N, :num_classes]


def init_fc_params(key, fc_layers_config, num_classes, in_features=2048):
    """Deterministic Linear params, PyTorch shape convention W:(out,in)."""
    weights, biases = [], []
    dims = [in_features] + list(fc_layers_config) + [num_classes]
    for fan_in, fan_out in zip(dims[:-1], dims[1:]):
        key, kw, kb = jax.random.split(key, 3)
        bound = 1.0 / jnp.sqrt(fan_in)
        w = jax.random.uniform(kw, (fan_out, fan_in), jnp.float32, -bound, bound)
        b = jax.random.uniform(kb, (fan_out,), jnp.float32, -bound, bound)
        weights.append(w)
        biases.append(b)
    return weights, biases


if __name__ == "__main__":
    key = jax.random.PRNGKey(0)
    key, kx = jax.random.split(key)

    # Module-consistent small shapes: backbone pre-avgpool feature map with
    # C=2048 (fixed by the head), batch=2, spatial 4x4 -> HW=16, channels-last.
    # The backbone emits bf16 (best case: kernel streams 2 B/elem, no wrapper cast).
    batch, channels, hh, ww = 2, 2048, 4, 4
    hw = hh * ww
    fc_layers_config = [256, 128]
    num_classes = 10

    x_feats = jax.random.normal(kx, (batch, hw, channels),
                                jnp.float32).astype(jnp.bfloat16)
    weights, biases = init_fc_params(key, fc_layers_config, num_classes,
                                     in_features=channels)

    # One-time parameter prep (transpose / bf16 / 1-over-HW fold / pad).
    prepped = prepare_fc_params(weights, biases, hw)

    out = custom_resnet_head_forward(x_feats, prepped, num_classes)
    out = jax.block_until_ready(out)

    # Pure-JAX reference mirroring the kernel numerics: f32 pooled sum of the
    # bf16 feature map, bf16-rounded activations/weights, f32 accumulation.
    pw, pb = prepped
    h = jnp.sum(x_feats.astype(jnp.float32), axis=1)           # (N, C) f32
    for li, (w, b) in enumerate(zip(pw, pb)):
        h16 = h.astype(jnp.bfloat16).astype(jnp.float32)
        h = jnp.dot(h16, w.astype(jnp.float32),
                    precision=jax.lax.Precision.HIGHEST) + b
        if li < len(pw) - 1:
            h = jnp.maximum(h, 0.0)
    ref = h[:, :num_classes]

    assert out.shape == (batch, num_classes), out.shape
    assert jnp.allclose(out, ref, atol=5e-3, rtol=5e-3), "mismatch vs reference"

    print("KERNEL_OK")
</pallas_src>

<mosaic_0001>
module attributes {stable_mosaic.version = 11 : i64} {
  func.func @kernel(%arg0: i32, %arg1: i32, %arg2: memref<8x16x2048xbf16, #tpu.memory_space<vmem>>, %arg3: memref<2048x256xbf16, #tpu.memory_space<vmem>>, %arg4: memref<1x256xf32, #tpu.memory_space<vmem>>, %arg5: memref<256x128xbf16, #tpu.memory_space<vmem>>, %arg6: memref<1x128xf32, #tpu.memory_space<vmem>>, %arg7: memref<128x128xbf16, #tpu.memory_space<vmem>>, %arg8: memref<1x128xf32, #tpu.memory_space<vmem>>, %arg9: memref<8x128xf32, #tpu.memory_space<vmem>>, %arg10: memref<8x2048xf32, #tpu.memory_space<vmem>>) attributes {dimension_semantics = [#tpu.dimension_semantics<parallel>, #tpu.dimension_semantics<arbitrary>], iteration_bounds = array<i64: 1, 1>, scalar_prefetch = 0 : i64, scratch_operands = 1 : i64, tpu.core_type = #tpu.core_type<tc>, window_params = [{transform_indices = @transform_0, window_bounds = array<i64: 8, 16, 2048>}, {pipeline_mode = #tpu.pipeline_mode<synchronous>, transform_indices = @transform_1, window_bounds = array<i64: 2048, 256>}, {pipeline_mode = #tpu.pipeline_mode<synchronous>, transform_indices = @transform_2, window_bounds = array<i64: 1, 256>}, {pipeline_mode = #tpu.pipeline_mode<synchronous>, transform_indices = @transform_3, window_bounds = array<i64: 256, 128>}, {pipeline_mode = #tpu.pipeline_mode<synchronous>, transform_indices = @transform_4, window_bounds = array<i64: 1, 128>}, {pipeline_mode = #tpu.pipeline_mode<synchronous>, transform_indices = @transform_5, window_bounds = array<i64: 128, 128>}, {pipeline_mode = #tpu.pipeline_mode<synchronous>, transform_indices = @transform_6, window_bounds = array<i64: 1, 128>}, {transform_indices = @transform_7, window_bounds = array<i64: 8, 128>}]} {
    %c0_i32 = arith.constant 0 : i32
    %0 = arith.cmpi eq, %arg1, %c0_i32 : i32
    %1 = arith.extui %0 : i1 to i32
    %c0_i32_0 = arith.constant 0 : i32
    %2 = arith.cmpi ne, %1, %c0_i32_0 : i32
    scf.if %2 {
      %cst_9 = arith.constant 0.000000e+00 : f32
      %12 = vector.broadcast %cst_9 : f32 to vector<8x2048xf32>
      %c0_10 = arith.constant 0 : index
      %c0_11 = arith.constant 0 : index
      %13 = vector.load %arg10[%c0_10, %c0_11] : memref<8x2048xf32, #tpu.memory_space<vmem>>, vector<8x2048xf32>
      tpu.vector_store %arg10[%c0_10, %c0_11], %12 {strides = array<i32>} : memref<8x2048xf32, #tpu.memory_space<vmem>>, vector<8x2048xf32>,
    } else {
    }
    %c0 = arith.constant 0 : index
    %c0_1 = arith.constant 0 : index
    %c0_2 = arith.constant 0 : index
    %3 = vector.load %arg2[%c0, %c0_1, %c0_2] : memref<8x16x2048xbf16, #tpu.memory_space<vmem>>, vector<8x16x2048xbf16>
    %c0_3 = arith.constant 0 : index
    %c0_4 = arith.constant 0 : index
    %4 = vector.load %arg10[%c0_3, %c0_4] : memref<8x2048xf32, #tpu.memory_space<vmem>>, vector<8x2048xf32>
    %5 = arith.extf %3 : vector<8x16x2048xbf16> to vector<8x16x2048xf32>
    %cst = arith.constant dense<0.000000e+00> : vector<8x2048xf32>
    %6 = vector.multi_reduction <add>, %5, %cst [1] : vector<8x16x2048xf32> to vector<8x2048xf32>
    %7 = arith.addf %4, %6 : vector<8x2048xf32>
    %c0_5 = arith.constant 0 : index
    %c0_6 = arith.constant 0 : index
    %8 = vector.load %arg10[%c0_5, %c0_6] : memref<8x2048xf32, #tpu.memory_space<vmem>>, vector<8x2048xf32>
    tpu.vector_store %arg10[%c0_5, %c0_6], %7 {strides = array<i32>} : memref<8x2048xf32, #tpu.memory_space<vmem>>, vector<8x2048xf32>,
    %c0_i32_7 = arith.constant 0 : i32
    %9 = arith.cmpi eq, %arg1, %c0_i32_7 : i32
    %10 = arith.extui %9 : i1 to i32
    %c0_i32_8 = arith.constant 0 : i32
    %11 = arith.cmpi ne, %10, %c0_i32_8 : i32
    scf.if %11 {
      %c0_9 = arith.constant 0 : index
      %c0_10 = arith.constant 0 : index
      %12 = vector.load %arg10[%c0_9, %c0_10] : memref<8x2048xf32, #tpu.memory_space<vmem>>, vector<8x2048xf32>
      %c0_11 = arith.constant 0 : index
      %c0_12 = arith.constant 0 : index
      %13 = vector.load %arg3[%c0_11, %c0_12] : memref<2048x256xbf16, #tpu.memory_space<vmem>>, vector<2048x256xbf16>
      %c0_13 = arith.constant 0 : index
      %c0_14 = arith.constant 0 : index
      %14 = vector.load %arg4[%c0_13, %c0_14] : memref<1x256xf32, #tpu.memory_space<vmem>>, vector<1x256xf32>
      %15 = arith.truncf %12 : vector<8x2048xf32> to vector<8x2048xbf16>
      %cst_15 = arith.constant dense<0.000000e+00> : vector<8x256xf32>
      %16 = tpu.matmul %15, %13, %cst_15 {dimension_numbers = #tpu.dot_dimension_numbers<[1], [0], [0], [1], [0, 0, 1, 1], [], []>} : vector<8x2048xbf16>, vector<2048x256xbf16>, vector<8x256xf32> -> vector<8x256xf32>
      %17 = vector.broadcast %14 : vector<1x256xf32> to vector<8x256xf32>
      %18 = arith.addf %16, %17 : vector<8x256xf32>
      %cst_16 = arith.constant 0.000000e+00 : f32
      %19 = vector.broadcast %cst_16 : f32 to vector<8x256xf32>
      %20 = arith.maximumf %18, %19 : vector<8x256xf32>
      %c0_17 = arith.constant 0 : index
      %c0_18 = arith.constant 0 : index
      %21 = vector.load %arg5[%c0_17, %c0_18] : memref<256x128xbf16, #tpu.memory_space<vmem>>, vector<256x128xbf16>
      %c0_19 = arith.constant 0 : index
      %c0_20 = arith.constant 0 : index
      %22 = vector.load %arg6[%c0_19, %c0_20] : memref<1x128xf32, #tpu.memory_space<vmem>>, vector<1x128xf32>
      %23 = arith.truncf %20 : vector<8x256xf32> to vector<8x256xbf16>
      %cst_21 = arith.constant dense<0.000000e+00> : vector<8x128xf32>
      %24 = tpu.matmul %23, %21, %cst_21 {dimension_numbers = #tpu.dot_dimension_numbers<[1], [0], [0], [1], [0, 0, 1, 1], [], []>} : vector<8x256xbf16>, vector<256x128xbf16>, vector<8x128xf32> -> vector<8x128xf32>
      %25 = vector.broadcast %22 : vector<1x128xf32> to vector<8x128xf32>
      %26 = arith.addf %24, %25 : vector<8x128xf32>
      %cst_22 = arith.constant 0.000000e+00 : f32
      %27 = vector.broadcast %cst_22 : f32 to vector<8x128xf32>
      %28 = arith.maximumf %26, %27 : vector<8x128xf32>
      %c0_23 = arith.constant 0 : index
      %c0_24 = arith.constant 0 : index
      %29 = vector.load %arg7[%c0_23, %c0_24] : memref<128x128xbf16, #tpu.memory_space<vmem>>, vector<128x128xbf16>
      %c0_25 = arith.constant 0 : index
      %c0_26 = arith.constant 0 : index
      %30 = vector.load %arg8[%c0_25, %c0_26] : memref<1x128xf32, #tpu.memory_space<vmem>>, vector<1x128xf32>
      %31 = arith.truncf %28 : vector<8x128xf32> to vector<8x128xbf16>
      %cst_27 = arith.constant dense<0.000000e+00> : vector<8x128xf32>
      %32 = tpu.matmul %31, %29, %cst_27 {dimension_numbers = #tpu.dot_dimension_numbers<[1], [0], [0], [1], [0, 0, 1, 1], [], []>} : vector<8x128xbf16>, vector<128x128xbf16>, vector<8x128xf32> -> vector<8x128xf32>
      %33 = vector.broadcast %30 : vector<1x128xf32> to vector<8x128xf32>
      %34 = arith.addf %32, %33 : vector<8x128xf32>
      %c0_28 = arith.constant 0 : index
      %c0_29 = arith.constant 0 : index
      %35 = vector.load %arg9[%c0_28, %c0_29] : memref<8x128xf32, #tpu.memory_space<vmem>>, vector<8x128xf32>
      tpu.vector_store %arg9[%c0_28, %c0_29], %34 {strides = array<i32>} : memref<8x128xf32, #tpu.memory_space<vmem>>, vector<8x128xf32>,
    } else {
    }
    return
  }
  func.func @transform_0(%arg0: i32, %arg1: i32) -> (i32, i32, i32) {
    %c0_i32 = arith.constant 0 : i32
    %c0_i32_0 = arith.constant 0 : i32
    return %arg0, %arg1, %c0_i32 : i32, i32, i32
  }
  func.func @transform_1(%arg0: i32, %arg1: i32) -> (i32, i32) {
    %c0_i32 = arith.constant 0 : i32
    %c0_i32_0 = arith.constant 0 : i32
    %c0_i32_1 = arith.constant 0 : i32
    return %c0_i32, %c0_i32_0 : i32, i32
  }
  func.func @transform_2(%arg0: i32, %arg1: i32) -> (i32, i32) {
    %c0_i32 = arith.constant 0 : i32
    %c0_i32_0 = arith.constant 0 : i32
    %c0_i32_1 = arith.constant 0 : i32
    return %c0_i32, %c0_i32_0 : i32, i32
  }
  func.func @transform_3(%arg0: i32, %arg1: i32) -> (i32, i32) {
    %c0_i32 = arith.constant 0 : i32
    %c0_i32_0 = arith.constant 0 : i32
    %c0_i32_1 = arith.constant 0 : i32
    return %c0_i32, %c0_i32_0 : i32, i32
  }
  func.func @transform_4(%arg0: i32, %arg1: i32) -> (i32, i32) {
    %c0_i32 = arith.constant 0 : i32
    %c0_i32_0 = arith.constant 0 : i32
    %c0_i32_1 = arith.constant 0 : i32
    return %c0_i32, %c0_i32_0 : i32, i32
  }
  func.func @transform_5(%arg0: i32, %arg1: i32) -> (i32, i32) {
    %c0_i32 = arith.constant 0 : i32
    %c0_i32_0 = arith.constant 0 : i32
    %c0_i32_1 = arith.constant 0 : i32
    return %c0_i32, %c0_i32_0 : i32, i32
  }
  func.func @transform_6(%arg0: i32, %arg1: i32) -> (i32, i32) {
    %c0_i32 = arith.constant 0 : i32
    %c0_i32_0 = arith.constant 0 : i32
    %c0_i32_1 = arith.constant 0 : i32
    return %c0_i32, %c0_i32_0 : i32, i32
  }
  func.func @transform_7(%arg0: i32, %arg1: i32) -> (i32, i32) {
    %c0_i32 = arith.constant 0 : i32
    %c0_i32_0 = arith.constant 0 : i32
    return %arg0, %c0_i32 : i32, i32
  }
}

</mosaic_0001>

<llo_original>
// kernel: tpu_custom_call.1
$region0: #{tpu_custom_call.1}
  #allocation0 [shape = 'u32[]', space=smem, size = 0x4, offset = 0x4, fixed_abs, tag = 'smem constant byte address 0x4 - core index']
  #allocation1 [shape = 'u32[144,128]{1,0:T(1,128)}', space=vmem, size = 0x12000, scoped, tag = 'internal scratch']
  #allocation2 [shape = 'f32[8,2048]{1,0:T(8,128)}', space=vmem, size = 0x10000, scoped, tag = 'scratch operand']
  %s0 = inlined_call_operand.hbm [shape: bf16[2,16,2048], index: 0, kind: input, shape index: {}]
  %s1 = inlined_call_operand.hbm [shape: bf16[2048,256], index: 1, kind: input, shape index: {}]
  %s2 = inlined_call_operand.vmem [shape: f32[1,256], index: 2, kind: input, shape index: {}]
  %s3 = inlined_call_operand.hbm [shape: bf16[256,128], index: 3, kind: input, shape index: {}]
  %s4 = inlined_call_operand.vmem [shape: f32[1,128], index: 4, kind: input, shape index: {}]
  %s5 = inlined_call_operand.hbm [shape: bf16[128,128], index: 5, kind: input, shape index: {}]
  %s6 = inlined_call_operand.vmem [shape: f32[1,128], index: 6, kind: input, shape index: {}]
  %s7 = inlined_call_operand.hbm [shape: f32[8,128], index: 7, kind: output, shape index: {}]
  %s8 = sld [smem:[#allocation0]]
  $region62: #{tpu_custom_call.1} parent=0
    _
  %s10 = ssub.s32 1, %s8
  %s11 = scalar_select 0, %s10, %s8
  $region1: #{tpu_custom_call.1} parent=0
    #allocation3 [shape = 'u8[524288]{0}', space=vmem, size = 0x80000, scoped, tag = 'input window, operand 0, single buffered']
    #allocation4 [shape = 's32[1]{0}', space=sflag, size = 0x4, scoped, tag = 'scoped memory for tpu_custom_call.1']
    #allocation5 [shape = 's32[1]{0}', space=sflag, size = 0x4, scoped, tag = 'scoped memory for tpu_custom_call.1']
    #allocation6 [shape = 'u8[1048576]{0}', space=vmem, size = 0x100000, scoped, tag = 'input window, operand 1, single buffered']
    #allocation7 [shape = 's32[1]{0}', space=sflag, size = 0x4, scoped, tag = 'scoped memory for tpu_custom_call.1']
    #allocation8 [shape = 'u8[65536]{0}', space=vmem, size = 0x10000, scoped, tag = 'input window, operand 3, single buffered']
    #allocation9 [shape = 'u8[32768]{0}', space=vmem, size = 0x8000, scoped, tag = 'input window, operand 5, single buffered']
    #allocation10 [shape = 's32[1]{0}', space=sflag, size = 0x4, scoped, tag = 'scoped memory for tpu_custom_call.1']
    #allocation11 [shape = 'u8[4096]{0}', space=vmem, size = 0x1000, scoped, tag = 'output window, operand 0, single buffered']
    %12 = vsyncpa [#allocation4], 0
    %13 = vsyncpa [#allocation7], 0
    %14 = vsyncpa [#allocation10], 0
    %15 = vsyncpa [#allocation5], 0
    // Predicated region
    $region2: #{tpu_custom_call.1} parent=1 // pred_check
      _
    $region3: #{tpu_custom_call.1} parent=1 // pred_check_branch
      %17 = sbr.rel (0) target = $region5
    $region4: #{tpu_custom_call.1} parent=1 // pred_region
      %s19 = ssub.s32 16384, 4096
      %20 = vsyncadd [#allocation4], %s19
      %s21 = sshll.u32 [#allocation3], 4
      %s22 = int_to_ptr.vmem [resolvable:$true] %s21
      %27 = dma.hbm_to_vmem [thread:$0]  %s0, 4096, %s22, [#allocation4], 1024, 1024, 64
    $region5: #{tpu_custom_call.1} parent=1 // pred_fallthru
      _
    // Predicated region
    $region6: #{tpu_custom_call.1} parent=1 // pred_check
      _
    $region7: #{tpu_custom_call.1} parent=1 // pred_check_branch
      %29 = sbr.rel (0) target = $region9
    $region8: #{tpu_custom_call.1} parent=1 // pred_region
      %s31 = ssub.s32 32768, 32768
      %32 = vsyncadd [#allocation7], %s31
      %s33 = sshll.u32 [#allocation6], 4
      %s34 = int_to_ptr.vmem [resolvable:$true] %s33
      %39 = dma.hbm_to_vmem [thread:$0]  %s1, 32768, %s34, [#allocation7], 128, 128, 8
    $region9: #{tpu_custom_call.1} parent=1 // pred_fallthru
      _
    // Predicated region
    $region10: #{tpu_custom_call.1} parent=1 // pred_check
      _
    $region11: #{tpu_custom_call.1} parent=1 // pred_check_branch
      %41 = sbr.rel (0) target = $region13
    $region12: #{tpu_custom_call.1} parent=1 // pred_region
      _
    $region13: #{tpu_custom_call.1} parent=1 // pred_fallthru
      _
    // Predicated region
    $region14: #{tpu_custom_call.1} parent=1 // pred_check
      _
    $region15: #{tpu_custom_call.1} parent=1 // pred_check_branch
      %43 = sbr.rel (0) target = $region17
    $region16: #{tpu_custom_call.1} parent=1 // pred_region
      %s45 = ssub.s32 2048, 2048
      %46 = vsyncadd [#allocation7], %s45
      %s47 = sshll.u32 [#allocation8], 4
      %s48 = int_to_ptr.vmem [resolvable:$true] %s47
      %53 = dma.hbm_to_vmem [thread:$0]  %s3, 2048, %s48, [#allocation7], 64, 64, 4
    $region17: #{tpu_custom_call.1} parent=1 // pred_fallthru
      _
    // Predicated region
    $region18: #{tpu_custom_call.1} parent=1 // pred_check
      _
    $region19: #{tpu_custom_call.1} parent=1 // pred_check_branch
      %55 = sbr.rel (0) target = $region21
    $region20: #{tpu_custom_call.1} parent=1 // pred_region
      _
    $region21: #{tpu_custom_call.1} parent=1 // pred_fallthru
      _
    // Predicated region
    $region22: #{tpu_custom_call.1} parent=1 // pred_check
      _
    $region23: #{tpu_custom_call.1} parent=1 // pred_check_branch
      %57 = sbr.rel (0) target = $region25
    $region24: #{tpu_custom_call.1} parent=1 // pred_region
      %s59 = ssub.s32 1024, 1024
      %60 = vsyncadd [#allocation10], %s59
      %s61 = sshll.u32 [#allocation9], 4
      %s62 = int_to_ptr.vmem [resolvable:$true] %s61
      %67 = dma.hbm_to_vmem [thread:$0]  %s5, 1024, %s62, [#allocation10], 64, 64, 4
    $region25: #{tpu_custom_call.1} parent=1 // pred_fallthru
      _
    // Predicated region
    $region26: #{tpu_custom_call.1} parent=1 // pred_check
      _
    $region27: #{tpu_custom_call.1} parent=1 // pred_check_branch
      %69 = sbr.rel (0) target = $region29
    $region28: #{tpu_custom_call.1} parent=1 // pred_region
      _
    $region29: #{tpu_custom_call.1} parent=1 // pred_fallthru
      _
    // Predicated region
    $region30: #{tpu_custom_call.1} parent=1 // pred_check
      _
    $region31: #{tpu_custom_call.1} parent=1 // pred_check_branch
      %71 = sbr.rel (0) target = $region33
    $region32: #{tpu_custom_call.1} parent=1 // pred_region
      %72 = dma.done [#allocation4], 16384
    $region33: #{tpu_custom_call.1} parent=1 // pred_fallthru
      _
    // Predicated region
    $region34: #{tpu_custom_call.1} parent=1 // pred_check
      _
    $region35: #{tpu_custom_call.1} parent=1 // pred_check_branch
      %74 = sbr.rel (0) target = $region37
    $region36: #{tpu_custom_call.1} parent=1 // pred_region
      %75 = dma.done [#allocation7], 32768
    $region37: #{tpu_custom_call.1} parent=1 // pred_fallthru
      _
    // Predicated region
    $region38: #{tpu_custom_call.1} parent=1 // pred_check
      _
    $region39: #{tpu_custom_call.1} parent=1 // pred_check_branch
      %77 = sbr.rel (0) target = $region41
    $region40: #{tpu_custom_call.1} parent=1 // pred_region
      %78 = dma.done [#allocation7], 2048
    $region41: #{tpu_custom_call.1} parent=1 // pred_fallthru
      _
    // Predicated region
    $region42: #{tpu_custom_call.1} parent=1 // pred_check
      _
    $region43: #{tpu_custom_call.1} parent=1 // pred_check_branch
      %80 = sbr.rel (0) target = $region45
    $region44: #{tpu_custom_call.1} parent=1 // pred_region
      %81 = dma.done [#allocation10], 1024
    $region45: #{tpu_custom_call.1} parent=1 // pred_fallthru
      _
    %p83 = scmp.eq.s32.totalorder 0, 0
    // Predicated region
    $region46: #{tpu_custom_call.1} parent=1 // pred_check
      %p84 = pneg %p83
    $region47: #{tpu_custom_call.1} parent=1 // pred_check_branch
      %86 = sbr.rel (%p84) target = $region49
    $region48: #{tpu_custom_call.1} parent=1 // pred_region
      %87 = vst [vmem:[#allocation2] sm:$0xff] 0.0
      %88 = vst [vmem:[#allocation2 + $0x8] sm:$0xff] 0.0
      %89 = vst [vmem:[#allocation2 + $0x10] sm:$0xff] 0.0
      %90 = vst [vmem:[#allocation2 + $0x18] sm:$0xff] 0.0
      %91 = vst [vmem:[#allocation2 + $0x20] sm:$0xff] 0.0
      %92 = vst [vmem:[#allocation2 + $0x28] sm:$0xff] 0.0
      %93 = vst [vmem:[#allocation2 + $0x30] sm:$0xff] 0.0
      %94 = vst [vmem:[#allocation2 + $0x38] sm:$0xff] 0.0
      %95 = vst [vmem:[#allocation2 + $0x40] sm:$0xff] 0.0
      %96 = vst [vmem:[#allocation2 + $0x48] sm:$0xff] 0.0
      %97 = vst [vmem:[#allocation2 + $0x50] sm:$0xff] 0.0
      %98 = vst [vmem:[#allocation2 + $0x58] sm:$0xff] 0.0
      %99 = vst [vmem:[#allocation2 + $0x60] sm:$0xff] 0.0
      %100 = vst [vmem:[#allocation2 + $0x68] sm:$0xff] 0.0
      %101 = vst [vmem:[#allocation2 + $0x70] sm:$0xff] 0.0
      %102 = vst [vmem:[#allocation2 + $0x78] sm:$0xff] 0.0
    $region49: #{tpu_custom_call.1} parent=1 // pred_fallthru
      _
    %v103 = vld [vmem:[#allocation3] sm:$0xff]
    %v104 = vld [vmem:[#allocation3 + $0x8] sm:$0xff]
    %v105 = vld [vmem:[#allocation3 + $0x10] sm:$0xff]
    %v106 = vld [vmem:[#allocation3 + $0x18] sm:$0xff]
    %v107 = vld [vmem:[#allocation3 + $0x20] sm:$0xff]
    %v108 = vld [vmem:[#allocation3 + $0x28] sm:$0xff]
    %v109 = vld [vmem:[#allocation3 + $0x30] sm:$0xff]
    %v110 = vld [vmem:[#allocation3 + $0x38] sm:$0xff]
    %v111 = vld [vmem:[#allocation3 + $0x40] sm:$0xff]
    %v112 = vld [vmem:[#allocation3 + $0x48] sm:$0xff]
    %v113 = vld [vmem:[#allocation3 + $0x50] sm:$0xff]
    %v114 = vld [vmem:[#allocation3 + $0x58] sm:$0xff]
    %v115 = vld [vmem:[#allocation3 + $0x60] sm:$0xff]
    %v116 = vld [vmem:[#allocation3 + $0x68] sm:$0xff]
    %v117 = vld [vmem:[#allocation3 + $0x70] sm:$0xff]
    %v118 = vld [vmem:[#allocation3 + $0x78] sm:$0xff]
    %v119 = vld [vmem:[#allocation3 + $0x80] sm:$0xff]
    %v120 = vld [vmem:[#allocation3 + $0x88] sm:$0xff]
    %v121 = vld [vmem:[#allocation3 + $0x90] sm:$0xff]
    %v122 = vld [vmem:[#allocation3 + $0x98] sm:$0xff]
    %v123 = vld [vmem:[#allocation3 + $0xa0] sm:$0xff]
    %v124 = vld [vmem:[#allocation3 + $0xa8] sm:$0xff]
    %v125 = vld [vmem:[#allocation3 + $0xb0] sm:$0xff]
    %v126 = vld [vmem:[#allocation3 + $0xb8] sm:$0xff]
    %v127 = vld [vmem:[#allocation3 + $0xc0] sm:$0xff]
    %v128 = vld [vmem:[#allocation3 + $0xc8] sm:$0xff]
    %v129 = vld [vmem:[#allocation3 + $0xd0] sm:$0xff]
    %v130 = vld [vmem:[#allocation3 + $0xd8] sm:$0xff]
    %v131 = vld [vmem:[#allocation3 + $0xe0] sm:$0xff]
    %v132 = vld [vmem:[#allocation3 + $0xe8] sm:$0xff]
    %v133 = vld [vmem:[#allocation3 + $0xf0] sm:$0xff]
    %v134 = vld [vmem:[#allocation3 + $0xf8] sm:$0xff]
    %v135 = vld [vmem:[#allocation3 + $0x100] sm:$0xff]
    %v136 = vld [vmem:[#allocation3 + $0x108] sm:$0xff]
    %v137 = vld [vmem:[#allocation3 + $0x110] sm:$0xff]
    %v138 = vld [vmem:[#allocation3 + $0x118] sm:$0xff]
    %v139 = vld [vmem:[#allocation3 + $0x120] sm:$0xff]
    %v140 = vld [vmem:[#allocation3 + $0x128] sm:$0xff]
    %v141 = vld [vmem:[#allocation3 + $0x130] sm:$0xff]
    %v142 = vld [vmem:[#allocation3 + $0x138] sm:$0xff]
    %v143 = vld [vmem:[#allocation3 + $0x140] sm:$0xff]
    %v144 = vld [vmem:[#allocation3 + $0x148] sm:$0xff]
    %v145 = vld [vmem:[#allocation3 + $0x150] sm:$0xff]
    %v146 = vld [vmem:[#allocation3 + $0x158] sm:$0xff]
    %v147 = vld [vmem:[#allocation3 + $0x160] sm:$0xff]
    %v148 = vld [vmem:[#allocation3 + $0x168] sm:$0xff]
    %v149 = vld [vmem:[#allocation3 + $0x170] sm:$0xff]
    %v150 = vld [vmem:[#allocation3 + $0x178] sm:$0xff]
    %v151 = vld [vmem:[#allocation3 + $0x180] sm:$0xff]
    %v152 = vld [vmem:[#allocation3 + $0x188] sm:$0xff]
    %v153 = vld [vmem:[#allocation3 + $0x190] sm:$0xff]
    %v154 = vld [vmem:[#allocation3 + $0x198] sm:$0xff]
    %v155 = vld [vmem:[#allocation3 + $0x1a0] sm:$0xff]
    %v156 = vld [vmem:[#allocation3 + $0x1a8] sm:$0xff]
    %v157 = vld [vmem:[#allocation3 + $0x1b0] sm:$0xff]
    %v158 = vld [vmem:[#allocation3 + $0x1b8] sm:$0xff]
    %v159 = vld [vmem:[#allocation3 + $0x1c0] sm:$0xff]
    %v160 = vld [vmem:[#allocation3 + $0x1c8] sm:$0xff]
    %v161 = vld [vmem:[#allocation3 + $0x1d0] sm:$0xff]
    %v162 = vld [vmem:[#allocation3 + $0x1d8] sm:$0xff]
    %v163 = vld [vmem:[#allocation3 + $0x1e0] sm:$0xff]
    %v164 = vld [vmem:[#allocation3 + $0x1e8] sm:$0xff]
    %v165 = vld [vmem:[#allocation3 + $0x1f0] sm:$0xff]
    %v166 = vld [vmem:[#allocation3 + $0x1f8] sm:$0xff]
    %v167 = vld [vmem:[#allocation3 + $0x200] sm:$0xff]
    %v168 = vld [vmem:[#allocation3 + $0x208] sm:$0xff]
    %v169 = vld [vmem:[#allocation3 + $0x210] sm:$0xff]
    %v170 = vld [vmem:[#allocation3 + $0x218] sm:$0xff]
    %v171 = vld [vmem:[#allocation3 + $0x220] sm:$0xff]
    %v172 = vld [vmem:[#allocation3 + $0x228] sm:$0xff]
    %v173 = vld [vmem:[#allocation3 + $0x230] sm:$0xff]
    %v174 = vld [vmem:[#allocation3 + $0x238] sm:$0xff]
    %v175 = vld [vmem:[#allocation3 + $0x240] sm:$0xff]
    %v176 = vld [vmem:[#allocation3 + $0x248] sm:$0xff]
    %v177 = vld [vmem:[#allocation3 + $0x250] sm:$0xff]
    %v178 = vld [vmem:[#allocation3 + $0x258] sm:$0xff]
    %v179 = vld [vmem:[#allocation3 + $0x260] sm:$0xff]
    %v180 = vld [vmem:[#allocation3 + $0x268] sm:$0xff]
    %v181 = vld [vmem:[#allocation3 + $0x270] sm:$0xff]
    %v182 = vld [vmem:[#allocation3 + $0x278] sm:$0xff]
    %v183 = vld [vmem:[#allocation3 + $0x280] sm:$0xff]
    %v184 = vld [vmem:[#allocation3 + $0x288] sm:$0xff]
    %v185 = vld [vmem:[#allocation3 + $0x290] sm:$0xff]
    %v186 = vld [vmem:[#allocation3 + $0x298] sm:$0xff]
    %v187 = vld [vmem:[#allocation3 + $0x2a0] sm:$0xff]
    %v188 = vld [vmem:[#allocation3 + $0x2a8] sm:$0xff]
    %v189 = vld [vmem:[#allocation3 + $0x2b0] sm:$0xff]
    %v190 = vld [vmem:[#allocation3 + $0x2b8] sm:$0xff]
    %v191 = vld [vmem:[#allocation3 + $0x2c0] sm:$0xff]
    %v192 = vld [vmem:[#allocation3 + $0x2c8] sm:$0xff]
    %v193 = vld [vmem:[#allocation3 + $0x2d0] sm:$0xff]
    %v194 = vld [vmem:[#allocation3 + $0x2d8] sm:$0xff]
    %v195 = vld [vmem:[#allocation3 + $0x2e0] sm:$0xff]
    %v196 = vld [vmem:[#allocation3 + $0x2e8] sm:$0xff]
    %v197 = vld [vmem:[#allocation3 + $0x2f0] sm:$0xff]
    %v198 = vld [vmem:[#allocation3 + $0x2f8] sm:$0xff]
    %v199 = vld [vmem:[#allocation3 + $0x300] sm:$0xff]
    %v200 = vld [vmem:[#allocation3 + $0x308] sm:$0xff]
    %v201 = vld [vmem:[#allocation3 + $0x310] sm:$0xff]
    %v202 = vld [vmem:[#allocation3 + $0x318] sm:$0xff]
    %v203 = vld [vmem:[#allocation3 + $0x320] sm:$0xff]
    %v204 = vld [vmem:[#allocation3 + $0x328] sm:$0xff]
    %v205 = vld [vmem:[#allocation3 + $0x330] sm:$0xff]
    %v206 = vld [vmem:[#allocation3 + $0x338] sm:$0xff]
    %v207 = vld [vmem:[#allocation3 + $0x340] sm:$0xff]
    %v208 = vld [vmem:[#allocation3 + $0x348] sm:$0xff]
    %v209 = vld [vmem:[#allocation3 + $0x350] sm:$0xff]
    %v210 = vld [vmem:[#allocation3 + $0x358] sm:$0xff]
    %v211 = vld [vmem:[#allocation3 + $0x360] sm:$0xff]
    %v212 = vld [vmem:[#allocation3 + $0x368] sm:$0xff]
    %v213 = vld [vmem:[#allocation3 + $0x370] sm:$0xff]
    %v214 = vld [vmem:[#allocation3 + $0x378] sm:$0xff]
    %v215 = vld [vmem:[#allocation3 + $0x380] sm:$0xff]
    %v216 = vld [vmem:[#allocation3 + $0x388] sm:$0xff]
    %v217 = vld [vmem:[#allocation3 + $0x390] sm:$0xff]
    %v218 = vld [vmem:[#allocation3 + $0x398] sm:$0xff]
    %v219 = vld [vmem:[#allocation3 + $0x3a0] sm:$0xff]
    %v220 = vld [vmem:[#allocation3 + $0x3a8] sm:$0xff]
    %v221 = vld [vmem:[#allocation3 + $0x3b0] sm:$0xff]
    %v222 = vld [vmem:[#allocation3 + $0x3b8] sm:$0xff]
    %v223 = vld [vmem:[#allocation3 + $0x3c0] sm:$0xff]
    %v224 = vld [vmem:[#allocation3 + $0x3c8] sm:$0xff]
    %v225 = vld [vmem:[#allocation3 + $0x3d0] sm:$0xff]
    %v226 = vld [vmem:[#allocation3 + $0x3d8] sm:$0xff]
    %v227 = vld [vmem:[#allocation3 + $0x3e0] sm:$0xff]
    %v228 = vld [vmem:[#allocation3 + $0x3e8] sm:$0xff]
    %v229 = vld [vmem:[#allocation3 + $0x3f0] sm:$0xff]
    %v230 = vld [vmem:[#allocation3 + $0x3f8] sm:$0xff]
    %v231 = vld [vmem:[#allocation2] sm:$0xff]
    %v232 = vld [vmem:[#allocation2 + $0x8] sm:$0xff]
    %v233 = vld [vmem:[#allocation2 + $0x10] sm:$0xff]
    %v234 = vld [vmem:[#allocation2 + $0x18] sm:$0xff]
    %v235 = vld [vmem:[#allocation2 + $0x20] sm:$0xff]
    %v236 = vld [vmem:[#allocation2 + $0x28] sm:$0xff]
    %v237 = vld [vmem:[#allocation2 + $0x30] sm:$0xff]
    %v238 = vld [vmem:[#allocation2 + $0x38] sm:$0xff]
    %v239 = vld [vmem:[#allocation2 + $0x40] sm:$0xff]
    %v240 = vld [vmem:[#allocation2 + $0x48] sm:$0xff]
    %v241 = vld [vmem:[#allocation2 + $0x50] sm:$0xff]
    %v242 = vld [vmem:[#allocation2 + $0x58] sm:$0xff]
    %v243 = vld [vmem:[#allocation2 + $0x60] sm:$0xff]
    %v244 = vld [vmem:[#allocation2 + $0x68] sm:$0xff]
    %v245 = vld [vmem:[#allocation2 + $0x70] sm:$0xff]
    %v246 = vld [vmem:[#allocation2 + $0x78] sm:$0xff]
    %v247 = vunpack.c.l.bf16 %v103
    %v248 = vunpack.c.h.bf16 %v103
    %v249 = vunpack.c.l.bf16 %v104
    %v250 = vunpack.c.h.bf16 %v104
    %v251 = vunpack.c.l.bf16 %v105
    %v252 = vunpack.c.h.bf16 %v105
    %v253 = vunpack.c.l.bf16 %v106
    %v254 = vunpack.c.h.bf16 %v106
    %v255 = vunpack.c.l.bf16 %v107
    %v256 = vunpack.c.h.bf16 %v107
    %v257 = vunpack.c.l.bf16 %v108
    %v258 = vunpack.c.h.bf16 %v108
    %v259 = vunpack.c.l.bf16 %v109
    %v260 = vunpack.c.h.bf16 %v109
    %v261 = vunpack.c.l.bf16 %v110
    %v262 = vunpack.c.h.bf16 %v110
    %v263 = vunpack.c.l.bf16 %v111
    %v264 = vunpack.c.h.bf16 %v111
    %v265 = vunpack.c.l.bf16 %v112
    %v266 = vunpack.c.h.bf16 %v112
    %v267 = vunpack.c.l.bf16 %v113
    %v268 = vunpack.c.h.bf16 %v113
    %v269 = vunpack.c.l.bf16 %v114
    %v270 = vunpack.c.h.bf16 %v114
    %v271 = vunpack.c.l.bf16 %v115
    %v272 = vunpack.c.h.bf16 %v115
    %v273 = vunpack.c.l.bf16 %v116
    %v274 = vunpack.c.h.bf16 %v116
    %v275 = vunpack.c.l.bf16 %v117
    %v276 = vunpack.c.h.bf16 %v117
    %v277 = vunpack.c.l.bf16 %v118
    %v278 = vunpack.c.h.bf16 %v118
    %v279 = vunpack.c.l.bf16 %v119
    %v280 = vunpack.c.h.bf16 %v119
    %v281 = vunpack.c.l.bf16 %v120
    %v282 = vunpack.c.h.bf16 %v120
    %v283 = vunpack.c.l.bf16 %v121
    %v284 = vunpack.c.h.bf16 %v121
    %v285 = vunpack.c.l.bf16 %v122
    %v286 = vunpack.c.h.bf16 %v122
    %v287 = vunpack.c.l.bf16 %v123
    %v288 = vunpack.c.h.bf16 %v123
    %v289 = vunpack.c.l.bf16 %v124
    %v290 = vunpack.c.h.bf16 %v124
    %v291 = vunpack.c.l.bf16 %v125
    %v292 = vunpack.c.h.bf16 %v125
    %v293 = vunpack.c.l.bf16 %v126
    %v294 = vunpack.c.h.bf16 %v126
    %v295 = vunpack.c.l.bf16 %v127
    %v296 = vunpack.c.h.bf16 %v127
    %v297 = vunpack.c.l.bf16 %v128
    %v298 = vunpack.c.h.bf16 %v128
    %v299 = vunpack.c.l.bf16 %v129
    %v300 = vunpack.c.h.bf16 %v129
    %v301 = vunpack.c.l.bf16 %v130
    %v302 = vunpack.c.h.bf16 %v130
    %v303 = vunpack.c.l.bf16 %v131
    %v304 = vunpack.c.h.bf16 %v131
    %v305 = vunpack.c.l.bf16 %v132
    %v306 = vunpack.c.h.bf16 %v132
    %v307 = vunpack.c.l.bf16 %v133
    %v308 = vunpack.c.h.bf16 %v133
    %v309 = vunpack.c.l.bf16 %v134
    %v310 = vunpack.c.h.bf16 %v134
    %v311 = vunpack.c.l.bf16 %v135
    %v312 = vunpack.c.h.bf16 %v135
    %v313 = vunpack.c.l.bf16 %v136
    %v314 = vunpack.c.h.bf16 %v136
    %v315 = vunpack.c.l.bf16 %v137
    %v316 = vunpack.c.h.bf16 %v137
    %v317 = vunpack.c.l.bf16 %v138
    %v318 = vunpack.c.h.bf16 %v138
    %v319 = vunpack.c.l.bf16 %v139
    %v320 = vunpack.c.h.bf16 %v139
    %v321 = vunpack.c.l.bf16 %v140
    %v322 = vunpack.c.h.bf16 %v140
    %v323 = vunpack.c.l.bf16 %v141
    %v324 = vunpack.c.h.bf16 %v141
    %v325 = vunpack.c.l.bf16 %v142
    %v326 = vunpack.c.h.bf16 %v142
    %v327 = vunpack.c.l.bf16 %v143
    %v328 = vunpack.c.h.bf16 %v143
    %v329 = vunpack.c.l.bf16 %v144
    %v330 = vunpack.c.h.bf16 %v144
    %v331 = vunpack.c.l.bf16 %v145
    %v332 = vunpack.c.h.bf16 %v145
    %v333 = vunpack.c.l.bf16 %v146
    %v334 = vunpack.c.h.bf16 %v146
    %v335 = vunpack.c.l.bf16 %v147
    %v336 = vunpack.c.h.bf16 %v147
    %v337 = vunpack.c.l.bf16 %v148
    %v338 = vunpack.c.h.bf16 %v148
    %v339 = vunpack.c.l.bf16 %v149
    %v340 = vunpack.c.h.bf16 %v149
    %v341 = vunpack.c.l.bf16 %v150
    %v342 = vunpack.c.h.bf16 %v150
    %v343 = vunpack.c.l.bf16 %v151
    %v344 = vunpack.c.h.bf16 %v151
    %v345 = vunpack.c.l.bf16 %v152
    %v346 = vunpack.c.h.bf16 %v152
    %v347 = vunpack.c.l.bf16 %v153
    %v348 = vunpack.c.h.bf16 %v153
    %v349 = vunpack.c.l.bf16 %v154
    %v350 = vunpack.c.h.bf16 %v154
    %v351 = vunpack.c.l.bf16 %v155
    %v352 = vunpack.c.h.bf16 %v155
    %v353 = vunpack.c.l.bf16 %v156
    %v354 = vunpack.c.h.bf16 %v156
    %v355 = vunpack.c.l.bf16 %v157
    %v356 = vunpack.c.h.bf16 %v157
    %v357 = vunpack.c.l.bf16 %v158
    %v358 = vunpack.c.h.bf16 %v158
    %v359 = vunpack.c.l.bf16 %v159
    %v360 = vunpack.c.h.bf16 %v159
    %v361 = vunpack.c.l.bf16 %v160
    %v362 = vunpack.c.h.bf16 %v160
    %v363 = vunpack.c.l.bf16 %v161
    %v364 = vunpack.c.h.bf16 %v161
    %v365 = vunpack.c.l.bf16 %v162
    %v366 = vunpack.c.h.bf16 %v162
    %v367 = vunpack.c.l.bf16 %v163
    %v368 = vunpack.c.h.bf16 %v163
    %v369 = vunpack.c.l.bf16 %v164
    %v370 = vunpack.c.h.bf16 %v164
    %v371 = vunpack.c.l.bf16 %v165
    %v372 = vunpack.c.h.bf16 %v165
    %v373 = vunpack.c.l.bf16 %v166
    %v374 = vunpack.c.h.bf16 %v166
    %v375 = vunpack.c.l.bf16 %v167
    %v376 = vunpack.c.h.bf16 %v167
    %v377 = vunpack.c.l.bf16 %v168
    %v378 = vunpack.c.h.bf16 %v168
    %v379 = vunpack.c.l.bf16 %v169
    %v380 = vunpack.c.h.bf16 %v169
    %v381 = vunpack.c.l.bf16 %v170
    %v382 = vunpack.c.h.bf16 %v170
    %v383 = vunpack.c.l.bf16 %v171
    %v384 = vunpack.c.h.bf16 %v171
    %v385 = vunpack.c.l.bf16 %v172
    %v386 = vunpack.c.h.bf16 %v172
    %v387 = vunpack.c.l.bf16 %v173
    %v388 = vunpack.c.h.bf16 %v173
    %v389 = vunpack.c.l.bf16 %v174
    %v390 = vunpack.c.h.bf16 %v174
    %v391 = vunpack.c.l.bf16 %v175
    %v392 = vunpack.c.h.bf16 %v175
    %v393 = vunpack.c.l.bf16 %v176
    %v394 = vunpack.c.h.bf16 %v176
    %v395 = vunpack.c.l.bf16 %v177
    %v396 = vunpack.c.h.bf16 %v177
    %v397 = vunpack.c.l.bf16 %v178
    %v398 = vunpack.c.h.bf16 %v178
    %v399 = vunpack.c.l.bf16 %v179
    %v400 = vunpack.c.h.bf16 %v179
    %v401 = vunpack.c.l.bf16 %v180
    %v402 = vunpack.c.h.bf16 %v180
    %v403 = vunpack.c.l.bf16 %v181
    %v404 = vunpack.c.h.bf16 %v181
    %v405 = vunpack.c.l.bf16 %v182
    %v406 = vunpack.c.h.bf16 %v182
    %v407 = vunpack.c.l.bf16 %v183
    %v408 = vunpack.c.h.bf16 %v183
    %v409 = vunpack.c.l.bf16 %v184
    %v410 = vunpack.c.h.bf16 %v184
    %v411 = vunpack.c.l.bf16 %v185
    %v412 = vunpack.c.h.bf16 %v185
    %v413 = vunpack.c.l.bf16 %v186
    %v414 = vunpack.c.h.bf16 %v186
    %v415 = vunpack.c.l.bf16 %v187
    %v416 = vunpack.c.h.bf16 %v187
    %v417 = vunpack.c.l.bf16 %v188
    %v418 = vunpack.c.h.bf16 %v188
    %v419 = vunpack.c.l.bf16 %v189
    %v420 = vunpack.c.h.bf16 %v189
    %v421 = vunpack.c.l.bf16 %v190
    %v422 = vunpack.c.h.bf16 %v190
    %v423 = vunpack.c.l.bf16 %v191
    %v424 = vunpack.c.h.bf16 %v191
    %v425 = vunpack.c.l.bf16 %v192
    %v426 = vunpack.c.h.bf16 %v192
    %v427 = vunpack.c.l.bf16 %v193
    %v428 = vunpack.c.h.bf16 %v193
    %v429 = vunpack.c.l.bf16 %v194
    %v430 = vunpack.c.h.bf16 %v194
    %v431 = vunpack.c.l.bf16 %v195
    %v432 = vunpack.c.h.bf16 %v195
    %v433 = vunpack.c.l.bf16 %v196
    %v434 = vunpack.c.h.bf16 %v196
    %v435 = vunpack.c.l.bf16 %v197
    %v436 = vunpack.c.h.bf16 %v197
    %v437 = vunpack.c.l.bf16 %v198
    %v438 = vunpack.c.h.bf16 %v198
    %v439 = vunpack.c.l.bf16 %v199
    %v440 = vunpack.c.h.bf16 %v199
    %v441 = vunpack.c.l.bf16 %v200
    %v442 = vunpack.c.h.bf16 %v200
    %v443 = vunpack.c.l.bf16 %v201
    %v444 = vunpack.c.h.bf16 %v201
    %v445 = vunpack.c.l.bf16 %v202
    %v446 = vunpack.c.h.bf16 %v202
    %v447 = vunpack.c.l.bf16 %v203
    %v448 = vunpack.c.h.bf16 %v203
    %v449 = vunpack.c.l.bf16 %v204
    %v450 = vunpack.c.h.bf16 %v204
    %v451 = vunpack.c.l.bf16 %v205
    %v452 = vunpack.c.h.bf16 %v205
    %v453 = vunpack.c.l.bf16 %v206
    %v454 = vunpack.c.h.bf16 %v206
    %v455 = vunpack.c.l.bf16 %v207
    %v456 = vunpack.c.h.bf16 %v207
    %v457 = vunpack.c.l.bf16 %v208
    %v458 = vunpack.c.h.bf16 %v208
    %v459 = vunpack.c.l.bf16 %v209
    %v460 = vunpack.c.h.bf16 %v209
    %v461 = vunpack.c.l.bf16 %v210
    %v462 = vunpack.c.h.bf16 %v210
    %v463 = vunpack.c.l.bf16 %v211
    %v464 = vunpack.c.h.bf16 %v211
    %v465 = vunpack.c.l.bf16 %v212
    %v466 = vunpack.c.h.bf16 %v212
    %v467 = vunpack.c.l.bf16 %v213
    %v468 = vunpack.c.h.bf16 %v213
    %v469 = vunpack.c.l.bf16 %v214
    %v470 = vunpack.c.h.bf16 %v214
    %v471 = vunpack.c.l.bf16 %v215
    %v472 = vunpack.c.h.bf16 %v215
    %v473 = vunpack.c.l.bf16 %v216
    %v474 = vunpack.c.h.bf16 %v216
    %v475 = vunpack.c.l.bf16 %v217
    %v476 = vunpack.c.h.bf16 %v217
    %v477 = vunpack.c.l.bf16 %v218
    %v478 = vunpack.c.h.bf16 %v218
    %v479 = vunpack.c.l.bf16 %v219
    %v480 = vunpack.c.h.bf16 %v219
    %v481 = vunpack.c.l.bf16 %v220
    %v482 = vunpack.c.h.bf16 %v220
    %v483 = vunpack.c.l.bf16 %v221
    %v484 = vunpack.c.h.bf16 %v221
    %v485 = vunpack.c.l.bf16 %v222
    %v486 = vunpack.c.h.bf16 %v222
    %v487 = vunpack.c.l.bf16 %v223
    %v488 = vunpack.c.h.bf16 %v223
    %v489 = vunpack.c.l.bf16 %v224
    %v490 = vunpack.c.h.bf16 %v224
    %v491 = vunpack.c.l.bf16 %v225
    %v492 = vunpack.c.h.bf16 %v225
    %v493 = vunpack.c.l.bf16 %v226
    %v494 = vunpack.c.h.bf16 %v226
    %v495 = vunpack.c.l.bf16 %v227
    %v496 = vunpack.c.h.bf16 %v227
    %v497 = vunpack.c.l.bf16 %v228
    %v498 = vunpack.c.h.bf16 %v228
    %v499 = vunpack.c.l.bf16 %v229
    %v500 = vunpack.c.h.bf16 %v229
    %v501 = vunpack.c.l.bf16 %v230
    %v502 = vunpack.c.h.bf16 %v230
    %v503 = vadd.f32 %v247, %v263
    %v504 = vrot.slane %v503, 4
    %v505 = vadd.f32 %v503, %v504
    %v506 = vrot.slane %v505, 2
    %v507 = vadd.f32 %v505, %v506
    %v508 = vrot.slane %v507, 1
    %v509 = vadd.f32 %v507, %v508
    %v510 = vadd.f32 %v248, %v264
    %v511 = vrot.slane %v510, 4
    %v512 = vadd.f32 %v510, %v511
    %v513 = vrot.slane %v512, 2
    %v514 = vadd.f32 %v512, %v513
    %v515 = vrot.slane %v514, 1
    %v516 = vadd.f32 %v514, %v515
    %v517 = vadd.f32 %v249, %v265
    %v518 = vrot.slane %v517, 4
    %v519 = vadd.f32 %v517, %v518
    %v520 = vrot.slane %v519, 2
    %v521 = vadd.f32 %v519, %v520
    %v522 = vrot.slane %v521, 1
    %v523 = vadd.f32 %v521, %v522
    %v524 = vadd.f32 %v250, %v266
    %v525 = vrot.slane %v524, 4
    %v526 = vadd.f32 %v524, %v525
    %v527 = vrot.slane %v526, 2
    %v528 = vadd.f32 %v526, %v527
    %v529 = vrot.slane %v528, 1
    %v530 = vadd.f32 %v528, %v529
    %v531 = vadd.f32 %v251, %v267
    %v532 = vrot.slane %v531, 4
    %v533 = vadd.f32 %v531, %v532
    %v534 = vrot.slane %v533, 2
    %v535 = vadd.f32 %v533, %v534
    %v536 = vrot.slane %v535, 1
    %v537 = vadd.f32 %v535, %v536
    %v538 = vadd.f32 %v252, %v268
    %v539 = vrot.slane %v538, 4
    %v540 = vadd.f32 %v538, %v539
    %v541 = vrot.slane %v540, 2
    %v542 = vadd.f32 %v540, %v541
    %v543 = vrot.slane %v542, 1
    %v544 = vadd.f32 %v542, %v543
    %v545 = vadd.f32 %v253, %v269
    %v546 = vrot.slane %v545, 4
    %v547 = vadd.f32 %v545, %v546
    %v548 = vrot.slane %v547, 2
    %v549 = vadd.f32 %v547, %v548
    %v550 = vrot.slane %v549, 1
    %v551 = vadd.f32 %v549, %v550
    %v552 = vadd.f32 %v254, %v270
    %v553 = vrot.slane %v552, 4
    %v554 = vadd.f32 %v552, %v553
    %v555 = vrot.slane %v554, 2
    %v556 = vadd.f32 %v554, %v555
    %v557 = vrot.slane %v556, 1
    %v558 = vadd.f32 %v556, %v557
    %v559 = vadd.f32 %v255, %v271
    %v560 = vrot.slane %v559, 4
    %v561 = vadd.f32 %v559, %v560
    %v562 = vrot.slane %v561, 2
    %v563 = vadd.f32 %v561, %v562
    %v564 = vrot.slane %v563, 1
    %v565 = vadd.f32 %v563, %v564
    %v566 = vadd.f32 %v256, %v272
    %v567 = vrot.slane %v566, 4
    %v568 = vadd.f32 %v566, %v567
    %v569 = vrot.slane %v568, 2
    %v570 = vadd.f32 %v568, %v569
    %v571 = vrot.slane %v570, 1
    %v572 = vadd.f32 %v570, %v571
    %v573 = vadd.f32 %v257, %v273
    %v574 = vrot.slane %v573, 4
    %v575 = vadd.f32 %v573, %v574
    %v576 = vrot.slane %v575, 2
    %v577 = vadd.f32 %v575, %v576
    %v578 = vrot.slane %v577, 1
    %v579 = vadd.f32 %v577, %v578
    %v580 = vadd.f32 %v258, %v274
    %v581 = vrot.slane %v580, 4
    %v582 = vadd.f32 %v580, %v581
    %v583 = vrot.slane %v582, 2
    %v584 = vadd.f32 %v582, %v583
    %v585 = vrot.slane %v584, 1
    %v586 = vadd.f32 %v584, %v585
    %v587 = vadd.f32 %v259, %v275
    %v588 = vrot.slane %v587, 4
    %v589 = vadd.f32 %v587, %v588
    %v590 = vrot.slane %v589, 2
    %v591 = vadd.f32 %v589, %v590
    %v592 = vrot.slane %v591, 1
    %v593 = vadd.f32 %v591, %v592
    %v594 = vadd.f32 %v260, %v276
    %v595 = vrot.slane %v594, 4
    %v596 = vadd.f32 %v594, %v595
    %v597 = vrot.slane %v596, 2
    %v598 = vadd.f32 %v596, %v597
    %v599 = vrot.slane %v598, 1
    %v600 = vadd.f32 %v598, %v599
    %v601 = vadd.f32 %v261, %v277
    %v602 = vrot.slane %v601, 4
    %v603 = vadd.f32 %v601, %v602
    %v604 = vrot.slane %v603, 2
    %v605 = vadd.f32 %v603, %v604
    %v606 = vrot.slane %v605, 1
    %v607 = vadd.f32 %v605, %v606
    %v608 = vadd.f32 %v262, %v278
    %v609 = vrot.slane %v608, 4
    %v610 = vadd.f32 %v608, %v609
    %v611 = vrot.slane %v610, 2
    %v612 = vadd.f32 %v610, %v611
    %v613 = vrot.slane %v612, 1
    %v614 = vadd.f32 %v612, %v613
    %v615 = vadd.f32 %v279, %v295
    %v616 = vrot.slane %v615, 4
    %v617 = vadd.f32 %v615, %v616
    %v618 = vrot.slane %v617, 2
    %v619 = vadd.f32 %v617, %v618
    %v620 = vrot.slane %v619, 1
    %v621 = vadd.f32 %v619, %v620
    %v622 = vadd.f32 %v280, %v296
    %v623 = vrot.slane %v622, 4
    %v624 = vadd.f32 %v622, %v623
    %v625 = vrot.slane %v624, 2
    %v626 = vadd.f32 %v624, %v625
    %v627 = vrot.slane %v626, 1
    %v628 = vadd.f32 %v626, %v627
    %v629 = vadd.f32 %v281, %v297
    %v630 = vrot.slane %v629, 4
    %v631 = vadd.f32 %v629, %v630
    %v632 = vrot.slane %v631, 2
    %v633 = vadd.f32 %v631, %v632
    %v634 = vrot.slane %v633, 1
    %v635 = vadd.f32 %v633, %v634
    %v636 = vadd.f32 %v282, %v298
    %v637 = vrot.slane %v636, 4
    %v638 = vadd.f32 %v636, %v637
    %v639 = vrot.slane %v638, 2
    %v640 = vadd.f32 %v638, %v639
    %v641 = vrot.slane %v640, 1
    %v642 = vadd.f32 %v640, %v641
    %v643 = vadd.f32 %v283, %v299
    %v644 = vrot.slane %v643, 4
    %v645 = vadd.f32 %v643, %v644
    %v646 = vrot.slane %v645, 2
    %v647 = vadd.f32 %v645, %v646
    %v648 = vrot.slane %v647, 1
    %v649 = vadd.f32 %v647, %v648
    %v650 = vadd.f32 %v284, %v300
    %v651 = vrot.slane %v650, 4
    %v652 = vadd.f32 %v650, %v651
    %v653 = vrot.slane %v652, 2
    %v654 = vadd.f32 %v652, %v653
    %v655 = vrot.slane %v654, 1
    %v656 = vadd.f32 %v654, %v655
    %v657 = vadd.f32 %v285, %v301
    %v658 = vrot.slane %v657, 4
    %v659 = vadd.f32 %v657, %v658
    %v660 = vrot.slane %v659, 2
    %v661 = vadd.f32 %v659, %v660
    %v662 = vrot.slane %v661, 1
    %v663 = vadd.f32 %v661, %v662
    %v664 = vadd.f32 %v286, %v302
    %v665 = vrot.slane %v664, 4
    %v666 = vadd.f32 %v664, %v665
    %v667 = vrot.slane %v666, 2
    %v668 = vadd.f32 %v666, %v667
    %v669 = vrot.slane %v668, 1
    %v670 = vadd.f32 %v668, %v669
    %v671 = vadd.f32 %v287, %v303
    %v672 = vrot.slane %v671, 4
    %v673 = vadd.f32 %v671, %v672
    %v674 = vrot.slane %v673, 2
    %v675 = vadd.f32 %v673, %v674
    %v676 = vrot.slane %v675, 1
    %v677 = vadd.f32 %v675, %v676
    %v678 = vadd.f32 %v288, %v304
    %v679 = vrot.slane %v678, 4
    %v680 = vadd.f32 %v678, %v679
    %v681 = vrot.slane %v680, 2
    %v682 = vadd.f32 %v680, %v681
    %v683 = vrot.slane %v682, 1
    %v684 = vadd.f32 %v682, %v683
    %v685 = vadd.f32 %v289, %v305
    %v686 = vrot.slane %v685, 4
    %v687 = vadd.f32 %v685, %v686
    %v688 = vrot.slane %v687, 2
    %v689 = vadd.f32 %v687, %v688
    %v690 = vrot.slane %v689, 1
    %v691 = vadd.f32 %v689, %v690
    %v692 = vadd.f32 %v290, %v306
    %v693 = vrot.slane %v692, 4
    %v694 = vadd.f32 %v692, %v693
    %v695 = vrot.slane %v694, 2
    %v696 = vadd.f32 %v694, %v695
    %v697 = vrot.slane %v696, 1
    %v698 = vadd.f32 %v696, %v697
    %v699 = vadd.f32 %v291, %v307
    %v700 = vrot.slane %v699, 4
    %v701 = vadd.f32 %v699, %v700
    %v702 = vrot.slane %v701, 2
    %v703 = vadd.f32 %v701, %v702
    %v704 = vrot.slane %v703, 1
    %v705 = vadd.f32 %v703, %v704
    %v706 = vadd.f32 %v292, %v308
    %v707 = vrot.slane %v706, 4
    %v708 = vadd.f32 %v706, %v707
    %v709 = vrot.slane %v708, 2
    %v710 = vadd.f32 %v708, %v709
    %v711 = vrot.slane %v710, 1
    %v712 = vadd.f32 %v710, %v711
    %v713 = vadd.f32 %v293, %v309
    %v714 = vrot.slane %v713, 4
    %v715 = vadd.f32 %v713, %v714
    %v716 = vrot.slane %v715, 2
    %v717 = vadd.f32 %v715, %v716
    %v718 = vrot.slane %v717, 1
    %v719 = vadd.f32 %v717, %v718
    %v720 = vadd.f32 %v294, %v310
    %v721 = vrot.slane %v720, 4
    %v722 = vadd.f32 %v720, %v721
    %v723 = vrot.slane %v722, 2
    %v724 = vadd.f32 %v722, %v723
    %v725 = vrot.slane %v724, 1
    %v726 = vadd.f32 %v724, %v725
    %v727 = vadd.f32 %v311, %v327
    %v728 = vrot.slane %v727, 4
    %v729 = vadd.f32 %v727, %v728
    %v730 = vrot.slane %v729, 2
    %v731 = vadd.f32 %v729, %v730
    %v732 = vrot.slane %v731, 1
    %v733 = vadd.f32 %v731, %v732
    %v734 = vadd.f32 %v312, %v328
    %v735 = vrot.slane %v734, 4
    %v736 = vadd.f32 %v734, %v735
    %v737 = vrot.slane %v736, 2
    %v738 = vadd.f32 %v736, %v737
    %v739 = vrot.slane %v738, 1
    %v740 = vadd.f32 %v738, %v739
    %v741 = vadd.f32 %v313, %v329
    %v742 = vrot.slane %v741, 4
    %v743 = vadd.f32 %v741, %v742
    %v744 = vrot.slane %v743, 2
    %v745 = vadd.f32 %v743, %v744
    %v746 = vrot.slane %v745, 1
    %v747 = vadd.f32 %v745, %v746
    %v748 = vadd.f32 %v314, %v330
    %v749 = vrot.slane %v748, 4
    %v750 = vadd.f32 %v748, %v749
    %v751 = vrot.slane %v750, 2
    %v752 = vadd.f32 %v750, %v751
    %v753 = vrot.slane %v752, 1
    %v754 = vadd.f32 %v752, %v753
    %v755 = vadd.f32 %v315, %v331
    %v756 = vrot.slane %v755, 4
    %v757 = vadd.f32 %v755, %v756
    %v758 = vrot.slane %v757, 2
    %v759 = vadd.f32 %v757, %v758
    %v760 = vrot.slane %v759, 1
    %v761 = vadd.f32 %v759, %v760
    %v762 = vadd.f32 %v316, %v332
    %v763 = vrot.slane %v762, 4
    %v764 = vadd.f32 %v762, %v763
    %v765 = vrot.slane %v764, 2
    %v766 = vadd.f32 %v764, %v765
    %v767 = vrot.slane %v766, 1
    %v768 = vadd.f32 %v766, %v767
    %v769 = vadd.f32 %v317, %v333
    %v770 = vrot.slane %v769, 4
    %v771 = vadd.f32 %v769, %v770
    %v772 = vrot.slane %v771, 2
    %v773 = vadd.f32 %v771, %v772
    %v774 = vrot.slane %v773, 1
    %v775 = vadd.f32 %v773, %v774
    %v776 = vadd.f32 %v318, %v334
    %v777 = vrot.slane %v776, 4
    %v778 = vadd.f32 %v776, %v777
    %v779 = vrot.slane %v778, 2
    %v780 = vadd.f32 %v778, %v779
    %v781 = vrot.slane %v780, 1
    %v782 = vadd.f32 %v780, %v781
    %v783 = vadd.f32 %v319, %v335
    %v784 = vrot.slane %v783, 4
    %v785 = vadd.f32 %v783, %v784
    %v786 = vrot.slane %v785, 2
    %v787 = vadd.f32 %v785, %v786
    %v788 = vrot.slane %v787, 1
    %v789 = vadd.f32 %v787, %v788
    %v790 = vadd.f32 %v320, %v336
    %v791 = vrot.slane %v790, 4
    %v792 = vadd.f32 %v790, %v791
    %v793 = vrot.slane %v792, 2
    %v794 = vadd.f32 %v792, %v793
    %v795 = vrot.slane %v794, 1
    %v796 = vadd.f32 %v794, %v795
    %v797 = vadd.f32 %v321, %v337
    %v798 = vrot.slane %v797, 4
    %v799 = vadd.f32 %v797, %v798
    %v800 = vrot.slane %v799, 2
    %v801 = vadd.f32 %v799, %v800
    %v802 = vrot.slane %v801, 1
    %v803 = vadd.f32 %v801, %v802
    %v804 = vadd.f32 %v322, %v338
    %v805 = vrot.slane %v804, 4
    %v806 = vadd.f32 %v804, %v805
    %v807 = vrot.slane %v806, 2
    %v808 = vadd.f32 %v806, %v807
    %v809 = vrot.slane %v808, 1
    %v810 = vadd.f32 %v808, %v809
    %v811 = vadd.f32 %v323, %v339
    %v812 = vrot.slane %v811, 4
    %v813 = vadd.f32 %v811, %v812
    %v814 = vrot.slane %v813, 2
    %v815 = vadd.f32 %v813, %v814
    %v816 = vrot.slane %v815, 1
    %v817 = vadd.f32 %v815, %v816
    %v818 = vadd.f32 %v324, %v340
    %v819 = vrot.slane %v818, 4
    %v820 = vadd.f32 %v818, %v819
    %v821 = vrot.slane %v820, 2
    %v822 = vadd.f32 %v820, %v821
    %v823 = vrot.slane %v822, 1
    %v824 = vadd.f32 %v822, %v823
    %v825 = vadd.f32 %v325, %v341
    %v826 = vrot.slane %v825, 4
    %v827 = vadd.f32 %v825, %v826
    %v828 = vrot.slane %v827, 2
    %v829 = vadd.f32 %v827, %v828
    %v830 = vrot.slane %v829, 1
    %v831 = vadd.f32 %v829, %v830
    %v832 = vadd.f32 %v326, %v342
    %v833 = vrot.slane %v832, 4
    %v834 = vadd.f32 %v832, %v833
    %v835 = vrot.slane %v834, 2
    %v836 = vadd.f32 %v834, %v835
    %v837 = vrot.slane %v836, 1
    %v838 = vadd.f32 %v836, %v837
    %v839 = vadd.f32 %v343, %v359
    %v840 = vrot.slane %v839, 4
    %v841 = vadd.f32 %v839, %v840
    %v842 = vrot.slane %v841, 2
    %v843 = vadd.f32 %v841, %v842
    %v844 = vrot.slane %v843, 1
    %v845 = vadd.f32 %v843, %v844
    %v846 = vadd.f32 %v344, %v360
    %v847 = vrot.slane %v846, 4
    %v848 = vadd.f32 %v846, %v847
    %v849 = vrot.slane %v848, 2
    %v850 = vadd.f32 %v848, %v849
    %v851 = vrot.slane %v850, 1
    %v852 = vadd.f32 %v850, %v851
    %v853 = vadd.f32 %v345, %v361
    %v854 = vrot.slane %v853, 4
    %v855 = vadd.f32 %v853, %v854
    %v856 = vrot.slane %v855, 2
    %v857 = vadd.f32 %v855, %v856
    %v858 = vrot.slane %v857, 1
    %v859 = vadd.f32 %v857, %v858
    %v860 = vadd.f32 %v346, %v362
    %v861 = vrot.slane %v860, 4
    %v862 = vadd.f32 %v860, %v861
    %v863 = vrot.slane %v862, 2
    %v864 = vadd.f32 %v862, %v863
    %v865 = vrot.slane %v864, 1
    %v866 = vadd.f32 %v864, %v865
    %v867 = vadd.f32 %v347, %v363
    %v868 = vrot.slane %v867, 4
    %v869 = vadd.f32 %v867, %v868
    %v870 = vrot.slane %v869, 2
    %v871 = vadd.f32 %v869, %v870
    %v872 = vrot.slane %v871, 1
    %v873 = vadd.f32 %v871, %v872
    %v874 = vadd.f32 %v348, %v364
    %v875 = vrot.slane %v874, 4
    %v876 = vadd.f32 %v874, %v875
    %v877 = vrot.slane %v876, 2
    %v878 = vadd.f32 %v876, %v877
    %v879 = vrot.slane %v878, 1
    %v880 = vadd.f32 %v878, %v879
    %v881 = vadd.f32 %v349, %v365
    %v882 = vrot.slane %v881, 4
    %v883 = vadd.f32 %v881, %v882
    %v884 = vrot.slane %v883, 2
    %v885 = vadd.f32 %v883, %v884
    %v886 = vrot.slane %v885, 1
    %v887 = vadd.f32 %v885, %v886
    %v888 = vadd.f32 %v350, %v366
    %v889 = vrot.slane %v888, 4
    %v890 = vadd.f32 %v888, %v889
    %v891 = vrot.slane %v890, 2
    %v892 = vadd.f32 %v890, %v891
    %v893 = vrot.slane %v892, 1
    %v894 = vadd.f32 %v892, %v893
    %v895 = vadd.f32 %v351, %v367
    %v896 = vrot.slane %v895, 4
    %v897 = vadd.f32 %v895, %v896
    %v898 = vrot.slane %v897, 2
    %v899 = vadd.f32 %v897, %v898
    %v900 = vrot.slane %v899, 1
    %v901 = vadd.f32 %v899, %v900
    %v902 = vadd.f32 %v352, %v368
    %v903 = vrot.slane %v902, 4
    %v904 = vadd.f32 %v902, %v903
    %v905 = vrot.slane %v904, 2
    %v906 = vadd.f32 %v904, %v905
    %v907 = vrot.slane %v906, 1
    %v908 = vadd.f32 %v906, %v907
    %v909 = vadd.f32 %v353, %v369
    %v910 = vrot.slane %v909, 4
    %v911 = vadd.f32 %v909, %v910
    %v912 = vrot.slane %v911, 2
    %v913 = vadd.f32 %v911, %v912
    %v914 = vrot.slane %v913, 1
    %v915 = vadd.f32 %v913, %v914
    %v916 = vadd.f32 %v354, %v370
    %v917 = vrot.slane %v916, 4
    %v918 = vadd.f32 %v916, %v917
    %v919 = vrot.slane %v918, 2
    %v920 = vadd.f32 %v918, %v919
    %v921 = vrot.slane %v920, 1
    %v922 = vadd.f32 %v920, %v921
    %v923 = vadd.f32 %v355, %v371
    %v924 = vrot.slane %v923, 4
    %v925 = vadd.f32 %v923, %v924
    %v926 = vrot.slane %v925, 2
    %v927 = vadd.f32 %v925, %v926
    %v928 = vrot.slane %v927, 1
    %v929 = vadd.f32 %v927, %v928
    %v930 = vadd.f32 %v356, %v372
    %v931 = vrot.slane %v930, 4
    %v932 = vadd.f32 %v930, %v931
    %v933 = vrot.slane %v932, 2
    %v934 = vadd.f32 %v932, %v933
    %v935 = vrot.slane %v934, 1
    %v936 = vadd.f32 %v934, %v935
    %v937 = vadd.f32 %v357, %v373
    %v938 = vrot.slane %v937, 4
    %v939 = vadd.f32 %v937, %v938
    %v940 = vrot.slane %v939, 2
    %v941 = vadd.f32 %v939, %v940
    %v942 = vrot.slane %v941, 1
    %v943 = vadd.f32 %v941, %v942
    %v944 = vadd.f32 %v358, %v374
    %v945 = vrot.slane %v944, 4
    %v946 = vadd.f32 %v944, %v945
    %v947 = vrot.slane %v946, 2
    %v948 = vadd.f32 %v946, %v947
    %v949 = vrot.slane %v948, 1
    %v950 = vadd.f32 %v948, %v949
    %v951 = vadd.f32 %v375, %v391
    %v952 = vrot.slane %v951, 4
    %v953 = vadd.f32 %v951, %v952
    %v954 = vrot.slane %v953, 2
    %v955 = vadd.f32 %v953, %v954
    %v956 = vrot.slane %v955, 1
    %v957 = vadd.f32 %v955, %v956
    %v958 = vadd.f32 %v376, %v392
    %v959 = vrot.slane %v958, 4
    %v960 = vadd.f32 %v958, %v959
    %v961 = vrot.slane %v960, 2
    %v962 = vadd.f32 %v960, %v961
    %v963 = vrot.slane %v962, 1
    %v964 = vadd.f32 %v962, %v963
    %v965 = vadd.f32 %v377, %v393
    %v966 = vrot.slane %v965, 4
    %v967 = vadd.f32 %v965, %v966
    %v968 = vrot.slane %v967, 2
    %v969 = vadd.f32 %v967, %v968
    %v970 = vrot.slane %v969, 1
    %v971 = vadd.f32 %v969, %v970
    %v972 = vadd.f32 %v378, %v394
    %v973 = vrot.slane %v972, 4
    %v974 = vadd.f32 %v972, %v973
    %v975 = vrot.slane %v974, 2
    %v976 = vadd.f32 %v974, %v975
    %v977 = vrot.slane %v976, 1
    %v978 = vadd.f32 %v976, %v977
    %v979 = vadd.f32 %v379, %v395
    %v980 = vrot.slane %v979, 4
    %v981 = vadd.f32 %v979, %v980
    %v982 = vrot.slane %v981, 2
    %v983 = vadd.f32 %v981, %v982
    %v984 = vrot.slane %v983, 1
    %v985 = vadd.f32 %v983, %v984
    %v986 = vadd.f32 %v380, %v396
    %v987 = vrot.slane %v986, 4
    %v988 = vadd.f32 %v986, %v987
    %v989 = vrot.slane %v988, 2
    %v990 = vadd.f32 %v988, %v989
    %v991 = vrot.slane %v990, 1
    %v992 = vadd.f32 %v990, %v991
    %v993 = vadd.f32 %v381, %v397
    %v994 = vrot.slane %v993, 4
    %v995 = vadd.f32 %v993, %v994
    %v996 = vrot.slane %v995, 2
    %v997 = vadd.f32 %v995, %v996
    %v998 = vrot.slane %v997, 1
    %v999 = vadd.f32 %v997, %v998
    %v1000 = vadd.f32 %v382, %v398
    %v1001 = vrot.slane %v1000, 4
    %v1002 = vadd.f32 %v1000, %v1001
    %v1003 = vrot.slane %v1002, 2
    %v1004 = vadd.f32 %v1002, %v1003
    %v1005 = vrot.slane %v1004, 1
    %v1006 = vadd.f32 %v1004, %v1005
    %v1007 = vadd.f32 %v383, %v399
    %v1008 = vrot.slane %v1007, 4
    %v1009 = vadd.f32 %v1007, %v1008
    %v1010 = vrot.slane %v1009, 2
    %v1011 = vadd.f32 %v1009, %v1010
    %v1012 = vrot.slane %v1011, 1
    %v1013 = vadd.f32 %v1011, %v1012
    %v1014 = vadd.f32 %v384, %v400
    %v1015 = vrot.slane %v1014, 4
    %v1016 = vadd.f32 %v1014, %v1015
    %v1017 = vrot.slane %v1016, 2
    %v1018 = vadd.f32 %v1016, %v1017
    %v1019 = vrot.slane %v1018, 1
    %v1020 = vadd.f32 %v1018, %v1019
    %v1021 = vadd.f32 %v385, %v401
    %v1022 = vrot.slane %v1021, 4
    %v1023 = vadd.f32 %v1021, %v1022
    %v1024 = vrot.slane %v1023, 2
    %v1025 = vadd.f32 %v1023, %v1024
    %v1026 = vrot.slane %v1025, 1
    %v1027 = vadd.f32 %v1025, %v1026
    %v1028 = vadd.f32 %v386, %v402
    %v1029 = vrot.slane %v1028, 4
    %v1030 = vadd.f32 %v1028, %v1029
    %v1031 = vrot.slane %v1030, 2
    %v1032 = vadd.f32 %v1030, %v1031
    %v1033 = vrot.slane %v1032, 1
    %v1034 = vadd.f32 %v1032, %v1033
    %v1035 = vadd.f32 %v387, %v403
    %v1036 = vrot.slane %v1035, 4
    %v1037 = vadd.f32 %v1035, %v1036
    %v1038 = vrot.slane %v1037, 2
    %v1039 = vadd.f32 %v1037, %v1038
    %v1040 = vrot.slane %v1039, 1
    %v1041 = vadd.f32 %v1039, %v1040
    %v1042 = vadd.f32 %v388, %v404
    %v1043 = vrot.slane %v1042, 4
    %v1044 = vadd.f32 %v1042, %v1043
    %v1045 = vrot.slane %v1044, 2
    %v1046 = vadd.f32 %v1044, %v1045
    %v1047 = vrot.slane %v1046, 1
    %v1048 = vadd.f32 %v1046, %v1047
    %v1049 = vadd.f32 %v389, %v405
    %v1050 = vrot.slane %v1049, 4
    %v1051 = vadd.f32 %v1049, %v1050
    %v1052 = vrot.slane %v1051, 2
    %v1053 = vadd.f32 %v1051, %v1052
    %v1054 = vrot.slane %v1053, 1
    %v1055 = vadd.f32 %v1053, %v1054
    %v1056 = vadd.f32 %v390, %v406
    %v1057 = vrot.slane %v1056, 4
    %v1058 = vadd.f32 %v1056, %v1057
    %v1059 = vrot.slane %v1058, 2
    %v1060 = vadd.f32 %v1058, %v1059
    %v1061 = vrot.slane %v1060, 1
    %v1062 = vadd.f32 %v1060, %v1061
    %v1063 = vadd.f32 %v407, %v423
    %v1064 = vrot.slane %v1063, 4
    %v1065 = vadd.f32 %v1063, %v1064
    %v1066 = vrot.slane %v1065, 2
    %v1067 = vadd.f32 %v1065, %v1066
    %v1068 = vrot.slane %v1067, 1
    %v1069 = vadd.f32 %v1067, %v1068
    %v1070 = vadd.f32 %v408, %v424
    %v1071 = vrot.slane %v1070, 4
    %v1072 = vadd.f32 %v1070, %v1071
    %v1073 = vrot.slane %v1072, 2
    %v1074 = vadd.f32 %v1072, %v1073
    %v1075 = vrot.slane %v1074, 1
    %v1076 = vadd.f32 %v1074, %v1075
    %v1077 = vadd.f32 %v409, %v425
    %v1078 = vrot.slane %v1077, 4
    %v1079 = vadd.f32 %v1077, %v1078
    %v1080 = vrot.slane %v1079, 2
    %v1081 = vadd.f32 %v1079, %v1080
    %v1082 = vrot.slane %v1081, 1
    %v1083 = vadd.f32 %v1081, %v1082
    %v1084 = vadd.f32 %v410, %v426
    %v1085 = vrot.slane %v1084, 4
    %v1086 = vadd.f32 %v1084, %v1085
    %v1087 = vrot.slane %v1086, 2
    %v1088 = vadd.f32 %v1086, %v1087
    %v1089 = vrot.slane %v1088, 1
    %v1090 = vadd.f32 %v1088, %v1089
    %v1091 = vadd.f32 %v411, %v427
    %v1092 = vrot.slane %v1091, 4
    %v1093 = vadd.f32 %v1091, %v1092
    %v1094 = vrot.slane %v1093, 2
    %v1095 = vadd.f32 %v1093, %v1094
    %v1096 = vrot.slane %v1095, 1
    %v1097 = vadd.f32 %v1095, %v1096
    %v1098 = vadd.f32 %v412, %v428
    %v1099 = vrot.slane %v1098, 4
    %v1100 = vadd.f32 %v1098, %v1099
    %v1101 = vrot.slane %v1100, 2
    %v1102 = vadd.f32 %v1100, %v1101
    %v1103 = vrot.slane %v1102, 1
    %v1104 = vadd.f32 %v1102, %v1103
    %v1105 = vadd.f32 %v413, %v429
    %v1106 = vrot.slane %v1105, 4
    %v1107 = vadd.f32 %v1105, %v1106
    %v1108 = vrot.slane %v1107, 2
    %v1109 = vadd.f32 %v1107, %v1108
    %v1110 = vrot.slane %v1109, 1
    %v1111 = vadd.f32 %v1109, %v1110
    %v1112 = vadd.f32 %v414, %v430
    %v1113 = vrot.slane %v1112, 4
    %v1114 = vadd.f32 %v1112, %v1113
    %v1115 = vrot.slane %v1114, 2
    %v1116 = vadd.f32 %v1114, %v1115
    %v1117 = vrot.slane %v1116, 1
    %v1118 = vadd.f32 %v1116, %v1117
    %v1119 = vadd.f32 %v415, %v431
    %v1120 = vrot.slane %v1119, 4
    %v1121 = vadd.f32 %v1119, %v1120
    %v1122 = vrot.slane %v1121, 2
    %v1123 = vadd.f32 %v1121, %v1122
    %v1124 = vrot.slane %v1123, 1
    %v1125 = vadd.f32 %v1123, %v1124
    %v1126 = vadd.f32 %v416, %v432
    %v1127 = vrot.slane %v1126, 4
    %v1128 = vadd.f32 %v1126, %v1127
    %v1129 = vrot.slane %v1128, 2
    %v1130 = vadd.f32 %v1128, %v1129
    %v1131 = vrot.slane %v1130, 1
    %v1132 = vadd.f32 %v1130, %v1131
    %v1133 = vadd.f32 %v417, %v433
    %v1134 = vrot.slane %v1133, 4
    %v1135 = vadd.f32 %v1133, %v1134
    %v1136 = vrot.slane %v1135, 2
    %v1137 = vadd.f32 %v1135, %v1136
    %v1138 = vrot.slane %v1137, 1
    %v1139 = vadd.f32 %v1137, %v1138
    %v1140 = vadd.f32 %v418, %v434
    %v1141 = vrot.slane %v1140, 4
    %v1142 = vadd.f32 %v1140, %v1141
    %v1143 = vrot.slane %v1142, 2
    %v1144 = vadd.f32 %v1142, %v1143
    %v1145 = vrot.slane %v1144, 1
    %v1146 = vadd.f32 %v1144, %v1145
    %v1147 = vadd.f32 %v419, %v435
    %v1148 = vrot.slane %v1147, 4
    %v1149 = vadd.f32 %v1147, %v1148
    %v1150 = vrot.slane %v1149, 2
    %v1151 = vadd.f32 %v1149, %v1150
    %v1152 = vrot.slane %v1151, 1
    %v1153 = vadd.f32 %v1151, %v1152
    %v1154 = vadd.f32 %v420, %v436
    %v1155 = vrot.slane %v1154, 4
    %v1156 = vadd.f32 %v1154, %v1155
    %v1157 = vrot.slane %v1156, 2
    %v1158 = vadd.f32 %v1156, %v1157
    %v1159 = vrot.slane %v1158, 1
    %v1160 = vadd.f32 %v1158, %v1159
    %v1161 = vadd.f32 %v421, %v437
    %v1162 = vrot.slane %v1161, 4
    %v1163 = vadd.f32 %v1161, %v1162
    %v1164 = vrot.slane %v1163, 2
    %v1165 = vadd.f32 %v1163, %v1164
    %v1166 = vrot.slane %v1165, 1
    %v1167 = vadd.f32 %v1165, %v1166
    %v1168 = vadd.f32 %v422, %v438
    %v1169 = vrot.slane %v1168, 4
    %v1170 = vadd.f32 %v1168, %v1169
    %v1171 = vrot.slane %v1170, 2
    %v1172 = vadd.f32 %v1170, %v1171
    %v1173 = vrot.slane %v1172, 1
    %v1174 = vadd.f32 %v1172, %v1173
    %v1175 = vadd.f32 %v439, %v455
    %v1176 = vrot.slane %v1175, 4
    %v1177 = vadd.f32 %v1175, %v1176
    %v1178 = vrot.slane %v1177, 2
    %v1179 = vadd.f32 %v1177, %v1178
    %v1180 = vrot.slane %v1179, 1
    %v1181 = vadd.f32 %v1179, %v1180
    %v1182 = vadd.f32 %v440, %v456
    %v1183 = vrot.slane %v1182, 4
    %v1184 = vadd.f32 %v1182, %v1183
    %v1185 = vrot.slane %v1184, 2
    %v1186 = vadd.f32 %v1184, %v1185
    %v1187 = vrot.slane %v1186, 1
    %v1188 = vadd.f32 %v1186, %v1187
    %v1189 = vadd.f32 %v441, %v457
    %v1190 = vrot.slane %v1189, 4
    %v1191 = vadd.f32 %v1189, %v1190
    %v1192 = vrot.slane %v1191, 2
    %v1193 = vadd.f32 %v1191, %v1192
    %v1194 = vrot.slane %v1193, 1
    %v1195 = vadd.f32 %v1193, %v1194
    %v1196 = vadd.f32 %v442, %v458
    %v1197 = vrot.slane %v1196, 4
    %v1198 = vadd.f32 %v1196, %v1197
    %v1199 = vrot.slane %v1198, 2
    %v1200 = vadd.f32 %v1198, %v1199
    %v1201 = vrot.slane %v1200, 1
    %v1202 = vadd.f32 %v1200, %v1201
    %v1203 = vadd.f32 %v443, %v459
    %v1204 = vrot.slane %v1203, 4
    %v1205 = vadd.f32 %v1203, %v1204
    %v1206 = vrot.slane %v1205, 2
    %v1207 = vadd.f32 %v1205, %v1206
    %v1208 = vrot.slane %v1207, 1
    %v1209 = vadd.f32 %v1207, %v1208
    %v1210 = vadd.f32 %v444, %v460
    %v1211 = vrot.slane %v1210, 4
    %v1212 = vadd.f32 %v1210, %v1211
    %v1213 = vrot.slane %v1212, 2
    %v1214 = vadd.f32 %v1212, %v1213
    %v1215 = vrot.slane %v1214, 1
    %v1216 = vadd.f32 %v1214, %v1215
    %v1217 = vadd.f32 %v445, %v461
    %v1218 = vrot.slane %v1217, 4
    %v1219 = vadd.f32 %v1217, %v1218
    %v1220 = vrot.slane %v1219, 2
    %v1221 = vadd.f32 %v1219, %v1220
    %v1222 = vrot.slane %v1221, 1
    %v1223 = vadd.f32 %v1221, %v1222
    %v1224 = vadd.f32 %v446, %v462
    %v1225 = vrot.slane %v1224, 4
    %v1226 = vadd.f32 %v1224, %v1225
    %v1227 = vrot.slane %v1226, 2
    %v1228 = vadd.f32 %v1226, %v1227
    %v1229 = vrot.slane %v1228, 1
    %v1230 = vadd.f32 %v1228, %v1229
    %v1231 = vadd.f32 %v447, %v463
    %v1232 = vrot.slane %v1231, 4
    %v1233 = vadd.f32 %v1231, %v1232
    %v1234 = vrot.slane %v1233, 2
    %v1235 = vadd.f32 %v1233, %v1234
    %v1236 = vrot.slane %v1235, 1
    %v1237 = vadd.f32 %v1235, %v1236
    %v1238 = vadd.f32 %v448, %v464
    %v1239 = vrot.slane %v1238, 4
    %v1240 = vadd.f32 %v1238, %v1239
    %v1241 = vrot.slane %v1240, 2
    %v1242 = vadd.f32 %v1240, %v1241
    %v1243 = vrot.slane %v1242, 1
    %v1244 = vadd.f32 %v1242, %v1243
    %v1245 = vadd.f32 %v449, %v465
    %v1246 = vrot.slane %v1245, 4
    %v1247 = vadd.f32 %v1245, %v1246
    %v1248 = vrot.slane %v1247, 2
    %v1249 = vadd.f32 %v1247, %v1248
    %v1250 = vrot.slane %v1249, 1
    %v1251 = vadd.f32 %v1249, %v1250
    %v1252 = vadd.f32 %v450, %v466
    %v1253 = vrot.slane %v1252, 4
    %v1254 = vadd.f32 %v1252, %v1253
    %v1255 = vrot.slane %v1254, 2
    %v1256 = vadd.f32 %v1254, %v1255
    %v1257 = vrot.slane %v1256, 1
    %v1258 = vadd.f32 %v1256, %v1257
    %v1259 = vadd.f32 %v451, %v467
    %v1260 = vrot.slane %v1259, 4
    %v1261 = vadd.f32 %v1259, %v1260
    %v1262 = vrot.slane %v1261, 2
    %v1263 = vadd.f32 %v1261, %v1262
    %v1264 = vrot.slane %v1263, 1
    %v1265 = vadd.f32 %v1263, %v1264
    %v1266 = vadd.f32 %v452, %v468
    %v1267 = vrot.slane %v1266, 4
    %v1268 = vadd.f32 %v1266, %v1267
    %v1269 = vrot.slane %v1268, 2
    %v1270 = vadd.f32 %v1268, %v1269
    %v1271 = vrot.slane %v1270, 1
    %v1272 = vadd.f32 %v1270, %v1271
    %v1273 = vadd.f32 %v453, %v469
    %v1274 = vrot.slane %v1273, 4
    %v1275 = vadd.f32 %v1273, %v1274
    %v1276 = vrot.slane %v1275, 2
    %v1277 = vadd.f32 %v1275, %v1276
    %v1278 = vrot.slane %v1277, 1
    %v1279 = vadd.f32 %v1277, %v1278
    %v1280 = vadd.f32 %v454, %v470
    %v1281 = vrot.slane %v1280, 4
    %v1282 = vadd.f32 %v1280, %v1281
    %v1283 = vrot.slane %v1282, 2
    %v1284 = vadd.f32 %v1282, %v1283
    %v1285 = vrot.slane %v1284, 1
    %v1286 = vadd.f32 %v1284, %v1285
    %v1287 = vadd.f32 %v471, %v487
    %v1288 = vrot.slane %v1287, 4
    %v1289 = vadd.f32 %v1287, %v1288
    %v1290 = vrot.slane %v1289, 2
    %v1291 = vadd.f32 %v1289, %v1290
    %v1292 = vrot.slane %v1291, 1
    %v1293 = vadd.f32 %v1291, %v1292
    %v1294 = vadd.f32 %v472, %v488
    %v1295 = vrot.slane %v1294, 4
    %v1296 = vadd.f32 %v1294, %v1295
    %v1297 = vrot.slane %v1296, 2
    %v1298 = vadd.f32 %v1296, %v1297
    %v1299 = vrot.slane %v1298, 1
    %v1300 = vadd.f32 %v1298, %v1299
    %v1301 = vadd.f32 %v473, %v489
    %v1302 = vrot.slane %v1301, 4
    %v1303 = vadd.f32 %v1301, %v1302
    %v1304 = vrot.slane %v1303, 2
    %v1305 = vadd.f32 %v1303, %v1304
    %v1306 = vrot.slane %v1305, 1
    %v1307 = vadd.f32 %v1305, %v1306
    %v1308 = vadd.f32 %v474, %v490
    %v1309 = vrot.slane %v1308, 4
    %v1310 = vadd.f32 %v1308, %v1309
    %v1311 = vrot.slane %v1310, 2
    %v1312 = vadd.f32 %v1310, %v1311
    %v1313 = vrot.slane %v1312, 1
    %v1314 = vadd.f32 %v1312, %v1313
    %v1315 = vadd.f32 %v475, %v491
    %v1316 = vrot.slane %v1315, 4
    %v1317 = vadd.f32 %v1315, %v1316
    %v1318 = vrot.slane %v1317, 2
    %v1319 = vadd.f32 %v1317, %v1318
    %v1320 = vrot.slane %v1319, 1
    %v1321 = vadd.f32 %v1319, %v1320
    %v1322 = vadd.f32 %v476, %v492
    %v1323 = vrot.slane %v1322, 4
    %v1324 = vadd.f32 %v1322, %v1323
    %v1325 = vrot.slane %v1324, 2
    %v1326 = vadd.f32 %v1324, %v1325
    %v1327 = vrot.slane %v1326, 1
    %v1328 = vadd.f32 %v1326, %v1327
    %v1329 = vadd.f32 %v477, %v493
    %v1330 = vrot.slane %v1329, 4
    %v1331 = vadd.f32 %v1329, %v1330
    %v1332 = vrot.slane %v1331, 2
    %v1333 = vadd.f32 %v1331, %v1332
    %v1334 = vrot.slane %v1333, 1
    %v1335 = vadd.f32 %v1333, %v1334
    %v1336 = vadd.f32 %v478, %v494
    %v1337 = vrot.slane %v1336, 4
    %v1338 = vadd.f32 %v1336, %v1337
    %v1339 = vrot.slane %v1338, 2
    %v1340 = vadd.f32 %v1338, %v1339
    %v1341 = vrot.slane %v1340, 1
    %v1342 = vadd.f32 %v1340, %v1341
    %v1343 = vadd.f32 %v479, %v495
    %v1344 = vrot.slane %v1343, 4
    %v1345 = vadd.f32 %v1343, %v1344
    %v1346 = vrot.slane %v1345, 2
    %v1347 = vadd.f32 %v1345, %v1346
    %v1348 = vrot.slane %v1347, 1
    %v1349 = vadd.f32 %v1347, %v1348
    %v1350 = vadd.f32 %v480, %v496
    %v1351 = vrot.slane %v1350, 4
    %v1352 = vadd.f32 %v1350, %v1351
    %v1353 = vrot.slane %v1352, 2
    %v1354 = vadd.f32 %v1352, %v1353
    %v1355 = vrot.slane %v1354, 1
    %v1356 = vadd.f32 %v1354, %v1355
    %v1357 = vadd.f32 %v481, %v497
    %v1358 = vrot.slane %v1357, 4
    %v1359 = vadd.f32 %v1357, %v1358
    %v1360 = vrot.slane %v1359, 2
    %v1361 = vadd.f32 %v1359, %v1360
    %v1362 = vrot.slane %v1361, 1
    %v1363 = vadd.f32 %v1361, %v1362
    %v1364 = vadd.f32 %v482, %v498
    %v1365 = vrot.slane %v1364, 4
    %v1366 = vadd.f32 %v1364, %v1365
    %v1367 = vrot.slane %v1366, 2
    %v1368 = vadd.f32 %v1366, %v1367
    %v1369 = vrot.slane %v1368, 1
    %v1370 = vadd.f32 %v1368, %v1369
    %v1371 = vadd.f32 %v483, %v499
    %v1372 = vrot.slane %v1371, 4
    %v1373 = vadd.f32 %v1371, %v1372
    %v1374 = vrot.slane %v1373, 2
    %v1375 = vadd.f32 %v1373, %v1374
    %v1376 = vrot.slane %v1375, 1
    %v1377 = vadd.f32 %v1375, %v1376
    %v1378 = vadd.f32 %v484, %v500
    %v1379 = vrot.slane %v1378, 4
    %v1380 = vadd.f32 %v1378, %v1379
    %v1381 = vrot.slane %v1380, 2
    %v1382 = vadd.f32 %v1380, %v1381
    %v1383 = vrot.slane %v1382, 1
    %v1384 = vadd.f32 %v1382, %v1383
    %v1385 = vadd.f32 %v485, %v501
    %v1386 = vrot.slane %v1385, 4
    %v1387 = vadd.f32 %v1385, %v1386
    %v1388 = vrot.slane %v1387, 2
    %v1389 = vadd.f32 %v1387, %v1388
    %v1390 = vrot.slane %v1389, 1
    %v1391 = vadd.f32 %v1389, %v1390
    %v1392 = vadd.f32 %v486, %v502
    %v1393 = vrot.slane %v1392, 4
    %v1394 = vadd.f32 %v1392, %v1393
    %v1395 = vrot.slane %v1394, 2
    %v1396 = vadd.f32 %v1394, %v1395
    %v1397 = vrot.slane %v1396, 1
    %v1398 = vadd.f32 %v1396, %v1397
    %vm1527 = vcmask 1041409
    %v1528 = vsel %vm1527, %v621, %v509
    %vm1529 = vcmask 1042434
    %v1530 = vsel %vm1529, %v733, %v1528
    %vm1531 = vcmask 1043459
    %v1532 = vsel %vm1531, %v845, %v1530
    %vm1533 = vcmask 1044484
    %v1534 = vsel %vm1533, %v957, %v1532
    %vm1535 = vcmask 1045509
    %v1536 = vsel %vm1535, %v1069, %v1534
    %vm1537 = vcmask 1046534
    %v1538 = vsel %vm1537, %v1181, %v1536
    %vm1539 = vcmask 1047559
    %v1540 = vsel %vm1539, %v1293, %v1538
    %v1541 = vsel %vm1527, %v628, %v516
    %v1542 = vsel %vm1529, %v740, %v1541
    %v1543 = vsel %vm1531, %v852, %v1542
    %v1544 = vsel %vm1533, %v964, %v1543
    %v1545 = vsel %vm1535, %v1076, %v1544
    %v1546 = vsel %vm1537, %v1188, %v1545
    %v1547 = vsel %vm1539, %v1300, %v1546
    %v1548 = vsel %vm1527, %v635, %v523
    %v1549 = vsel %vm1529, %v747, %v1548
    %v1550 = vsel %vm1531, %v859, %v1549
    %v1551 = vsel %vm1533, %v971, %v1550
    %v1552 = vsel %vm1535, %v1083, %v1551
    %v1553 = vsel %vm1537, %v1195, %v1552
    %v1554 = vsel %vm1539, %v1307, %v1553
    %v1555 = vsel %vm1527, %v642, %v530
    %v1556 = vsel %vm1529, %v754, %v1555
    %v1557 = vsel %vm1531, %v866, %v1556
    %v1558 = vsel %vm1533, %v978, %v1557
    %v1559 = vsel %vm1535, %v1090, %v1558
    %v1560 = vsel %vm1537, %v1202, %v1559
    %v1561 = vsel %vm1539, %v1314, %v1560
    %v1562 = vsel %vm1527, %v649, %v537
    %v1563 = vsel %vm1529, %v761, %v1562
    %v1564 = vsel %vm1531, %v873, %v1563
    %v1565 = vsel %vm1533, %v985, %v1564
    %v1566 = vsel %vm1535, %v1097, %v1565
    %v1567 = vsel %vm1537, %v1209, %v1566
    %v1568 = vsel %vm1539, %v1321, %v1567
    %v1569 = vsel %vm1527, %v656, %v544
    %v1570 = vsel %vm1529, %v768, %v1569
    %v1571 = vsel %vm1531, %v880, %v1570
    %v1572 = vsel %vm1533, %v992, %v1571
    %v1573 = vsel %vm1535, %v1104, %v1572
    %v1574 = vsel %vm1537, %v1216, %v1573
    %v1575 = vsel %vm1539, %v1328, %v1574
    %v1576 = vsel %vm1527, %v663, %v551
    %v1577 = vsel %vm1529, %v775, %v1576
    %v1578 = vsel %vm1531, %v887, %v1577
    %v1579 = vsel %vm1533, %v999, %v1578
    %v1580 = vsel %vm1535, %v1111, %v1579
    %v1581 = vsel %vm1537, %v1223, %v1580
    %v1582 = vsel %vm1539, %v1335, %v1581
    %v1583 = vsel %vm1527, %v670, %v558
    %v1584 = vsel %vm1529, %v782, %v1583
    %v1585 = vsel %vm1531, %v894, %v1584
    %v1586 = vsel %vm1533, %v1006, %v1585
    %v1587 = vsel %vm1535, %v1118, %v1586
    %v1588 = vsel %vm1537, %v1230, %v1587
    %v1589 = vsel %vm1539, %v1342, %v1588
    %v1590 = vsel %vm1527, %v677, %v565
    %v1591 = vsel %vm1529, %v789, %v1590
    %v1592 = vsel %vm1531, %v901, %v1591
    %v1593 = vsel %vm1533, %v1013, %v1592
    %v1594 = vsel %vm1535, %v1125, %v1593
    %v1595 = vsel %vm1537, %v1237, %v1594
    %v1596 = vsel %vm1539, %v1349, %v1595
    %v1597 = vsel %vm1527, %v684, %v572
    %v1598 = vsel %vm1529, %v796, %v1597
    %v1599 = vsel %vm1531, %v908, %v1598
    %v1600 = vsel %vm1533, %v1020, %v1599
    %v1601 = vsel %vm1535, %v1132, %v1600
    %v1602 = vsel %vm1537, %v1244, %v1601
    %v1603 = vsel %vm1539, %v1356, %v1602
    %v1604 = vsel %vm1527, %v691, %v579
    %v1605 = vsel %vm1529, %v803, %v1604
    %v1606 = vsel %vm1531, %v915, %v1605
    %v1607 = vsel %vm1533, %v1027, %v1606
    %v1608 = vsel %vm1535, %v1139, %v1607
    %v1609 = vsel %vm1537, %v1251, %v1608
    %v1610 = vsel %vm1539, %v1363, %v1609
    %v1611 = vsel %vm1527, %v698, %v586
    %v1612 = vsel %vm1529, %v810, %v1611
    %v1613 = vsel %vm1531, %v922, %v1612
    %v1614 = vsel %vm1533, %v1034, %v1613
    %v1615 = vsel %vm1535, %v1146, %v1614
    %v1616 = vsel %vm1537, %v1258, %v1615
    %v1617 = vsel %vm1539, %v1370, %v1616
    %v1618 = vsel %vm1527, %v705, %v593
    %v1619 = vsel %vm1529, %v817, %v1618
    %v1620 = vsel %vm1531, %v929, %v1619
    %v1621 = vsel %vm1533, %v1041, %v1620
    %v1622 = vsel %vm1535, %v1153, %v1621
    %v1623 = vsel %vm1537, %v1265, %v1622
    %v1624 = vsel %vm1539, %v1377, %v1623
    %v1625 = vsel %vm1527, %v712, %v600
    %v1626 = vsel %vm1529, %v824, %v1625
    %v1627 = vsel %vm1531, %v936, %v1626
    %v1628 = vsel %vm1533, %v1048, %v1627
    %v1629 = vsel %vm1535, %v1160, %v1628
    %v1630 = vsel %vm1537, %v1272, %v1629
    %v1631 = vsel %vm1539, %v1384, %v1630
    %v1632 = vsel %vm1527, %v719, %v607
    %v1633 = vsel %vm1529, %v831, %v1632
    %v1634 = vsel %vm1531, %v943, %v1633
    %v1635 = vsel %vm1533, %v1055, %v1634
    %v1636 = vsel %vm1535, %v1167, %v1635
    %v1637 = vsel %vm1537, %v1279, %v1636
    %v1638 = vsel %vm1539, %v1391, %v1637
    %v1639 = vsel %vm1527, %v726, %v614
    %v1640 = vsel %vm1529, %v838, %v1639
    %v1641 = vsel %vm1531, %v950, %v1640
    %v1642 = vsel %vm1533, %v1062, %v1641
    %v1643 = vsel %vm1535, %v1174, %v1642
    %v1644 = vsel %vm1537, %v1286, %v1643
    %v1645 = vsel %vm1539, %v1398, %v1644
    %v1662 = vadd.f32 %v231, %v1540
    %v1663 = vadd.f32 %v232, %v1547
    %v1664 = vadd.f32 %v233, %v1554
    %v1665 = vadd.f32 %v234, %v1561
    %v1666 = vadd.f32 %v235, %v1568
    %v1667 = vadd.f32 %v236, %v1575
    %v1668 = vadd.f32 %v237, %v1582
    %v1669 = vadd.f32 %v238, %v1589
    %v1670 = vadd.f32 %v239, %v1596
    %v1671 = vadd.f32 %v240, %v1603
    %v1672 = vadd.f32 %v241, %v1610
    %v1673 = vadd.f32 %v242, %v1617
    %v1674 = vadd.f32 %v243, %v1624
    %v1675 = vadd.f32 %v244, %v1631
    %v1676 = vadd.f32 %v245, %v1638
    %v1677 = vadd.f32 %v246, %v1645
    %1678 = vst [vmem:[#allocation2] sm:$0xff] %v1662
    %1679 = vst [vmem:[#allocation2 + $0x8] sm:$0xff] %v1663
    %1680 = vst [vmem:[#allocation2 + $0x10] sm:$0xff] %v1664
    %1681 = vst [vmem:[#allocation2 + $0x18] sm:$0xff] %v1665
    %1682 = vst [vmem:[#allocation2 + $0x20] sm:$0xff] %v1666
    %1683 = vst [vmem:[#allocation2 + $0x28] sm:$0xff] %v1667
    %1684 = vst [vmem:[#allocation2 + $0x30] sm:$0xff] %v1668
    %1685 = vst [vmem:[#allocation2 + $0x38] sm:$0xff] %v1669
    %1686 = vst [vmem:[#allocation2 + $0x40] sm:$0xff] %v1670
    %1687 = vst [vmem:[#allocation2 + $0x48] sm:$0xff] %v1671
    %1688 = vst [vmem:[#allocation2 + $0x50] sm:$0xff] %v1672
    %1689 = vst [vmem:[#allocation2 + $0x58] sm:$0xff] %v1673
    %1690 = vst [vmem:[#allocation2 + $0x60] sm:$0xff] %v1674
    %1691 = vst [vmem:[#allocation2 + $0x68] sm:$0xff] %v1675
    %1692 = vst [vmem:[#allocation2 + $0x70] sm:$0xff] %v1676
    %1693 = vst [vmem:[#allocation2 + $0x78] sm:$0xff] %v1677
    // Predicated region
    $region50: #{tpu_custom_call.1} parent=1 // pred_check
      %p1694 = pneg %p83
    $region51: #{tpu_custom_call.1} parent=1 // pred_check_branch
      %1696 = sbr.rel (%p1694) target = $region53
    $region52: #{tpu_custom_call.1} parent=1 // pred_region
      %v1697 = vld [vmem:[#allocation2] sm:$0xff]
      %v1698 = vld [vmem:[#allocation2 + $0x8] sm:$0xff]
      %v1699 = vld [vmem:[#allocation2 + $0x10] sm:$0xff]
      %v1700 = vld [vmem:[#allocation2 + $0x18] sm:$0xff]
      %v1701 = vld [vmem:[#allocation2 + $0x20] sm:$0xff]
      %v1702 = vld [vmem:[#allocation2 + $0x28] sm:$0xff]
      %v1703 = vld [vmem:[#allocation2 + $0x30] sm:$0xff]
      %v1704 = vld [vmem:[#allocation2 + $0x38] sm:$0xff]
      %v1705 = vld [vmem:[#allocation2 + $0x40] sm:$0xff]
      %v1706 = vld [vmem:[#allocation2 + $0x48] sm:$0xff]
      %v1707 = vld [vmem:[#allocation2 + $0x50] sm:$0xff]
      %v1708 = vld [vmem:[#allocation2 + $0x58] sm:$0xff]
      %v1709 = vld [vmem:[#allocation2 + $0x60] sm:$0xff]
      %v1710 = vld [vmem:[#allocation2 + $0x68] sm:$0xff]
      %v1711 = vld [vmem:[#allocation2 + $0x70] sm:$0xff]
      %v1712 = vld [vmem:[#allocation2 + $0x78] sm:$0xff]
      %v1713 = vld [vmem:[#allocation6] sm:$0xff]
      %v1714 = vld [vmem:[#allocation6 + $0x8] sm:$0xff]
      %v1715 = vld [vmem:[#allocation6 + $0x10] sm:$0xff]
      %v1716 = vld [vmem:[#allocation6 + $0x18] sm:$0xff]
      %v1717 = vld [vmem:[#allocation6 + $0x20] sm:$0xff]
      %v1718 = vld [vmem:[#allocation6 + $0x28] sm:$0xff]
      %v1719 = vld [vmem:[#allocation6 + $0x30] sm:$0xff]
      %v1720 = vld [vmem:[#allocation6 + $0x38] sm:$0xff]
      %v1721 = vld [vmem:[#allocation6 + $0x40] sm:$0xff]
      %v1722 = vld [vmem:[#allocation6 + $0x48] sm:$0xff]
      %v1723 = vld [vmem:[#allocation6 + $0x50] sm:$0xff]
      %v1724 = vld [vmem:[#allocation6 + $0x58] sm:$0xff]
      %v1725 = vld [vmem:[#allocation6 + $0x60] sm:$0xff]
      %v1726 = vld [vmem:[#allocation6 + $0x68] sm:$0xff]
      %v1727 = vld [vmem:[#allocation6 + $0x70] sm:$0xff]
      %v1728 = vld [vmem:[#allocation6 + $0x78] sm:$0xff]
      %v1729 = vld [vmem:[#allocation6 + $0x80] sm:$0xff]
      %v1730 = vld [vmem:[#allocation6 + $0x88] sm:$0xff]
      %v1731 = vld [vmem:[#allocation6 + $0x90] sm:$0xff]
      %v1732 = vld [vmem:[#allocation6 + $0x98] sm:$0xff]
      %v1733 = vld [vmem:[#allocation6 + $0xa0] sm:$0xff]
      %v1734 = vld [vmem:[#allocation6 + $0xa8] sm:$0xff]
      %v1735 = vld [vmem:[#allocation6 + $0xb0] sm:$0xff]
      %v1736 = vld [vmem:[#allocation6 + $0xb8] sm:$0xff]
      %v1737 = vld [vmem:[#allocation6 + $0xc0] sm:$0xff]
      %v1738 = vld [vmem:[#allocation6 + $0xc8] sm:$0xff]
      %v1739 = vld [vmem:[#allocation6 + $0xd0] sm:$0xff]
      %v1740 = vld [vmem:[#allocation6 + $0xd8] sm:$0xff]
      %v1741 = vld [vmem:[#allocation6 + $0xe0] sm:$0xff]
      %v1742 = vld [vmem:[#allocation6 + $0xe8] sm:$0xff]
      %v1743 = vld [vmem:[#allocation6 + $0xf0] sm:$0xff]
      %v1744 = vld [vmem:[#allocation6 + $0xf8] sm:$0xff]
      %v1745 = vld [vmem:[#allocation6 + $0x100] sm:$0xff]
      %v1746 = vld [vmem:[#allocation6 + $0x108] sm:$0xff]
      %v1747 = vld [vmem:[#allocation6 + $0x110] sm:$0xff]
      %v1748 = vld [vmem:[#allocation6 + $0x118] sm:$0xff]
      %v1749 = vld [vmem:[#allocation6 + $0x120] sm:$0xff]
      %v1750 = vld [vmem:[#allocation6 + $0x128] sm:$0xff]
      %v1751 = vld [vmem:[#allocation6 + $0x130] sm:$0xff]
      %v1752 = vld [vmem:[#allocation6 + $0x138] sm:$0xff]
      %v1753 = vld [vmem:[#allocation6 + $0x140] sm:$0xff]
      %v1754 = vld [vmem:[#allocation6 + $0x148] sm:$0xff]
      %v1755 = vld [vmem:[#allocation6 + $0x150] sm:$0xff]
      %v1756 = vld [vmem:[#allocation6 + $0x158] sm:$0xff]
      %v1757 = vld [vmem:[#allocation6 + $0x160] sm:$0xff]
      %v1758 = vld [vmem:[#allocation6 + $0x168] sm:$0xff]
      %v1759 = vld [vmem:[#allocation6 + $0x170] sm:$0xff]
      %v1760 = vld [vmem:[#allocation6 + $0x178] sm:$0xff]
      %v1761 = vld [vmem:[#allocation6 + $0x180] sm:$0xff]
      %v1762 = vld [vmem:[#allocation6 + $0x188] sm:$0xff]
      %v1763 = vld [vmem:[#allocation6 + $0x190] sm:$0xff]
      %v1764 = vld [vmem:[#allocation6 + $0x198] sm:$0xff]
      %v1765 = vld [vmem:[#allocation6 + $0x1a0] sm:$0xff]
      %v1766 = vld [vmem:[#allocation6 + $0x1a8] sm:$0xff]
      %v1767 = vld [vmem:[#allocation6 + $0x1b0] sm:$0xff]
      %v1768 = vld [vmem:[#allocation6 + $0x1b8] sm:$0xff]
      %v1769 = vld [vmem:[#allocation6 + $0x1c0] sm:$0xff]
      %v1770 = vld [vmem:[#allocation6 + $0x1c8] sm:$0xff]
      %v1771 = vld [vmem:[#allocation6 + $0x1d0] sm:$0xff]
      %v1772 = vld [vmem:[#allocation6 + $0x1d8] sm:$0xff]
      %v1773 = vld [vmem:[#allocation6 + $0x1e0] sm:$0xff]
      %v1774 = vld [vmem:[#allocation6 + $0x1e8] sm:$0xff]
      %v1775 = vld [vmem:[#allocation6 + $0x1f0] sm:$0xff]
      %v1776 = vld [vmem:[#allocation6 + $0x1f8] sm:$0xff]
      %v1777 = vld [vmem:[#allocation6 + $0x200] sm:$0xff]
      %v1778 = vld [vmem:[#allocation6 + $0x208] sm:$0xff]
      %v1779 = vld [vmem:[#allocation6 + $0x210] sm:$0xff]
      %v1780 = vld [vmem:[#allocation6 + $0x218] sm:$0xff]
      %v1781 = vld [vmem:[#allocation6 + $0x220] sm:$0xff]
      %v1782 = vld [vmem:[#allocation6 + $0x228] sm:$0xff]
      %v1783 = vld [vmem:[#allocation6 + $0x230] sm:$0xff]
      %v1784 = vld [vmem:[#allocation6 + $0x238] sm:$0xff]
      %v1785 = vld [vmem:[#allocation6 + $0x240] sm:$0xff]
      %v1786 = vld [vmem:[#allocation6 + $0x248] sm:$0xff]
      %v1787 = vld [vmem:[#allocation6 + $0x250] sm:$0xff]
      %v1788 = vld [vmem:[#allocation6 + $0x258] sm:$0xff]
      %v1789 = vld [vmem:[#allocation6 + $0x260] sm:$0xff]
      %v1790 = vld [vmem:[#allocation6 + $0x268] sm:$0xff]
      %v1791 = vld [vmem:[#allocation6 + $0x270] sm:$0xff]
      %v1792 = vld [vmem:[#allocation6 + $0x278] sm:$0xff]
      %v1793 = vld [vmem:[#allocation6 + $0x280] sm:$0xff]
      %v1794 = vld [vmem:[#allocation6 + $0x288] sm:$0xff]
      %v1795 = vld [vmem:[#allocation6 + $0x290] sm:$0xff]
      %v1796 = vld [vmem:[#allocation6 + $0x298] sm:$0xff]
      %v1797 = vld [vmem:[#allocation6 + $0x2a0] sm:$0xff]
      %v1798 = vld [vmem:[#allocation6 + $0x2a8] sm:$0xff]
      %v1799 = vld [vmem:[#allocation6 + $0x2b0] sm:$0xff]
      %v1800 = vld [vmem:[#allocation6 + $0x2b8] sm:$0xff]
      %v1801 = vld [vmem:[#allocation6 + $0x2c0] sm:$0xff]
      %v1802 = vld [vmem:[#allocation6 + $0x2c8] sm:$0xff]
      %v1803 = vld [vmem:[#allocation6 + $0x2d0] sm:$0xff]
      %v1804 = vld [vmem:[#allocation6 + $0x2d8] sm:$0xff]
      %v1805 = vld [vmem:[#allocation6 + $0x2e0] sm:$0xff]
      %v1806 = vld [vmem:[#allocation6 + $0x2e8] sm:$0xff]
      %v1807 = vld [vmem:[#allocation6 + $0x2f0] sm:$0xff]
      %v1808 = vld [vmem:[#allocation6 + $0x2f8] sm:$0xff]
      %v1809 = vld [vmem:[#allocation6 + $0x300] sm:$0xff]
      %v1810 = vld [vmem:[#allocation6 + $0x308] sm:$0xff]
      %v1811 = vld [vmem:[#allocation6 + $0x310] sm:$0xff]
      %v1812 = vld [vmem:[#allocation6 + $0x318] sm:$0xff]
      %v1813 = vld [vmem:[#allocation6 + $0x320] sm:$0xff]
      %v1814 = vld [vmem:[#allocation6 + $0x328] sm:$0xff]
      %v1815 = vld [vmem:[#allocation6 + $0x330] sm:$0xff]
      %v1816 = vld [vmem:[#allocation6 + $0x338] sm:$0xff]
      %v1817 = vld [vmem:[#allocation6 + $0x340] sm:$0xff]
      %v1818 = vld [vmem:[#allocation6 + $0x348] sm:$0xff]
      %v1819 = vld [vmem:[#allocation6 + $0x350] sm:$0xff]
      %v1820 = vld [vmem:[#allocation6 + $0x358] sm:$0xff]
      %v1821 = vld [vmem:[#allocation6 + $0x360] sm:$0xff]
      %v1822 = vld [vmem:[#allocation6 + $0x368] sm:$0xff]
      %v1823 = vld [vmem:[#allocation6 + $0x370] sm:$0xff]
      %v1824 = vld [vmem:[#allocation6 + $0x378] sm:$0xff]
      %v1825 = vld [vmem:[#allocation6 + $0x380] sm:$0xff]
      %v1826 = vld [vmem:[#allocation6 + $0x388] sm:$0xff]
      %v1827 = vld [vmem:[#allocation6 + $0x390] sm:$0xff]
      %v1828 = vld [vmem:[#allocation6 + $0x398] sm:$0xff]
      %v1829 = vld [vmem:[#allocation6 + $0x3a0] sm:$0xff]
      %v1830 = vld [vmem:[#allocation6 + $0x3a8] sm:$0xff]
      %v1831 = vld [vmem:[#allocation6 + $0x3b0] sm:$0xff]
      %v1832 = vld [vmem:[#allocation6 + $0x3b8] sm:$0xff]
      %v1833 = vld [vmem:[#allocation6 + $0x3c0] sm:$0xff]
      %v1834 = vld [vmem:[#allocation6 + $0x3c8] sm:$0xff]
      %v1835 = vld [vmem:[#allocation6 + $0x3d0] sm:$0xff]
      %v1836 = vld [vmem:[#allocation6 + $0x3d8] sm:$0xff]
      %v1837 = vld [vmem:[#allocation6 + $0x3e0] sm:$0xff]
      %v1838 = vld [vmem:[#allocation6 + $0x3e8] sm:$0xff]
      %v1839 = vld [vmem:[#allocation6 + $0x3f0] sm:$0xff]
      %v1840 = vld [vmem:[#allocation6 + $0x3f8] sm:$0xff]
      %v1841 = vld [vmem:[#allocation6 + $0x400] sm:$0xff]
      %v1842 = vld [vmem:[#allocation6 + $0x408] sm:$0xff]
      %v1843 = vld [vmem:[#allocation6 + $0x410] sm:$0xff]
      %v1844 = vld [vmem:[#allocation6 + $0x418] sm:$0xff]
      %v1845 = vld [vmem:[#allocation6 + $0x420] sm:$0xff]
      %v1846 = vld [vmem:[#allocation6 + $0x428] sm:$0xff]
      %v1847 = vld [vmem:[#allocation6 + $0x430] sm:$0xff]
      %v1848 = vld [vmem:[#allocation6 + $0x438] sm:$0xff]
      %v1849 = vld [vmem:[#allocation6 + $0x440] sm:$0xff]
      %v1850 = vld [vmem:[#allocation6 + $0x448] sm:$0xff]
      %v1851 = vld [vmem:[#allocation6 + $0x450] sm:$0xff]
      %v1852 = vld [vmem:[#allocation6 + $0x458] sm:$0xff]
      %v1853 = vld [vmem:[#allocation6 + $0x460] sm:$0xff]
      %v1854 = vld [vmem:[#allocation6 + $0x468] sm:$0xff]
      %v1855 = vld [vmem:[#allocation6 + $0x470] sm:$0xff]
      %v1856 = vld [vmem:[#allocation6 + $0x478] sm:$0xff]
      %v1857 = vld [vmem:[#allocation6 + $0x480] sm:$0xff]
      %v1858 = vld [vmem:[#allocation6 + $0x488] sm:$0xff]
      %v1859 = vld [vmem:[#allocation6 + $0x490] sm:$0xff]
      %v1860 = vld [vmem:[#allocation6 + $0x498] sm:$0xff]
      %v1861 = vld [vmem:[#allocation6 + $0x4a0] sm:$0xff]
      %v1862 = vld [vmem:[#allocation6 + $0x4a8] sm:$0xff]
      %v1863 = vld [vmem:[#allocation6 + $0x4b0] sm:$0xff]
      %v1864 = vld [vmem:[#allocation6 + $0x4b8] sm:$0xff]
      %v1865 = vld [vmem:[#allocation6 + $0x4c0] sm:$0xff]
      %v1866 = vld [vmem:[#allocation6 + $0x4c8] sm:$0xff]
      %v1867 = vld [vmem:[#allocation6 + $0x4d0] sm:$0xff]
      %v1868 = vld [vmem:[#allocation6 + $0x4d8] sm:$0xff]
      %v1869 = vld [vmem:[#allocation6 + $0x4e0] sm:$0xff]
      %v1870 = vld [vmem:[#allocation6 + $0x4e8] sm:$0xff]
      %v1871 = vld [vmem:[#allocation6 + $0x4f0] sm:$0xff]
      %v1872 = vld [vmem:[#allocation6 + $0x4f8] sm:$0xff]
      %v1873 = vld [vmem:[#allocation6 + $0x500] sm:$0xff]
      %v1874 = vld [vmem:[#allocation6 + $0x508] sm:$0xff]
      %v1875 = vld [vmem:[#allocation6 + $0x510] sm:$0xff]
      %v1876 = vld [vmem:[#allocation6 + $0x518] sm:$0xff]
      %v1877 = vld [vmem:[#allocation6 + $0x520] sm:$0xff]
      %v1878 = vld [vmem:[#allocation6 + $0x528] sm:$0xff]
      %v1879 = vld [vmem:[#allocation6 + $0x530] sm:$0xff]
      %v1880 = vld [vmem:[#allocation6 + $0x538] sm:$0xff]
      %v1881 = vld [vmem:[#allocation6 + $0x540] sm:$0xff]
      %v1882 = vld [vmem:[#allocation6 + $0x548] sm:$0xff]
      %v1883 = vld [vmem:[#allocation6 + $0x550] sm:$0xff]
      %v1884 = vld [vmem:[#allocation6 + $0x558] sm:$0xff]
      %v1885 = vld [vmem:[#allocation6 + $0x560] sm:$0xff]
      %v1886 = vld [vmem:[#allocation6 + $0x568] sm:$0xff]
      %v1887 = vld [vmem:[#allocation6 + $0x570] sm:$0xff]
      %v1888 = vld [vmem:[#allocation6 + $0x578] sm:$0xff]
      %v1889 = vld [vmem:[#allocation6 + $0x580] sm:$0xff]
      %v1890 = vld [vmem:[#allocation6 + $0x588] sm:$0xff]
      %v1891 = vld [vmem:[#allocation6 + $0x590] sm:$0xff]
      %v1892 = vld [vmem:[#allocation6 + $0x598] sm:$0xff]
      %v1893 = vld [vmem:[#allocation6 + $0x5a0] sm:$0xff]
      %v1894 = vld [vmem:[#allocation6 + $0x5a8] sm:$0xff]
      %v1895 = vld [vmem:[#allocation6 + $0x5b0] sm:$0xff]
      %v1896 = vld [vmem:[#allocation6 + $0x5b8] sm:$0xff]
      %v1897 = vld [vmem:[#allocation6 + $0x5c0] sm:$0xff]
      %v1898 = vld [vmem:[#allocation6 + $0x5c8] sm:$0xff]
      %v1899 = vld [vmem:[#allocation6 + $0x5d0] sm:$0xff]
      %v1900 = vld [vmem:[#allocation6 + $0x5d8] sm:$0xff]
      %v1901 = vld [vmem:[#allocation6 + $0x5e0] sm:$0xff]
      %v1902 = vld [vmem:[#allocation6 + $0x5e8] sm:$0xff]
      %v1903 = vld [vmem:[#allocation6 + $0x5f0] sm:$0xff]
      %v1904 = vld [vmem:[#allocation6 + $0x5f8] sm:$0xff]
      %v1905 = vld [vmem:[#allocation6 + $0x600] sm:$0xff]
      %v1906 = vld [vmem:[#allocation6 + $0x608] sm:$0xff]
      %v1907 = vld [vmem:[#allocation6 + $0x610] sm:$0xff]
      %v1908 = vld [vmem:[#allocation6 + $0x618] sm:$0xff]
      %v1909 = vld [vmem:[#allocation6 + $0x620] sm:$0xff]
      %v1910 = vld [vmem:[#allocation6 + $0x628] sm:$0xff]
      %v1911 = vld [vmem:[#allocation6 + $0x630] sm:$0xff]
      %v1912 = vld [vmem:[#allocation6 + $0x638] sm:$0xff]
      %v1913 = vld [vmem:[#allocation6 + $0x640] sm:$0xff]
      %v1914 = vld [vmem:[#allocation6 + $0x648] sm:$0xff]
      %v1915 = vld [vmem:[#allocation6 + $0x650] sm:$0xff]
      %v1916 = vld [vmem:[#allocation6 + $0x658] sm:$0xff]
      %v1917 = vld [vmem:[#allocation6 + $0x660] sm:$0xff]
      %v1918 = vld [vmem:[#allocation6 + $0x668] sm:$0xff]
      %v1919 = vld [vmem:[#allocation6 + $0x670] sm:$0xff]
      %v1920 = vld [vmem:[#allocation6 + $0x678] sm:$0xff]
      %v1921 = vld [vmem:[#allocation6 + $0x680] sm:$0xff]
      %v1922 = vld [vmem:[#allocation6 + $0x688] sm:$0xff]
      %v1923 = vld [vmem:[#allocation6 + $0x690] sm:$0xff]
      %v1924 = vld [vmem:[#allocation6 + $0x698] sm:$0xff]
      %v1925 = vld [vmem:[#allocation6 + $0x6a0] sm:$0xff]
      %v1926 = vld [vmem:[#allocation6 + $0x6a8] sm:$0xff]
      %v1927 = vld [vmem:[#allocation6 + $0x6b0] sm:$0xff]
      %v1928 = vld [vmem:[#allocation6 + $0x6b8] sm:$0xff]
      %v1929 = vld [vmem:[#allocation6 + $0x6c0] sm:$0xff]
      %v1930 = vld [vmem:[#allocation6 + $0x6c8] sm:$0xff]
      %v1931 = vld [vmem:[#allocation6 + $0x6d0] sm:$0xff]
      %v1932 = vld [vmem:[#allocation6 + $0x6d8] sm:$0xff]
      %v1933 = vld [vmem:[#allocation6 + $0x6e0] sm:$0xff]
      %v1934 = vld [vmem:[#allocation6 + $0x6e8] sm:$0xff]
      %v1935 = vld [vmem:[#allocation6 + $0x6f0] sm:$0xff]
      %v1936 = vld [vmem:[#allocation6 + $0x6f8] sm:$0xff]
      %v1937 = vld [vmem:[#allocation6 + $0x700] sm:$0xff]
      %v1938 = vld [vmem:[#allocation6 + $0x708] sm:$0xff]
      %v1939 = vld [vmem:[#allocation6 + $0x710] sm:$0xff]
      %v1940 = vld [vmem:[#allocation6 + $0x718] sm:$0xff]
      %v1941 = vld [vmem:[#allocation6 + $0x720] sm:$0xff]
      %v1942 = vld [vmem:[#allocation6 + $0x728] sm:$0xff]
      %v1943 = vld [vmem:[#allocation6 + $0x730] sm:$0xff]
      %v1944 = vld [vmem:[#allocation6 + $0x738] sm:$0xff]
      %v1945 = vld [vmem:[#allocation6 + $0x740] sm:$0xff]
      %v1946 = vld [vmem:[#allocation6 + $0x748] sm:$0xff]
      %v1947 = vld [vmem:[#allocation6 + $0x750] sm:$0xff]
      %v1948 = vld [vmem:[#allocation6 + $0x758] sm:$0xff]
      %v1949 = vld [vmem:[#allocation6 + $0x760] sm:$0xff]
      %v1950 = vld [vmem:[#allocation6 + $0x768] sm:$0xff]
      %v1951 = vld [vmem:[#allocation6 + $0x770] sm:$0xff]
      %v1952 = vld [vmem:[#allocation6 + $0x778] sm:$0xff]
      %v1953 = vld [vmem:[#allocation6 + $0x780] sm:$0xff]
      %v1954 = vld [vmem:[#allocation6 + $0x788] sm:$0xff]
      %v1955 = vld [vmem:[#allocation6 + $0x790] sm:$0xff]
      %v1956 = vld [vmem:[#allocation6 + $0x798] sm:$0xff]
      %v1957 = vld [vmem:[#allocation6 + $0x7a0] sm:$0xff]
      %v1958 = vld [vmem:[#allocation6 + $0x7a8] sm:$0xff]
      %v1959 = vld [vmem:[#allocation6 + $0x7b0] sm:$0xff]
      %v1960 = vld [vmem:[#allocation6 + $0x7b8] sm:$0xff]
      %v1961 = vld [vmem:[#allocation6 + $0x7c0] sm:$0xff]
      %v1962 = vld [vmem:[#allocation6 + $0x7c8] sm:$0xff]
      %v1963 = vld [vmem:[#allocation6 + $0x7d0] sm:$0xff]
      %v1964 = vld [vmem:[#allocation6 + $0x7d8] sm:$0xff]
      %v1965 = vld [vmem:[#allocation6 + $0x7e0] sm:$0xff]
      %v1966 = vld [vmem:[#allocation6 + $0x7e8] sm:$0xff]
      %v1967 = vld [vmem:[#allocation6 + $0x7f0] sm:$0xff]
      %v1968 = vld [vmem:[#allocation6 + $0x7f8] sm:$0xff]
      %v1969 = vld [vmem:[%s2] sm:$0x3]
      %v1970 = vpack.c.bf16 %v1697, %v1697
      %v1971 = vpack.c.bf16 %v1698, %v1698
      %v1972 = vpack.c.bf16 %v1699, %v1699
      %v1973 = vpack.c.bf16 %v1700, %v1700
      %v1974 = vpack.c.bf16 %v1701, %v1701
      %v1975 = vpack.c.bf16 %v1702, %v1702
      %v1976 = vpack.c.bf16 %v1703, %v1703
      %v1977 = vpack.c.bf16 %v1704, %v1704
      %v1978 = vpack.c.bf16 %v1705, %v1705
      %v1979 = vpack.c.bf16 %v1706, %v1706
      %v1980 = vpack.c.bf16 %v1707, %v1707
      %v1981 = vpack.c.bf16 %v1708, %v1708
      %v1982 = vpack.c.bf16 %v1709, %v1709
      %v1983 = vpack.c.bf16 %v1710, %v1710
      %v1984 = vpack.c.bf16 %v1711, %v1711
      %v1985 = vpack.c.bf16 %v1712, %v1712
      %v1987 = vlaneseq
      %v1988 = vshrl.u32 %v1987, 7
      %v1989 = vsub.s32 0, %v1988
      %v1990 = vrot.slane %v1969, %v1989
      %v1991 = vlaneseq
      %v1992 = vshrl.u32 %v1991, 7
      %v1993 = vsub.s32 1, %v1992
      %v1994 = vrot.slane %v1969, %v1993
      %v2253 = vunpack.c.l.b16 %v1713
      %v2254 = vunpack.c.h.b16 %v1713
      %v2255 = vunpack.c.l.b16 %v1714
      %v2256 = vunpack.c.h.b16 %v1714
      %v2257 = vunpack.c.l.b16 %v1715
      %v2258 = vunpack.c.h.b16 %v1715
      %v2259 = vunpack.c.l.b16 %v1716
      %v2260 = vunpack.c.h.b16 %v1716
      %v2261 = vunpack.c.l.b16 %v1717
      %v2262 = vunpack.c.h.b16 %v1717
      %v2263 = vunpack.c.l.b16 %v1718
      %v2264 = vunpack.c.h.b16 %v1718
      %v2265 = vunpack.c.l.b16 %v1719
      %v2266 = vunpack.c.h.b16 %v1719
      %v2267 = vunpack.c.l.b16 %v1720
      %v2268 = vunpack.c.h.b16 %v1720
      %v2269 = vunpack.c.l.b16 %v1721
      %v2270 = vunpack.c.h.b16 %v1721
      %v2271 = vunpack.c.l.b16 %v1722
      %v2272 = vunpack.c.h.b16 %v1722
      %v2273 = vunpack.c.l.b16 %v1723
      %v2274 = vunpack.c.h.b16 %v1723
      %v2275 = vunpack.c.l.b16 %v1724
      %v2276 = vunpack.c.h.b16 %v1724
      %v2277 = vunpack.c.l.b16 %v1725
      %v2278 = vunpack.c.h.b16 %v1725
      %v2279 = vunpack.c.l.b16 %v1726
      %v2280 = vunpack.c.h.b16 %v1726
      %v2281 = vunpack.c.l.b16 %v1727
      %v2282 = vunpack.c.h.b16 %v1727
      %v2283 = vunpack.c.l.b16 %v1728
      %v2284 = vunpack.c.h.b16 %v1728
      %v2285 = vunpack.c.l.b16 %v1729
      %v2286 = vunpack.c.h.b16 %v1729
      %v2287 = vunpack.c.l.b16 %v1730
      %v2288 = vunpack.c.h.b16 %v1730
      %v2289 = vunpack.c.l.b16 %v1731
      %v2290 = vunpack.c.h.b16 %v1731
      %v2291 = vunpack.c.l.b16 %v1732
      %v2292 = vunpack.c.h.b16 %v1732
      %v2293 = vunpack.c.l.b16 %v1733
      %v2294 = vunpack.c.h.b16 %v1733
      %v2295 = vunpack.c.l.b16 %v1734
      %v2296 = vunpack.c.h.b16 %v1734
      %v2297 = vunpack.c.l.b16 %v1735
      %v2298 = vunpack.c.h.b16 %v1735
      %v2299 = vunpack.c.l.b16 %v1736
      %v2300 = vunpack.c.h.b16 %v1736
      %v2301 = vunpack.c.l.b16 %v1737
      %v2302 = vunpack.c.h.b16 %v1737
      %v2303 = vunpack.c.l.b16 %v1738
      %v2304 = vunpack.c.h.b16 %v1738
      %v2305 = vunpack.c.l.b16 %v1739
      %v2306 = vunpack.c.h.b16 %v1739
      %v2307 = vunpack.c.l.b16 %v1740
      %v2308 = vunpack.c.h.b16 %v1740
      %v2309 = vunpack.c.l.b16 %v1741
      %v2310 = vunpack.c.h.b16 %v1741
      %v2311 = vunpack.c.l.b16 %v1742
      %v2312 = vunpack.c.h.b16 %v1742
      %v2313 = vunpack.c.l.b16 %v1743
      %v2314 = vunpack.c.h.b16 %v1743
      %v2315 = vunpack.c.l.b16 %v1744
      %v2316 = vunpack.c.h.b16 %v1744
      %v2317 = vunpack.c.l.b16 %v1745
      %v2318 = vunpack.c.h.b16 %v1745
      %v2319 = vunpack.c.l.b16 %v1746
      %v2320 = vunpack.c.h.b16 %v1746
      %v2321 = vunpack.c.l.b16 %v1747
      %v2322 = vunpack.c.h.b16 %v1747
      %v2323 = vunpack.c.l.b16 %v1748
      %v2324 = vunpack.c.h.b16 %v1748
      %v2325 = vunpack.c.l.b16 %v1749
      %v2326 = vunpack.c.h.b16 %v1749
      %v2327 = vunpack.c.l.b16 %v1750
      %v2328 = vunpack.c.h.b16 %v1750
      %v2329 = vunpack.c.l.b16 %v1751
      %v2330 = vunpack.c.h.b16 %v1751
      %v2331 = vunpack.c.l.b16 %v1752
      %v2332 = vunpack.c.h.b16 %v1752
      %v2333 = vunpack.c.l.b16 %v1753
      %v2334 = vunpack.c.h.b16 %v1753
      %v2335 = vunpack.c.l.b16 %v1754
      %v2336 = vunpack.c.h.b16 %v1754
      %v2337 = vunpack.c.l.b16 %v1755
      %v2338 = vunpack.c.h.b16 %v1755
      %v2339 = vunpack.c.l.b16 %v1756
      %v2340 = vunpack.c.h.b16 %v1756
      %v2341 = vunpack.c.l.b16 %v1757
      %v2342 = vunpack.c.h.b16 %v1757
      %v2343 = vunpack.c.l.b16 %v1758
      %v2344 = vunpack.c.h.b16 %v1758
      %v2345 = vunpack.c.l.b16 %v1759
      %v2346 = vunpack.c.h.b16 %v1759
      %v2347 = vunpack.c.l.b16 %v1760
      %v2348 = vunpack.c.h.b16 %v1760
      %v2349 = vunpack.c.l.b16 %v1761
      %v2350 = vunpack.c.h.b16 %v1761
      %v2351 = vunpack.c.l.b16 %v1762
      %v2352 = vunpack.c.h.b16 %v1762
      %v2353 = vunpack.c.l.b16 %v1763
      %v2354 = vunpack.c.h.b16 %v1763
      %v2355 = vunpack.c.l.b16 %v1764
      %v2356 = vunpack.c.h.b16 %v1764
      %v2357 = vunpack.c.l.b16 %v1765
      %v2358 = vunpack.c.h.b16 %v1765
      %v2359 = vunpack.c.l.b16 %v1766
      %v2360 = vunpack.c.h.b16 %v1766
      %v2361 = vunpack.c.l.b16 %v1767
      %v2362 = vunpack.c.h.b16 %v1767
      %v2363 = vunpack.c.l.b16 %v1768
      %v2364 = vunpack.c.h.b16 %v1768
      %v2365 = vunpack.c.l.b16 %v1769
      %v2366 = vunpack.c.h.b16 %v1769
      %v2367 = vunpack.c.l.b16 %v1770
      %v2368 = vunpack.c.h.b16 %v1770
      %v2369 = vunpack.c.l.b16 %v1771
      %v2370 = vunpack.c.h.b16 %v1771
      %v2371 = vunpack.c.l.b16 %v1772
      %v2372 = vunpack.c.h.b16 %v1772
      %v2373 = vunpack.c.l.b16 %v1773
      %v2374 = vunpack.c.h.b16 %v1773
      %v2375 = vunpack.c.l.b16 %v1774
      %v2376 = vunpack.c.h.b16 %v1774
      %v2377 = vunpack.c.l.b16 %v1775
      %v2378 = vunpack.c.h.b16 %v1775
      %v2379 = vunpack.c.l.b16 %v1776
      %v2380 = vunpack.c.h.b16 %v1776
      %v2381 = vunpack.c.l.b16 %v1777
      %v2382 = vunpack.c.h.b16 %v1777
      %v2383 = vunpack.c.l.b16 %v1778
      %v2384 = vunpack.c.h.b16 %v1778
      %v2385 = vunpack.c.l.b16 %v1779
      %v2386 = vunpack.c.h.b16 %v1779
      %v2387 = vunpack.c.l.b16 %v1780
      %v2388 = vunpack.c.h.b16 %v1780
      %v2389 = vunpack.c.l.b16 %v1781
      %v2390 = vunpack.c.h.b16 %v1781
      %v2391 = vunpack.c.l.b16 %v1782
      %v2392 = vunpack.c.h.b16 %v1782
      %v2393 = vunpack.c.l.b16 %v1783
      %v2394 = vunpack.c.h.b16 %v1783
      %v2395 = vunpack.c.l.b16 %v1784
      %v2396 = vunpack.c.h.b16 %v1784
      %v2397 = vunpack.c.l.b16 %v1785
      %v2398 = vunpack.c.h.b16 %v1785
      %v2399 = vunpack.c.l.b16 %v1786
      %v2400 = vunpack.c.h.b16 %v1786
      %v2401 = vunpack.c.l.b16 %v1787
      %v2402 = vunpack.c.h.b16 %v1787
      %v2403 = vunpack.c.l.b16 %v1788
      %v2404 = vunpack.c.h.b16 %v1788
      %v2405 = vunpack.c.l.b16 %v1789
      %v2406 = vunpack.c.h.b16 %v1789
      %v2407 = vunpack.c.l.b16 %v1790
      %v2408 = vunpack.c.h.b16 %v1790
      %v2409 = vunpack.c.l.b16 %v1791
      %v2410 = vunpack.c.h.b16 %v1791
      %v2411 = vunpack.c.l.b16 %v1792
      %v2412 = vunpack.c.h.b16 %v1792
      %v2413 = vunpack.c.l.b16 %v1793
      %v2414 = vunpack.c.h.b16 %v1793
      %v2415 = vunpack.c.l.b16 %v1794
      %v2416 = vunpack.c.h.b16 %v1794
      %v2417 = vunpack.c.l.b16 %v1795
      %v2418 = vunpack.c.h.b16 %v1795
      %v2419 = vunpack.c.l.b16 %v1796
      %v2420 = vunpack.c.h.b16 %v1796
      %v2421 = vunpack.c.l.b16 %v1797
      %v2422 = vunpack.c.h.b16 %v1797
      %v2423 = vunpack.c.l.b16 %v1798
      %v2424 = vunpack.c.h.b16 %v1798
      %v2425 = vunpack.c.l.b16 %v1799
      %v2426 = vunpack.c.h.b16 %v1799
      %v2427 = vunpack.c.l.b16 %v1800
      %v2428 = vunpack.c.h.b16 %v1800
      %v2429 = vunpack.c.l.b16 %v1801
      %v2430 = vunpack.c.h.b16 %v1801
      %v2431 = vunpack.c.l.b16 %v1802
      %v2432 = vunpack.c.h.b16 %v1802
      %v2433 = vunpack.c.l.b16 %v1803
      %v2434 = vunpack.c.h.b16 %v1803
      %v2435 = vunpack.c.l.b16 %v1804
      %v2436 = vunpack.c.h.b16 %v1804
      %v2437 = vunpack.c.l.b16 %v1805
      %v2438 = vunpack.c.h.b16 %v1805
      %v2439 = vunpack.c.l.b16 %v1806
      %v2440 = vunpack.c.h.b16 %v1806
      %v2441 = vunpack.c.l.b16 %v1807
      %v2442 = vunpack.c.h.b16 %v1807
      %v2443 = vunpack.c.l.b16 %v1808
      %v2444 = vunpack.c.h.b16 %v1808
      %v2445 = vunpack.c.l.b16 %v1809
      %v2446 = vunpack.c.h.b16 %v1809
      %v2447 = vunpack.c.l.b16 %v1810
      %v2448 = vunpack.c.h.b16 %v1810
      %v2449 = vunpack.c.l.b16 %v1811
      %v2450 = vunpack.c.h.b16 %v1811
      %v2451 = vunpack.c.l.b16 %v1812
      %v2452 = vunpack.c.h.b16 %v1812
      %v2453 = vunpack.c.l.b16 %v1813
      %v2454 = vunpack.c.h.b16 %v1813
      %v2455 = vunpack.c.l.b16 %v1814
      %v2456 = vunpack.c.h.b16 %v1814
      %v2457 = vunpack.c.l.b16 %v1815
      %v2458 = vunpack.c.h.b16 %v1815
      %v2459 = vunpack.c.l.b16 %v1816
      %v2460 = vunpack.c.h.b16 %v1816
      %v2461 = vunpack.c.l.b16 %v1817
      %v2462 = vunpack.c.h.b16 %v1817
      %v2463 = vunpack.c.l.b16 %v1818
      %v2464 = vunpack.c.h.b16 %v1818
      %v2465 = vunpack.c.l.b16 %v1819
      %v2466 = vunpack.c.h.b16 %v1819
      %v2467 = vunpack.c.l.b16 %v1820
      %v2468 = vunpack.c.h.b16 %v1820
      %v2469 = vunpack.c.l.b16 %v1821
      %v2470 = vunpack.c.h.b16 %v1821
      %v2471 = vunpack.c.l.b16 %v1822
      %v2472 = vunpack.c.h.b16 %v1822
      %v2473 = vunpack.c.l.b16 %v1823
      %v2474 = vunpack.c.h.b16 %v1823
      %v2475 = vunpack.c.l.b16 %v1824
      %v2476 = vunpack.c.h.b16 %v1824
      %v2477 = vunpack.c.l.b16 %v1825
      %v2478 = vunpack.c.h.b16 %v1825
      %v2479 = vunpack.c.l.b16 %v1826
      %v2480 = vunpack.c.h.b16 %v1826
      %v2481 = vunpack.c.l.b16 %v1827
      %v2482 = vunpack.c.h.b16 %v1827
      %v2483 = vunpack.c.l.b16 %v1828
      %v2484 = vunpack.c.h.b16 %v1828
      %v2485 = vunpack.c.l.b16 %v1829
      %v2486 = vunpack.c.h.b16 %v1829
      %v2487 = vunpack.c.l.b16 %v1830
      %v2488 = vunpack.c.h.b16 %v1830
      %v2489 = vunpack.c.l.b16 %v1831
      %v2490 = vunpack.c.h.b16 %v1831
      %v2491 = vunpack.c.l.b16 %v1832
      %v2492 = vunpack.c.h.b16 %v1832
      %v2493 = vunpack.c.l.b16 %v1833
      %v2494 = vunpack.c.h.b16 %v1833
      %v2495 = vunpack.c.l.b16 %v1834
      %v2496 = vunpack.c.h.b16 %v1834
      %v2497 = vunpack.c.l.b16 %v1835
      %v2498 = vunpack.c.h.b16 %v1835
      %v2499 = vunpack.c.l.b16 %v1836
      %v2500 = vunpack.c.h.b16 %v1836
      %v2501 = vunpack.c.l.b16 %v1837
      %v2502 = vunpack.c.h.b16 %v1837
      %v2503 = vunpack.c.l.b16 %v1838
      %v2504 = vunpack.c.h.b16 %v1838
      %v2505 = vunpack.c.l.b16 %v1839
      %v2506 = vunpack.c.h.b16 %v1839
      %v2507 = vunpack.c.l.b16 %v1840
      %v2508 = vunpack.c.h.b16 %v1840
      %v2509 = vunpack.c.l.b16 %v1841
      %v2510 = vunpack.c.h.b16 %v1841
      %v2511 = vunpack.c.l.b16 %v1842
      %v2512 = vunpack.c.h.b16 %v1842
      %v2513 = vunpack.c.l.b16 %v1843
      %v2514 = vunpack.c.h.b16 %v1843
      %v2515 = vunpack.c.l.b16 %v1844
      %v2516 = vunpack.c.h.b16 %v1844
      %v2517 = vunpack.c.l.b16 %v1845
      %v2518 = vunpack.c.h.b16 %v1845
      %v2519 = vunpack.c.l.b16 %v1846
      %v2520 = vunpack.c.h.b16 %v1846
      %v2521 = vunpack.c.l.b16 %v1847
      %v2522 = vunpack.c.h.b16 %v1847
      %v2523 = vunpack.c.l.b16 %v1848
      %v2524 = vunpack.c.h.b16 %v1848
      %v2525 = vunpack.c.l.b16 %v1849
      %v2526 = vunpack.c.h.b16 %v1849
      %v2527 = vunpack.c.l.b16 %v1850
      %v2528 = vunpack.c.h.b16 %v1850
      %v2529 = vunpack.c.l.b16 %v1851
      %v2530 = vunpack.c.h.b16 %v1851
      %v2531 = vunpack.c.l.b16 %v1852
      %v2532 = vunpack.c.h.b16 %v1852
      %v2533 = vunpack.c.l.b16 %v1853
      %v2534 = vunpack.c.h.b16 %v1853
      %v2535 = vunpack.c.l.b16 %v1854
      %v2536 = vunpack.c.h.b16 %v1854
      %v2537 = vunpack.c.l.b16 %v1855
      %v2538 = vunpack.c.h.b16 %v1855
      %v2539 = vunpack.c.l.b16 %v1856
      %v2540 = vunpack.c.h.b16 %v1856
      %v2541 = vunpack.c.l.b16 %v1857
      %v2542 = vunpack.c.h.b16 %v1857
      %v2543 = vunpack.c.l.b16 %v1858
      %v2544 = vunpack.c.h.b16 %v1858
      %v2545 = vunpack.c.l.b16 %v1859
      %v2546 = vunpack.c.h.b16 %v1859
      %v2547 = vunpack.c.l.b16 %v1860
      %v2548 = vunpack.c.h.b16 %v1860
      %v2549 = vunpack.c.l.b16 %v1861
      %v2550 = vunpack.c.h.b16 %v1861
      %v2551 = vunpack.c.l.b16 %v1862
      %v2552 = vunpack.c.h.b16 %v1862
      %v2553 = vunpack.c.l.b16 %v1863
      %v2554 = vunpack.c.h.b16 %v1863
      %v2555 = vunpack.c.l.b16 %v1864
      %v2556 = vunpack.c.h.b16 %v1864
      %v2557 = vunpack.c.l.b16 %v1865
      %v2558 = vunpack.c.h.b16 %v1865
      %v2559 = vunpack.c.l.b16 %v1866
      %v2560 = vunpack.c.h.b16 %v1866
      %v2561 = vunpack.c.l.b16 %v1867
      %v2562 = vunpack.c.h.b16 %v1867
      %v2563 = vunpack.c.l.b16 %v1868
      %v2564 = vunpack.c.h.b16 %v1868
      %v2565 = vunpack.c.l.b16 %v1869
      %v2566 = vunpack.c.h.b16 %v1869
      %v2567 = vunpack.c.l.b16 %v1870
      %v2568 = vunpack.c.h.b16 %v1870
      %v2569 = vunpack.c.l.b16 %v1871
      %v2570 = vunpack.c.h.b16 %v1871
      %v2571 = vunpack.c.l.b16 %v1872
      %v2572 = vunpack.c.h.b16 %v1872
      %v2573 = vunpack.c.l.b16 %v1873
      %v2574 = vunpack.c.h.b16 %v1873
      %v2575 = vunpack.c.l.b16 %v1874
      %v2576 = vunpack.c.h.b16 %v1874
      %v2577 = vunpack.c.l.b16 %v1875
      %v2578 = vunpack.c.h.b16 %v1875
      %v2579 = vunpack.c.l.b16 %v1876
      %v2580 = vunpack.c.h.b16 %v1876
      %v2581 = vunpack.c.l.b16 %v1877
      %v2582 = vunpack.c.h.b16 %v1877
      %v2583 = vunpack.c.l.b16 %v1878
      %v2584 = vunpack.c.h.b16 %v1878
      %v2585 = vunpack.c.l.b16 %v1879
      %v2586 = vunpack.c.h.b16 %v1879
      %v2587 = vunpack.c.l.b16 %v1880
      %v2588 = vunpack.c.h.b16 %v1880
      %v2589 = vunpack.c.l.b16 %v1881
      %v2590 = vunpack.c.h.b16 %v1881
      %v2591 = vunpack.c.l.b16 %v1882
      %v2592 = vunpack.c.h.b16 %v1882
      %v2593 = vunpack.c.l.b16 %v1883
      %v2594 = vunpack.c.h.b16 %v1883
      %v2595 = vunpack.c.l.b16 %v1884
      %v2596 = vunpack.c.h.b16 %v1884
      %v2597 = vunpack.c.l.b16 %v1885
      %v2598 = vunpack.c.h.b16 %v1885
      %v2599 = vunpack.c.l.b16 %v1886
      %v2600 = vunpack.c.h.b16 %v1886
      %v2601 = vunpack.c.l.b16 %v1887
      %v2602 = vunpack.c.h.b16 %v1887
      %v2603 = vunpack.c.l.b16 %v1888
      %v2604 = vunpack.c.h.b16 %v1888
      %v2605 = vunpack.c.l.b16 %v1889
      %v2606 = vunpack.c.h.b16 %v1889
      %v2607 = vunpack.c.l.b16 %v1890
      %v2608 = vunpack.c.h.b16 %v1890
      %v2609 = vunpack.c.l.b16 %v1891
      %v2610 = vunpack.c.h.b16 %v1891
      %v2611 = vunpack.c.l.b16 %v1892
      %v2612 = vunpack.c.h.b16 %v1892
      %v2613 = vunpack.c.l.b16 %v1893
      %v2614 = vunpack.c.h.b16 %v1893
      %v2615 = vunpack.c.l.b16 %v1894
      %v2616 = vunpack.c.h.b16 %v1894
      %v2617 = vunpack.c.l.b16 %v1895
      %v2618 = vunpack.c.h.b16 %v1895
      %v2619 = vunpack.c.l.b16 %v1896
      %v2620 = vunpack.c.h.b16 %v1896
      %v2621 = vunpack.c.l.b16 %v1897
      %v2622 = vunpack.c.h.b16 %v1897
      %v2623 = vunpack.c.l.b16 %v1898
      %v2624 = vunpack.c.h.b16 %v1898
      %v2625 = vunpack.c.l.b16 %v1899
      %v2626 = vunpack.c.h.b16 %v1899
      %v2627 = vunpack.c.l.b16 %v1900
      %v2628 = vunpack.c.h.b16 %v1900
      %v2629 = vunpack.c.l.b16 %v1901
      %v2630 = vunpack.c.h.b16 %v1901
      %v2631 = vunpack.c.l.b16 %v1902
      %v2632 = vunpack.c.h.b16 %v1902
      %v2633 = vunpack.c.l.b16 %v1903
      %v2634 = vunpack.c.h.b16 %v1903
      %v2635 = vunpack.c.l.b16 %v1904
      %v2636 = vunpack.c.h.b16 %v1904
      %v2637 = vunpack.c.l.b16 %v1905
      %v2638 = vunpack.c.h.b16 %v1905
      %v2639 = vunpack.c.l.b16 %v1906
      %v2640 = vunpack.c.h.b16 %v1906
      %v2641 = vunpack.c.l.b16 %v1907
      %v2642 = vunpack.c.h.b16 %v1907
      %v2643 = vunpack.c.l.b16 %v1908
      %v2644 = vunpack.c.h.b16 %v1908
      %v2645 = vunpack.c.l.b16 %v1909
      %v2646 = vunpack.c.h.b16 %v1909
      %v2647 = vunpack.c.l.b16 %v1910
      %v2648 = vunpack.c.h.b16 %v1910
      %v2649 = vunpack.c.l.b16 %v1911
      %v2650 = vunpack.c.h.b16 %v1911
      %v2651 = vunpack.c.l.b16 %v1912
      %v2652 = vunpack.c.h.b16 %v1912
      %v2653 = vunpack.c.l.b16 %v1913
      %v2654 = vunpack.c.h.b16 %v1913
      %v2655 = vunpack.c.l.b16 %v1914
      %v2656 = vunpack.c.h.b16 %v1914
      %v2657 = vunpack.c.l.b16 %v1915
      %v2658 = vunpack.c.h.b16 %v1915
      %v2659 = vunpack.c.l.b16 %v1916
      %v2660 = vunpack.c.h.b16 %v1916
      %v2661 = vunpack.c.l.b16 %v1917
      %v2662 = vunpack.c.h.b16 %v1917
      %v2663 = vunpack.c.l.b16 %v1918
      %v2664 = vunpack.c.h.b16 %v1918
      %v2665 = vunpack.c.l.b16 %v1919
      %v2666 = vunpack.c.h.b16 %v1919
      %v2667 = vunpack.c.l.b16 %v1920
      %v2668 = vunpack.c.h.b16 %v1920
      %v2669 = vunpack.c.l.b16 %v1921
      %v2670 = vunpack.c.h.b16 %v1921
      %v2671 = vunpack.c.l.b16 %v1922
      %v2672 = vunpack.c.h.b16 %v1922
      %v2673 = vunpack.c.l.b16 %v1923
      %v2674 = vunpack.c.h.b16 %v1923
      %v2675 = vunpack.c.l.b16 %v1924
      %v2676 = vunpack.c.h.b16 %v1924
      %v2677 = vunpack.c.l.b16 %v1925
      %v2678 = vunpack.c.h.b16 %v1925
      %v2679 = vunpack.c.l.b16 %v1926
      %v2680 = vunpack.c.h.b16 %v1926
      %v2681 = vunpack.c.l.b16 %v1927
      %v2682 = vunpack.c.h.b16 %v1927
      %v2683 = vunpack.c.l.b16 %v1928
      %v2684 = vunpack.c.h.b16 %v1928
      %v2685 = vunpack.c.l.b16 %v1929
      %v2686 = vunpack.c.h.b16 %v1929
      %v2687 = vunpack.c.l.b16 %v1930
      %v2688 = vunpack.c.h.b16 %v1930
      %v2689 = vunpack.c.l.b16 %v1931
      %v2690 = vunpack.c.h.b16 %v1931
      %v2691 = vunpack.c.l.b16 %v1932
      %v2692 = vunpack.c.h.b16 %v1932
      %v2693 = vunpack.c.l.b16 %v1933
      %v2694 = vunpack.c.h.b16 %v1933
      %v2695 = vunpack.c.l.b16 %v1934
      %v2696 = vunpack.c.h.b16 %v1934
      %v2697 = vunpack.c.l.b16 %v1935
      %v2698 = vunpack.c.h.b16 %v1935
      %v2699 = vunpack.c.l.b16 %v1936
      %v2700 = vunpack.c.h.b16 %v1936
      %v2701 = vunpack.c.l.b16 %v1937
      %v2702 = vunpack.c.h.b16 %v1937
      %v2703 = vunpack.c.l.b16 %v1938
      %v2704 = vunpack.c.h.b16 %v1938
      %v2705 = vunpack.c.l.b16 %v1939
      %v2706 = vunpack.c.h.b16 %v1939
      %v2707 = vunpack.c.l.b16 %v1940
      %v2708 = vunpack.c.h.b16 %v1940
      %v2709 = vunpack.c.l.b16 %v1941
      %v2710 = vunpack.c.h.b16 %v1941
      %v2711 = vunpack.c.l.b16 %v1942
      %v2712 = vunpack.c.h.b16 %v1942
      %v2713 = vunpack.c.l.b16 %v1943
      %v2714 = vunpack.c.h.b16 %v1943
      %v2715 = vunpack.c.l.b16 %v1944
      %v2716 = vunpack.c.h.b16 %v1944
      %v2717 = vunpack.c.l.b16 %v1945
      %v2718 = vunpack.c.h.b16 %v1945
      %v2719 = vunpack.c.l.b16 %v1946
      %v2720 = vunpack.c.h.b16 %v1946
      %v2721 = vunpack.c.l.b16 %v1947
      %v2722 = vunpack.c.h.b16 %v1947
      %v2723 = vunpack.c.l.b16 %v1948
      %v2724 = vunpack.c.h.b16 %v1948
      %v2725 = vunpack.c.l.b16 %v1949
      %v2726 = vunpack.c.h.b16 %v1949
      %v2727 = vunpack.c.l.b16 %v1950
      %v2728 = vunpack.c.h.b16 %v1950
      %v2729 = vunpack.c.l.b16 %v1951
      %v2730 = vunpack.c.h.b16 %v1951
      %v2731 = vunpack.c.l.b16 %v1952
      %v2732 = vunpack.c.h.b16 %v1952
      %v2733 = vunpack.c.l.b16 %v1953
      %v2734 = vunpack.c.h.b16 %v1953
      %v2735 = vunpack.c.l.b16 %v1954
      %v2736 = vunpack.c.h.b16 %v1954
      %v2737 = vunpack.c.l.b16 %v1955
      %v2738 = vunpack.c.h.b16 %v1955
      %v2739 = vunpack.c.l.b16 %v1956
      %v2740 = vunpack.c.h.b16 %v1956
      %v2741 = vunpack.c.l.b16 %v1957
      %v2742 = vunpack.c.h.b16 %v1957
      %v2743 = vunpack.c.l.b16 %v1958
      %v2744 = vunpack.c.h.b16 %v1958
      %v2745 = vunpack.c.l.b16 %v1959
      %v2746 = vunpack.c.h.b16 %v1959
      %v2747 = vunpack.c.l.b16 %v1960
      %v2748 = vunpack.c.h.b16 %v1960
      %v2749 = vunpack.c.l.b16 %v1961
      %v2750 = vunpack.c.h.b16 %v1961
      %v2751 = vunpack.c.l.b16 %v1962
      %v2752 = vunpack.c.h.b16 %v1962
      %v2753 = vunpack.c.l.b16 %v1963
      %v2754 = vunpack.c.h.b16 %v1963
      %v2755 = vunpack.c.l.b16 %v1964
      %v2756 = vunpack.c.h.b16 %v1964
      %v2757 = vunpack.c.l.b16 %v1965
      %v2758 = vunpack.c.h.b16 %v1965
      %v2759 = vunpack.c.l.b16 %v1966
      %v2760 = vunpack.c.h.b16 %v1966
      %v2761 = vunpack.c.l.b16 %v1967
      %v2762 = vunpack.c.h.b16 %v1967
      %v2763 = vunpack.c.l.b16 %v1968
      %v2764 = vunpack.c.h.b16 %v1968
      %v2765 = vpack.c.b16 %v2255, %v2253
      %v2766 = vpack.c.b16 %v2256, %v2254
      %v2767 = vpack.c.b16 %v2259, %v2257
      %v2768 = vpack.c.b16 %v2260, %v2258
      %v2769 = vpack.c.b16 %v2263, %v2261
      %v2770 = vpack.c.b16 %v2264, %v2262
      %v2771 = vpack.c.b16 %v2267, %v2265
      %v2772 = vpack.c.b16 %v2268, %v2266
      %v2773 = vpack.c.b16 %v2271, %v2269
      %v2774 = vpack.c.b16 %v2272, %v2270
      %v2775 = vpack.c.b16 %v2275, %v2273
      %v2776 = vpack.c.b16 %v2276, %v2274
      %v2777 = vpack.c.b16 %v2279, %v2277
      %v2778 = vpack.c.b16 %v2280, %v2278
      %v2779 = vpack.c.b16 %v2283, %v2281
      %v2780 = vpack.c.b16 %v2284, %v2282
      %v2781 = vpack.c.b16 %v2287, %v2285
      %v2782 = vpack.c.b16 %v2288, %v2286
      %v2783 = vpack.c.b16 %v2291, %v2289
      %v2784 = vpack.c.b16 %v2292, %v2290
      %v2785 = vpack.c.b16 %v2295, %v2293
      %v2786 = vpack.c.b16 %v2296, %v2294
      %v2787 = vpack.c.b16 %v2299, %v2297
      %v2788 = vpack.c.b16 %v2300, %v2298
      %v2789 = vpack.c.b16 %v2303, %v2301
      %v2790 = vpack.c.b16 %v2304, %v2302
      %v2791 = vpack.c.b16 %v2307, %v2305
      %v2792 = vpack.c.b16 %v2308, %v2306
      %v2793 = vpack.c.b16 %v2311, %v2309
      %v2794 = vpack.c.b16 %v2312, %v2310
      %v2795 = vpack.c.b16 %v2315, %v2313
      %v2796 = vpack.c.b16 %v2316, %v2314
      %v2797 = vpack.c.b16 %v2319, %v2317
      %v2798 = vpack.c.b16 %v2320, %v2318
      %v2799 = vpack.c.b16 %v2323, %v2321
      %v2800 = vpack.c.b16 %v2324, %v2322
      %v2801 = vpack.c.b16 %v2327, %v2325
      %v2802 = vpack.c.b16 %v2328, %v2326
      %v2803 = vpack.c.b16 %v2331, %v2329
      %v2804 = vpack.c.b16 %v2332, %v2330
      %v2805 = vpack.c.b16 %v2335, %v2333
      %v2806 = vpack.c.b16 %v2336, %v2334
      %v2807 = vpack.c.b16 %v2339, %v2337
      %v2808 = vpack.c.b16 %v2340, %v2338
      %v2809 = vpack.c.b16 %v2343, %v2341
      %v2810 = vpack.c.b16 %v2344, %v2342
      %v2811 = vpack.c.b16 %v2347, %v2345
      %v2812 = vpack.c.b16 %v2348, %v2346
      %v2813 = vpack.c.b16 %v2351, %v2349
      %v2814 = vpack.c.b16 %v2352, %v2350
      %v2815 = vpack.c.b16 %v2355, %v2353
      %v2816 = vpack.c.b16 %v2356, %v2354
      %v2817 = vpack.c.b16 %v2359, %v2357
      %v2818 = vpack.c.b16 %v2360, %v2358
      %v2819 = vpack.c.b16 %v2363, %v2361
      %v2820 = vpack.c.b16 %v2364, %v2362
      %v2821 = vpack.c.b16 %v2367, %v2365
      %v2822 = vpack.c.b16 %v2368, %v2366
      %v2823 = vpack.c.b16 %v2371, %v2369
      %v2824 = vpack.c.b16 %v2372, %v2370
      %v2825 = vpack.c.b16 %v2375, %v2373
      %v2826 = vpack.c.b16 %v2376, %v2374
      %v2827 = vpack.c.b16 %v2379, %v2377
      %v2828 = vpack.c.b16 %v2380, %v2378
      %v2829 = vpack.c.b16 %v2383, %v2381
      %v2830 = vpack.c.b16 %v2384, %v2382
      %v2831 = vpack.c.b16 %v2387, %v2385
      %v2832 = vpack.c.b16 %v2388, %v2386
      %v2833 = vpack.c.b16 %v2391, %v2389
      %v2834 = vpack.c.b16 %v2392, %v2390
      %v2835 = vpack.c.b16 %v2395, %v2393
      %v2836 = vpack.c.b16 %v2396, %v2394
      %v2837 = vpack.c.b16 %v2399, %v2397
      %v2838 = vpack.c.b16 %v2400, %v2398
      %v2839 = vpack.c.b16 %v2403, %v2401
      %v2840 = vpack.c.b16 %v2404, %v2402
      %v2841 = vpack.c.b16 %v2407, %v2405
      %v2842 = vpack.c.b16 %v2408, %v2406
      %v2843 = vpack.c.b16 %v2411, %v2409
      %v2844 = vpack.c.b16 %v2412, %v2410
      %v2845 = vpack.c.b16 %v2415, %v2413
      %v2846 = vpack.c.b16 %v2416, %v2414
      %v2847 = vpack.c.b16 %v2419, %v2417
      %v2848 = vpack.c.b16 %v2420, %v2418
      %v2849 = vpack.c.b16 %v2423, %v2421
      %v2850 = vpack.c.b16 %v2424, %v2422
      %v2851 = vpack.c.b16 %v2427, %v2425
      %v2852 = vpack.c.b16 %v2428, %v2426
      %v2853 = vpack.c.b16 %v2431, %v2429
      %v2854 = vpack.c.b16 %v2432, %v2430
      %v2855 = vpack.c.b16 %v2435, %v2433
      %v2856 = vpack.c.b16 %v2436, %v2434
      %v2857 = vpack.c.b16 %v2439, %v2437
      %v2858 = vpack.c.b16 %v2440, %v2438
      %v2859 = vpack.c.b16 %v2443, %v2441
      %v2860 = vpack.c.b16 %v2444, %v2442
      %v2861 = vpack.c.b16 %v2447, %v2445
      %v2862 = vpack.c.b16 %v2448, %v2446
      %v2863 = vpack.c.b16 %v2451, %v2449
      %v2864 = vpack.c.b16 %v2452, %v2450
      %v2865 = vpack.c.b16 %v2455, %v2453
      %v2866 = vpack.c.b16 %v2456, %v2454
      %v2867 = vpack.c.b16 %v2459, %v2457
      %v2868 = vpack.c.b16 %v2460, %v2458
      %v2869 = vpack.c.b16 %v2463, %v2461
      %v2870 = vpack.c.b16 %v2464, %v2462
      %v2871 = vpack.c.b16 %v2467, %v2465
      %v2872 = vpack.c.b16 %v2468, %v2466
      %v2873 = vpack.c.b16 %v2471, %v2469
      %v2874 = vpack.c.b16 %v2472, %v2470
      %v2875 = vpack.c.b16 %v2475, %v2473
      %v2876 = vpack.c.b16 %v2476, %v2474
      %v2877 = vpack.c.b16 %v2479, %v2477
      %v2878 = vpack.c.b16 %v2480, %v2478
      %v2879 = vpack.c.b16 %v2483, %v2481
      %v2880 = vpack.c.b16 %v2484, %v2482
      %v2881 = vpack.c.b16 %v2487, %v2485
      %v2882 = vpack.c.b16 %v2488, %v2486
      %v2883 = vpack.c.b16 %v2491, %v2489
      %v2884 = vpack.c.b16 %v2492, %v2490
      %v2885 = vpack.c.b16 %v2495, %v2493
      %v2886 = vpack.c.b16 %v2496, %v2494
      %v2887 = vpack.c.b16 %v2499, %v2497
      %v2888 = vpack.c.b16 %v2500, %v2498
      %v2889 = vpack.c.b16 %v2503, %v2501
      %v2890 = vpack.c.b16 %v2504, %v2502
      %v2891 = vpack.c.b16 %v2507, %v2505
      %v2892 = vpack.c.b16 %v2508, %v2506
      %v2893 = vpack.c.b16 %v2511, %v2509
      %v2894 = vpack.c.b16 %v2512, %v2510
      %v2895 = vpack.c.b16 %v2515, %v2513
      %v2896 = vpack.c.b16 %v2516, %v2514
      %v2897 = vpack.c.b16 %v2519, %v2517
      %v2898 = vpack.c.b16 %v2520, %v2518
      %v2899 = vpack.c.b16 %v2523, %v2521
      %v2900 = vpack.c.b16 %v2524, %v2522
      %v2901 = vpack.c.b16 %v2527, %v2525
      %v2902 = vpack.c.b16 %v2528, %v2526
      %v2903 = vpack.c.b16 %v2531, %v2529
      %v2904 = vpack.c.b16 %v2532, %v2530
      %v2905 = vpack.c.b16 %v2535, %v2533
      %v2906 = vpack.c.b16 %v2536, %v2534
      %v2907 = vpack.c.b16 %v2539, %v2537
      %v2908 = vpack.c.b16 %v2540, %v2538
      %v2909 = vpack.c.b16 %v2543, %v2541
      %v2910 = vpack.c.b16 %v2544, %v2542
      %v2911 = vpack.c.b16 %v2547, %v2545
      %v2912 = vpack.c.b16 %v2548, %v2546
      %v2913 = vpack.c.b16 %v2551, %v2549
      %v2914 = vpack.c.b16 %v2552, %v2550
      %v2915 = vpack.c.b16 %v2555, %v2553
      %v2916 = vpack.c.b16 %v2556, %v2554
      %v2917 = vpack.c.b16 %v2559, %v2557
      %v2918 = vpack.c.b16 %v2560, %v2558
      %v2919 = vpack.c.b16 %v2563, %v2561
      %v2920 = vpack.c.b16 %v2564, %v2562
      %v2921 = vpack.c.b16 %v2567, %v2565
      %v2922 = vpack.c.b16 %v2568, %v2566
      %v2923 = vpack.c.b16 %v2571, %v2569
      %v2924 = vpack.c.b16 %v2572, %v2570
      %v2925 = vpack.c.b16 %v2575, %v2573
      %v2926 = vpack.c.b16 %v2576, %v2574
      %v2927 = vpack.c.b16 %v2579, %v2577
      %v2928 = vpack.c.b16 %v2580, %v2578
      %v2929 = vpack.c.b16 %v2583, %v2581
      %v2930 = vpack.c.b16 %v2584, %v2582
      %v2931 = vpack.c.b16 %v2587, %v2585
      %v2932 = vpack.c.b16 %v2588, %v2586
      %v2933 = vpack.c.b16 %v2591, %v2589
      %v2934 = vpack.c.b16 %v2592, %v2590
      %v2935 = vpack.c.b16 %v2595, %v2593
      %v2936 = vpack.c.b16 %v2596, %v2594
      %v2937 = vpack.c.b16 %v2599, %v2597
      %v2938 = vpack.c.b16 %v2600, %v2598
      %v2939 = vpack.c.b16 %v2603, %v2601
      %v2940 = vpack.c.b16 %v2604, %v2602
      %v2941 = vpack.c.b16 %v2607, %v2605
      %v2942 = vpack.c.b16 %v2608, %v2606
      %v2943 = vpack.c.b16 %v2611, %v2609
      %v2944 = vpack.c.b16 %v2612, %v2610
      %v2945 = vpack.c.b16 %v2615, %v2613
      %v2946 = vpack.c.b16 %v2616, %v2614
      %v2947 = vpack.c.b16 %v2619, %v2617
      %v2948 = vpack.c.b16 %v2620, %v2618
      %v2949 = vpack.c.b16 %v2623, %v2621
      %v2950 = vpack.c.b16 %v2624, %v2622
      %v2951 = vpack.c.b16 %v2627, %v2625
      %v2952 = vpack.c.b16 %v2628, %v2626
      %v2953 = vpack.c.b16 %v2631, %v2629
      %v2954 = vpack.c.b16 %v2632, %v2630
      %v2955 = vpack.c.b16 %v2635, %v2633
      %v2956 = vpack.c.b16 %v2636, %v2634
      %v2957 = vpack.c.b16 %v2639, %v2637
      %v2958 = vpack.c.b16 %v2640, %v2638
      %v2959 = vpack.c.b16 %v2643, %v2641
      %v2960 = vpack.c.b16 %v2644, %v2642
      %v2961 = vpack.c.b16 %v2647, %v2645
      %v2962 = vpack.c.b16 %v2648, %v2646
      %v2963 = vpack.c.b16 %v2651, %v2649
      %v2964 = vpack.c.b16 %v2652, %v2650
      %v2965 = vpack.c.b16 %v2655, %v2653
      %v2966 = vpack.c.b16 %v2656, %v2654
      %v2967 = vpack.c.b16 %v2659, %v2657
      %v2968 = vpack.c.b16 %v2660, %v2658
      %v2969 = vpack.c.b16 %v2663, %v2661
      %v2970 = vpack.c.b16 %v2664, %v2662
      %v2971 = vpack.c.b16 %v2667, %v2665
      %v2972 = vpack.c.b16 %v2668, %v2666
      %v2973 = vpack.c.b16 %v2671, %v2669
      %v2974 = vpack.c.b16 %v2672, %v2670
      %v2975 = vpack.c.b16 %v2675, %v2673
      %v2976 = vpack.c.b16 %v2676, %v2674
      %v2977 = vpack.c.b16 %v2679, %v2677
      %v2978 = vpack.c.b16 %v2680, %v2678
      %v2979 = vpack.c.b16 %v2683, %v2681
      %v2980 = vpack.c.b16 %v2684, %v2682
      %v2981 = vpack.c.b16 %v2687, %v2685
      %v2982 = vpack.c.b16 %v2688, %v2686
      %v2983 = vpack.c.b16 %v2691, %v2689
      %v2984 = vpack.c.b16 %v2692, %v2690
      %v2985 = vpack.c.b16 %v2695, %v2693
      %v2986 = vpack.c.b16 %v2696, %v2694
      %v2987 = vpack.c.b16 %v2699, %v2697
      %v2988 = vpack.c.b16 %v2700, %v2698
      %v2989 = vpack.c.b16 %v2703, %v2701
      %v2990 = vpack.c.b16 %v2704, %v2702
      %v2991 = vpack.c.b16 %v2707, %v2705
      %v2992 = vpack.c.b16 %v2708, %v2706
      %v2993 = vpack.c.b16 %v2711, %v2709
      %v2994 = vpack.c.b16 %v2712, %v2710
      %v2995 = vpack.c.b16 %v2715, %v2713
      %v2996 = vpack.c.b16 %v2716, %v2714
      %v2997 = vpack.c.b16 %v2719, %v2717
      %v2998 = vpack.c.b16 %v2720, %v2718
      %v2999 = vpack.c.b16 %v2723, %v2721
      %v3000 = vpack.c.b16 %v2724, %v2722
      %v3001 = vpack.c.b16 %v2727, %v2725
      %v3002 = vpack.c.b16 %v2728, %v2726
      %v3003 = vpack.c.b16 %v2731, %v2729
      %v3004 = vpack.c.b16 %v2732, %v2730
      %v3005 = vpack.c.b16 %v2735, %v2733
      %v3006 = vpack.c.b16 %v2736, %v2734
      %v3007 = vpack.c.b16 %v2739, %v2737
      %v3008 = vpack.c.b16 %v2740, %v2738
      %v3009 = vpack.c.b16 %v2743, %v2741
      %v3010 = vpack.c.b16 %v2744, %v2742
      %v3011 = vpack.c.b16 %v2747, %v2745
      %v3012 = vpack.c.b16 %v2748, %v2746
      %v3013 = vpack.c.b16 %v2751, %v2749
      %v3014 = vpack.c.b16 %v2752, %v2750
      %v3015 = vpack.c.b16 %v2755, %v2753
      %v3016 = vpack.c.b16 %v2756, %v2754
      %v3017 = vpack.c.b16 %v2759, %v2757
      %v3018 = vpack.c.b16 %v2760, %v2758
      %v3019 = vpack.c.b16 %v2763, %v2761
      %v3020 = vpack.c.b16 %v2764, %v2762
      %3277 = vmatprep.subr.bf16.mxu0 %v2766
      %3278 = vmatpush1.bf16.msra.mxu0 %v2765
      %3279 = vmatprep.subr.bf16.mxu0 %v2768
      %3280 = vmatpush1.bf16.msra.mxu0 %v2767
      %3281 = vmatprep.subr.bf16.mxu0 %v2770
      %3282 = vmatpush1.bf16.msra.mxu0 %v2769
      %3283 = vmatprep.subr.bf16.mxu0 %v2772
      %3284 = vmatpush1.bf16.msra.mxu0 %v2771
      %3285 = vmatprep.subr.bf16.mxu0 %v2774
      %3286 = vmatpush1.bf16.msra.mxu0 %v2773
      %3287 = vmatprep.subr.bf16.mxu0 %v2776
      %3288 = vmatpush1.bf16.msra.mxu0 %v2775
      %3289 = vmatprep.subr.bf16.mxu0 %v2778
      %3290 = vmatpush1.bf16.msra.mxu0 %v2777
      %3291 = vmatprep.subr.bf16.mxu0 %v2780
      %3292 = vmatpush1.bf16.msra.mxu0 %v2779
      %3293 = vmatprep.subr.bf16.mxu0 %v2782
      %3294 = vmatpush1.bf16.msra.mxu0 %v2781
      %3295 = vmatprep.subr.bf16.mxu0 %v2784
      %3296 = vmatpush1.bf16.msra.mxu0 %v2783
      %3297 = vmatprep.subr.bf16.mxu0 %v2786
      %3298 = vmatpush1.bf16.msra.mxu0 %v2785
      %3299 = vmatprep.subr.bf16.mxu0 %v2788
      %3300 = vmatpush1.bf16.msra.mxu0 %v2787
      %3301 = vmatprep.subr.bf16.mxu0 %v2790
      %3302 = vmatpush1.bf16.msra.mxu0 %v2789
      %3303 = vmatprep.subr.bf16.mxu0 %v2792
      %3304 = vmatpush1.bf16.msra.mxu0 %v2791
      %3305 = vmatprep.subr.bf16.mxu0 %v2794
      %3306 = vmatpush1.bf16.msra.mxu0 %v2793
      %3307 = vmatprep.subr.bf16.mxu0 %v2796
      %3308 = vmatpush1.bf16.msra.mxu0 %v2795
      %3309 = vmatprep.mubr.bf16.mxu0 %v1971
      %3310 = vmatmul.mubr.bf16.gmra.mrb[0].mxu0 %v1970
      %v3311 = vpop.f32.mrb[0].mxu0
      %v3312 = vadd.f32 %v1990, %v3311
      %v3313 = vpop.f32.mrb[0].mxu0
      %v3314 = vadd.f32 %v1994, %v3313
      %v3315 = vpop.f32.mrb[0].mxu0
      %v3316 = vpop.f32.mrb[0].mxu0
      %3317 = vdwg.mxu0
      %3318 = vmatprep.subr.bf16.mxu0 %v2798
      %3319 = vmatpush1.bf16.msra.mxu0 %v2797
      %3320 = vmatprep.subr.bf16.mxu0 %v2800
      %3321 = vmatpush1.bf16.msra.mxu0 %v2799
      %3322 = vmatprep.subr.bf16.mxu0 %v2802
      %3323 = vmatpush1.bf16.msra.mxu0 %v2801
      %3324 = vmatprep.subr.bf16.mxu0 %v2804
      %3325 = vmatpush1.bf16.msra.mxu0 %v2803
      %3326 = vmatprep.subr.bf16.mxu0 %v2806
      %3327 = vmatpush1.bf16.msra.mxu0 %v2805
      %3328 = vmatprep.subr.bf16.mxu0 %v2808
      %3329 = vmatpush1.bf16.msra.mxu0 %v2807
      %3330 = vmatprep.subr.bf16.mxu0 %v2810
      %3331 = vmatpush1.bf16.msra.mxu0 %v2809
      %3332 = vmatprep.subr.bf16.mxu0 %v2812
      %3333 = vmatpush1.bf16.msra.mxu0 %v2811
      %3334 = vmatprep.subr.bf16.mxu0 %v2814
      %3335 = vmatpush1.bf16.msra.mxu0 %v2813
      %3336 = vmatprep.subr.bf16.mxu0 %v2816
      %3337 = vmatpush1.bf16.msra.mxu0 %v2815
      %3338 = vmatprep.subr.bf16.mxu0 %v2818
      %3339 = vmatpush1.bf16.msra.mxu0 %v2817
      %3340 = vmatprep.subr.bf16.mxu0 %v2820
      %3341 = vmatpush1.bf16.msra.mxu0 %v2819
      %3342 = vmatprep.subr.bf16.mxu0 %v2822
      %3343 = vmatpush1.bf16.msra.mxu0 %v2821
      %3344 = vmatprep.subr.bf16.mxu0 %v2824
      %3345 = vmatpush1.bf16.msra.mxu0 %v2823
      %3346 = vmatprep.subr.bf16.mxu0 %v2826
      %3347 = vmatpush1.bf16.msra.mxu0 %v2825
      %3348 = vmatprep.subr.bf16.mxu0 %v2828
      %3349 = vmatpush1.bf16.msra.mxu0 %v2827
      %3350 = vmatprep.mubr.bf16.mxu0 %v1973
      %3351 = vmatmul.mubr.bf16.gmra.mrb[0].mxu0 %v1972
      %v3352 = vpop.f32.mrb[0].mxu0
      %v3353 = vadd.f32 %v3312, %v3352
      %v3354 = vpop.f32.mrb[0].mxu0
      %v3355 = vadd.f32 %v3314, %v3354
      %v3356 = vpop.f32.mrb[0].mxu0
      %v3357 = vpop.f32.mrb[0].mxu0
      %3358 = vdwg.mxu0
      %3359 = vmatprep.subr.bf16.mxu0 %v2830
      %3360 = vmatpush1.bf16.msra.mxu0 %v2829
      %3361 = vmatprep.subr.bf16.mxu0 %v2832
      %3362 = vmatpush1.bf16.msra.mxu0 %v2831
      %3363 = vmatprep.subr.bf16.mxu0 %v2834
      %3364 = vmatpush1.bf16.msra.mxu0 %v2833
      %3365 = vmatprep.subr.bf16.mxu0 %v2836
      %3366 = vmatpush1.bf16.msra.mxu0 %v2835
      %3367 = vmatprep.subr.bf16.mxu0 %v2838
      %3368 = vmatpush1.bf16.msra.mxu0 %v2837
      %3369 = vmatprep.subr.bf16.mxu0 %v2840
      %3370 = vmatpush1.bf16.msra.mxu0 %v2839
      %3371 = vmatprep.subr.bf16.mxu0 %v2842
      %3372 = vmatpush1.bf16.msra.mxu0 %v2841
      %3373 = vmatprep.subr.bf16.mxu0 %v2844
      %3374 = vmatpush1.bf16.msra.mxu0 %v2843
      %3375 = vmatprep.subr.bf16.mxu0 %v2846
      %3376 = vmatpush1.bf16.msra.mxu0 %v2845
      %3377 = vmatprep.subr.bf16.mxu0 %v2848
      %3378 = vmatpush1.bf16.msra.mxu0 %v2847
      %3379 = vmatprep.subr.bf16.mxu0 %v2850
      %3380 = vmatpush1.bf16.msra.mxu0 %v2849
      %3381 = vmatprep.subr.bf16.mxu0 %v2852
      %3382 = vmatpush1.bf16.msra.mxu0 %v2851
      %3383 = vmatprep.subr.bf16.mxu0 %v2854
      %3384 = vmatpush1.bf16.msra.mxu0 %v2853
      %3385 = vmatprep.subr.bf16.mxu0 %v2856
      %3386 = vmatpush1.bf16.msra.mxu0 %v2855
      %3387 = vmatprep.subr.bf16.mxu0 %v2858
      %3388 = vmatpush1.bf16.msra.mxu0 %v2857
      %3389 = vmatprep.subr.bf16.mxu0 %v2860
      %3390 = vmatpush1.bf16.msra.mxu0 %v2859
      %3391 = vmatprep.mubr.bf16.mxu0 %v1975
      %3392 = vmatmul.mubr.bf16.gmra.mrb[0].mxu0 %v1974
      %v3393 = vpop.f32.mrb[0].mxu0
      %v3394 = vadd.f32 %v3353, %v3393
      %v3395 = vpop.f32.mrb[0].mxu0
      %v3396 = vadd.f32 %v3355, %v3395
      %v3397 = vpop.f32.mrb[0].mxu0
      %v3398 = vpop.f32.mrb[0].mxu0
      %3399 = vdwg.mxu0
      %3400 = vmatprep.subr.bf16.mxu0 %v2862
      %3401 = vmatpush1.bf16.msra.mxu0 %v2861
      %3402 = vmatprep.subr.bf16.mxu0 %v2864
      %3403 = vmatpush1.bf16.msra.mxu0 %v2863
      %3404 = vmatprep.subr.bf16.mxu0 %v2866
      %3405 = vmatpush1.bf16.msra.mxu0 %v2865
      %3406 = vmatprep.subr.bf16.mxu0 %v2868
      %3407 = vmatpush1.bf16.msra.mxu0 %v2867
      %3408 = vmatprep.subr.bf16.mxu0 %v2870
      %3409 = vmatpush1.bf16.msra.mxu0 %v2869
      %3410 = vmatprep.subr.bf16.mxu0 %v2872
      %3411 = vmatpush1.bf16.msra.mxu0 %v2871
      %3412 = vmatprep.subr.bf16.mxu0 %v2874
      %3413 = vmatpush1.bf16.msra.mxu0 %v2873
      %3414 = vmatprep.subr.bf16.mxu0 %v2876
      %3415 = vmatpush1.bf16.msra.mxu0 %v2875
      %3416 = vmatprep.subr.bf16.mxu0 %v2878
      %3417 = vmatpush1.bf16.msra.mxu0 %v2877
      %3418 = vmatprep.subr.bf16.mxu0 %v2880
      %3419 = vmatpush1.bf16.msra.mxu0 %v2879
      %3420 = vmatprep.subr.bf16.mxu0 %v2882
      %3421 = vmatpush1.bf16.msra.mxu0 %v2881
      %3422 = vmatprep.subr.bf16.mxu0 %v2884
      %3423 = vmatpush1.bf16.msra.mxu0 %v2883
      %3424 = vmatprep.subr.bf16.mxu0 %v2886
      %3425 = vmatpush1.bf16.msra.mxu0 %v2885
      %3426 = vmatprep.subr.bf16.mxu0 %v2888
      %3427 = vmatpush1.bf16.msra.mxu0 %v2887
      %3428 = vmatprep.subr.bf16.mxu0 %v2890
      %3429 = vmatpush1.bf16.msra.mxu0 %v2889
      %3430 = vmatprep.subr.bf16.mxu0 %v2892
      %3431 = vmatpush1.bf16.msra.mxu0 %v2891
      %3432 = vmatprep.mubr.bf16.mxu0 %v1977
      %3433 = vmatmul.mubr.bf16.gmra.mrb[0].mxu0 %v1976
      %v3434 = vpop.f32.mrb[0].mxu0
      %v3435 = vadd.f32 %v3394, %v3434
      %v3436 = vpop.f32.mrb[0].mxu0
      %v3437 = vadd.f32 %v3396, %v3436
      %v3438 = vpop.f32.mrb[0].mxu0
      %v3439 = vpop.f32.mrb[0].mxu0
      %3440 = vdwg.mxu0
      %3441 = vmatprep.subr.bf16.mxu0 %v2894
      %3442 = vmatpush1.bf16.msra.mxu0 %v2893
      %3443 = vmatprep.subr.bf16.mxu0 %v2896
      %3444 = vmatpush1.bf16.msra.mxu0 %v2895
      %3445 = vmatprep.subr.bf16.mxu0 %v2898
      %3446 = vmatpush1.bf16.msra.mxu0 %v2897
      %3447 = vmatprep.subr.bf16.mxu0 %v2900
      %3448 = vmatpush1.bf16.msra.mxu0 %v2899
      %3449 = vmatprep.subr.bf16.mxu0 %v2902
      %3450 = vmatpush1.bf16.msra.mxu0 %v2901
      %3451 = vmatprep.subr.bf16.mxu0 %v2904
      %3452 = vmatpush1.bf16.msra.mxu0 %v2903
      %3453 = vmatprep.subr.bf16.mxu0 %v2906
      %3454 = vmatpush1.bf16.msra.mxu0 %v2905
      %3455 = vmatprep.subr.bf16.mxu0 %v2908
      %3456 = vmatpush1.bf16.msra.mxu0 %v2907
      %3457 = vmatprep.subr.bf16.mxu0 %v2910
      %3458 = vmatpush1.bf16.msra.mxu0 %v2909
      %3459 = vmatprep.subr.bf16.mxu0 %v2912
      %3460 = vmatpush1.bf16.msra.mxu0 %v2911
      %3461 = vmatprep.subr.bf16.mxu0 %v2914
      %3462 = vmatpush1.bf16.msra.mxu0 %v2913
      %3463 = vmatprep.subr.bf16.mxu0 %v2916
      %3464 = vmatpush1.bf16.msra.mxu0 %v2915
      %3465 = vmatprep.subr.bf16.mxu0 %v2918
      %3466 = vmatpush1.bf16.msra.mxu0 %v2917
      %3467 = vmatprep.subr.bf16.mxu0 %v2920
      %3468 = vmatpush1.bf16.msra.mxu0 %v2919
      %3469 = vmatprep.subr.bf16.mxu0 %v2922
      %3470 = vmatpush1.bf16.msra.mxu0 %v2921
      %3471 = vmatprep.subr.bf16.mxu0 %v2924
      %3472 = vmatpush1.bf16.msra.mxu0 %v2923
      %3473 = vmatprep.mubr.bf16.mxu0 %v1979
      %3474 = vmatmul.mubr.bf16.gmra.mrb[0].mxu0 %v1978
      %v3475 = vpop.f32.mrb[0].mxu0
      %v3476 = vadd.f32 %v3435, %v3475
      %v3477 = vpop.f32.mrb[0].mxu0
      %v3478 = vadd.f32 %v3437, %v3477
      %v3479 = vpop.f32.mrb[0].mxu0
      %v3480 = vpop.f32.mrb[0].mxu0
      %3481 = vdwg.mxu0
      %3482 = vmatprep.subr.bf16.mxu0 %v2926
      %3483 = vmatpush1.bf16.msra.mxu0 %v2925
      %3484 = vmatprep.subr.bf16.mxu0 %v2928
      %3485 = vmatpush1.bf16.msra.mxu0 %v2927
      %3486 = vmatprep.subr.bf16.mxu0 %v2930
      %3487 = vmatpush1.bf16.msra.mxu0 %v2929
      %3488 = vmatprep.subr.bf16.mxu0 %v2932
      %3489 = vmatpush1.bf16.msra.mxu0 %v2931
      %3490 = vmatprep.subr.bf16.mxu0 %v2934
      %3491 = vmatpush1.bf16.msra.mxu0 %v2933
      %3492 = vmatprep.subr.bf16.mxu0 %v2936
      %3493 = vmatpush1.bf16.msra.mxu0 %v2935
      %3494 = vmatprep.subr.bf16.mxu0 %v2938
      %3495 = vmatpush1.bf16.msra.mxu0 %v2937
      %3496 = vmatprep.subr.bf16.mxu0 %v2940
      %3497 = vmatpush1.bf16.msra.mxu0 %v2939
      %3498 = vmatprep.subr.bf16.mxu0 %v2942
      %3499 = vmatpush1.bf16.msra.mxu0 %v2941
      %3500 = vmatprep.subr.bf16.mxu0 %v2944
      %3501 = vmatpush1.bf16.msra.mxu0 %v2943
      %3502 = vmatprep.subr.bf16.mxu0 %v2946
      %3503 = vmatpush1.bf16.msra.mxu0 %v2945
      %3504 = vmatprep.subr.bf16.mxu0 %v2948
      %3505 = vmatpush1.bf16.msra.mxu0 %v2947
      %3506 = vmatprep.subr.bf16.mxu0 %v2950
      %3507 = vmatpush1.bf16.msra.mxu0 %v2949
      %3508 = vmatprep.subr.bf16.mxu0 %v2952
      %3509 = vmatpush1.bf16.msra.mxu0 %v2951
      %3510 = vmatprep.subr.bf16.mxu0 %v2954
      %3511 = vmatpush1.bf16.msra.mxu0 %v2953
      %3512 = vmatprep.subr.bf16.mxu0 %v2956
      %3513 = vmatpush1.bf16.msra.mxu0 %v2955
      %3514 = vmatprep.mubr.bf16.mxu0 %v1981
      %3515 = vmatmul.mubr.bf16.gmra.mrb[0].mxu0 %v1980
      %v3516 = vpop.f32.mrb[0].mxu0
      %v3517 = vadd.f32 %v3476, %v3516
      %v3518 = vpop.f32.mrb[0].mxu0
      %v3519 = vadd.f32 %v3478, %v3518
      %v3520 = vpop.f32.mrb[0].mxu0
      %v3521 = vpop.f32.mrb[0].mxu0
      %3522 = vdwg.mxu0
      %3523 = vmatprep.subr.bf16.mxu0 %v2958
      %3524 = vmatpush1.bf16.msra.mxu0 %v2957
      %3525 = vmatprep.subr.bf16.mxu0 %v2960
      %3526 = vmatpush1.bf16.msra.mxu0 %v2959
      %3527 = vmatprep.subr.bf16.mxu0 %v2962
      %3528 = vmatpush1.bf16.msra.mxu0 %v2961
      %3529 = vmatprep.subr.bf16.mxu0 %v2964
      %3530 = vmatpush1.bf16.msra.mxu0 %v2963
      %3531 = vmatprep.subr.bf16.mxu0 %v2966
      %3532 = vmatpush1.bf16.msra.mxu0 %v2965
      %3533 = vmatprep.subr.bf16.mxu0 %v2968
      %3534 = vmatpush1.bf16.msra.mxu0 %v2967
      %3535 = vmatprep.subr.bf16.mxu0 %v2970
      %3536 = vmatpush1.bf16.msra.mxu0 %v2969
      %3537 = vmatprep.subr.bf16.mxu0 %v2972
      %3538 = vmatpush1.bf16.msra.mxu0 %v2971
      %3539 = vmatprep.subr.bf16.mxu0 %v2974
      %3540 = vmatpush1.bf16.msra.mxu0 %v2973
      %3541 = vmatprep.subr.bf16.mxu0 %v2976
      %3542 = vmatpush1.bf16.msra.mxu0 %v2975
      %3543 = vmatprep.subr.bf16.mxu0 %v2978
      %3544 = vmatpush1.bf16.msra.mxu0 %v2977
      %3545 = vmatprep.subr.bf16.mxu0 %v2980
      %3546 = vmatpush1.bf16.msra.mxu0 %v2979
      %3547 = vmatprep.subr.bf16.mxu0 %v2982
      %3548 = vmatpush1.bf16.msra.mxu0 %v2981
      %3549 = vmatprep.subr.bf16.mxu0 %v2984
      %3550 = vmatpush1.bf16.msra.mxu0 %v2983
      %3551 = vmatprep.subr.bf16.mxu0 %v2986
      %3552 = vmatpush1.bf16.msra.mxu0 %v2985
      %3553 = vmatprep.subr.bf16.mxu0 %v2988
      %3554 = vmatpush1.bf16.msra.mxu0 %v2987
      %3555 = vmatprep.mubr.bf16.mxu0 %v1983
      %3556 = vmatmul.mubr.bf16.gmra.mrb[0].mxu0 %v1982
      %v3557 = vpop.f32.mrb[0].mxu0
      %v3558 = vadd.f32 %v3517, %v3557
      %v3559 = vpop.f32.mrb[0].mxu0
      %v3560 = vadd.f32 %v3519, %v3559
      %v3561 = vpop.f32.mrb[0].mxu0
      %v3562 = vpop.f32.mrb[0].mxu0
      %3563 = vdwg.mxu0
      %3564 = vmatprep.subr.bf16.mxu0 %v2990
      %3565 = vmatpush1.bf16.msra.mxu0 %v2989
      %3566 = vmatprep.subr.bf16.mxu0 %v2992
      %3567 = vmatpush1.bf16.msra.mxu0 %v2991
      %3568 = vmatprep.subr.bf16.mxu0 %v2994
      %3569 = vmatpush1.bf16.msra.mxu0 %v2993
      %3570 = vmatprep.subr.bf16.mxu0 %v2996
      %3571 = vmatpush1.bf16.msra.mxu0 %v2995
      %3572 = vmatprep.subr.bf16.mxu0 %v2998
      %3573 = vmatpush1.bf16.msra.mxu0 %v2997
      %3574 = vmatprep.subr.bf16.mxu0 %v3000
      %3575 = vmatpush1.bf16.msra.mxu0 %v2999
      %3576 = vmatprep.subr.bf16.mxu0 %v3002
      %3577 = vmatpush1.bf16.msra.mxu0 %v3001
      %3578 = vmatprep.subr.bf16.mxu0 %v3004
      %3579 = vmatpush1.bf16.msra.mxu0 %v3003
      %3580 = vmatprep.subr.bf16.mxu0 %v3006
      %3581 = vmatpush1.bf16.msra.mxu0 %v3005
      %3582 = vmatprep.subr.bf16.mxu0 %v3008
      %3583 = vmatpush1.bf16.msra.mxu0 %v3007
      %3584 = vmatprep.subr.bf16.mxu0 %v3010
      %3585 = vmatpush1.bf16.msra.mxu0 %v3009
      %3586 = vmatprep.subr.bf16.mxu0 %v3012
      %3587 = vmatpush1.bf16.msra.mxu0 %v3011
      %3588 = vmatprep.subr.bf16.mxu0 %v3014
      %3589 = vmatpush1.bf16.msra.mxu0 %v3013
      %3590 = vmatprep.subr.bf16.mxu0 %v3016
      %3591 = vmatpush1.bf16.msra.mxu0 %v3015
      %3592 = vmatprep.subr.bf16.mxu0 %v3018
      %3593 = vmatpush1.bf16.msra.mxu0 %v3017
      %3594 = vmatprep.subr.bf16.mxu0 %v3020
      %3595 = vmatpush1.bf16.msra.mxu0 %v3019
      %3596 = vmatprep.mubr.bf16.mxu0 %v1985
      %3597 = vmatmul.mubr.bf16.gmra.mrb[0].mxu0 %v1984
      %v3598 = vpop.f32.mrb[0].mxu0
      %v3599 = vadd.f32 %v3558, %v3598
      %v3600 = vpop.f32.mrb[0].mxu0
      %v3601 = vadd.f32 %v3560, %v3600
      %v3602 = vpop.f32.mrb[0].mxu0
      %v3603 = vpop.f32.mrb[0].mxu0
      %3604 = vdwg.mxu0
      %v3605 = vmax.f32 %v3599, 0.0
      %v3606 = vmax.f32 %v3601, 0.0
      %v3607 = vld [vmem:[#allocation8] sm:$0xf]
      %v3608 = vld [vmem:[#allocation8 + $0x4] sm:$0xf]
      %v3609 = vld [vmem:[#allocation8 + $0x8] sm:$0xf]
      %v3610 = vld [vmem:[#allocation8 + $0xc] sm:$0xf]
      %v3611 = vld [vmem:[#allocation8 + $0x10] sm:$0xf]
      %v3612 = vld [vmem:[#allocation8 + $0x14] sm:$0xf]
      %v3613 = vld [vmem:[#allocation8 + $0x18] sm:$0xf]
      %v3614 = vld [vmem:[#allocation8 + $0x1c] sm:$0xf]
      %v3615 = vld [vmem:[#allocation8 + $0x20] sm:$0xf]
      %v3616 = vld [vmem:[#allocation8 + $0x24] sm:$0xf]
      %v3617 = vld [vmem:[#allocation8 + $0x28] sm:$0xf]
      %v3618 = vld [vmem:[#allocation8 + $0x2c] sm:$0xf]
      %v3619 = vld [vmem:[#allocation8 + $0x30] sm:$0xf]
      %v3620 = vld [vmem:[#allocation8 + $0x34] sm:$0xf]
      %v3621 = vld [vmem:[#allocation8 + $0x38] sm:$0xf]
      %v3622 = vld [vmem:[#allocation8 + $0x3c] sm:$0xf]
      %v3623 = vld [vmem:[#allocation8 + $0x40] sm:$0xf]
      %v3624 = vld [vmem:[#allocation8 + $0x44] sm:$0xf]
      %v3625 = vld [vmem:[#allocation8 + $0x48] sm:$0xf]
      %v3626 = vld [vmem:[#allocation8 + $0x4c] sm:$0xf]
      %v3627 = vld [vmem:[#allocation8 + $0x50] sm:$0xf]
      %v3628 = vld [vmem:[#allocation8 + $0x54] sm:$0xf]
      %v3629 = vld [vmem:[#allocation8 + $0x58] sm:$0xf]
      %v3630 = vld [vmem:[#allocation8 + $0x5c] sm:$0xf]
      %v3631 = vld [vmem:[#allocation8 + $0x60] sm:$0xf]
      %v3632 = vld [vmem:[#allocation8 + $0x64] sm:$0xf]
      %v3633 = vld [vmem:[#allocation8 + $0x68] sm:$0xf]
      %v3634 = vld [vmem:[#allocation8 + $0x6c] sm:$0xf]
      %v3635 = vld [vmem:[#allocation8 + $0x70] sm:$0xf]
      %v3636 = vld [vmem:[#allocation8 + $0x74] sm:$0xf]
      %v3637 = vld [vmem:[#allocation8 + $0x78] sm:$0xf]
      %v3638 = vld [vmem:[#allocation8 + $0x7c] sm:$0xf]
      %v3639 = vld [vmem:[%s4] sm:$0x1]
      %v3640 = vpack.c.bf16 %v3605, %v3605
      %v3641 = vpack.c.bf16 %v3606, %v3606
      %v3643 = vlaneseq
      %v3644 = vshrl.u32 %v3643, 7
      %v3645 = vsub.s32 0, %v3644
      %v3646 = vrot.slane %v3639, %v3645
      %v3680 = vunpack.c.l.b16 %v3607
      %v3681 = vunpack.c.l.b16 %v3608
      %v3682 = vunpack.c.l.b16 %v3609
      %v3683 = vunpack.c.l.b16 %v3610
      %v3684 = vunpack.c.l.b16 %v3611
      %v3685 = vunpack.c.l.b16 %v3612
      %v3686 = vunpack.c.l.b16 %v3613
      %v3687 = vunpack.c.l.b16 %v3614
      %v3688 = vunpack.c.l.b16 %v3615
      %v3689 = vunpack.c.l.b16 %v3616
      %v3690 = vunpack.c.l.b16 %v3617
      %v3691 = vunpack.c.l.b16 %v3618
      %v3692 = vunpack.c.l.b16 %v3619
      %v3693 = vunpack.c.l.b16 %v3620
      %v3694 = vunpack.c.l.b16 %v3621
      %v3695 = vunpack.c.l.b16 %v3622
      %v3696 = vunpack.c.l.b16 %v3623
      %v3697 = vunpack.c.l.b16 %v3624
      %v3698 = vunpack.c.l.b16 %v3625
      %v3699 = vunpack.c.l.b16 %v3626
      %v3700 = vunpack.c.l.b16 %v3627
      %v3701 = vunpack.c.l.b16 %v3628
      %v3702 = vunpack.c.l.b16 %v3629
      %v3703 = vunpack.c.l.b16 %v3630
      %v3704 = vunpack.c.l.b16 %v3631
      %v3705 = vunpack.c.l.b16 %v3632
      %v3706 = vunpack.c.l.b16 %v3633
      %v3707 = vunpack.c.l.b16 %v3634
      %v3708 = vunpack.c.l.b16 %v3635
      %v3709 = vunpack.c.l.b16 %v3636
      %v3710 = vunpack.c.l.b16 %v3637
      %v3711 = vunpack.c.l.b16 %v3638
      %v3712 = vpack.c.b16 %v3681, %v3680
      %v3713 = vpack.c.b16 %v3683, %v3682
      %v3714 = vpack.c.b16 %v3685, %v3684
      %v3715 = vpack.c.b16 %v3687, %v3686
      %v3716 = vpack.c.b16 %v3689, %v3688
      %v3717 = vpack.c.b16 %v3691, %v3690
      %v3718 = vpack.c.b16 %v3693, %v3692
      %v3719 = vpack.c.b16 %v3695, %v3694
      %v3720 = vpack.c.b16 %v3697, %v3696
      %v3721 = vpack.c.b16 %v3699, %v3698
      %v3722 = vpack.c.b16 %v3701, %v3700
      %v3723 = vpack.c.b16 %v3703, %v3702
      %v3724 = vpack.c.b16 %v3705, %v3704
      %v3725 = vpack.c.b16 %v3707, %v3706
      %v3726 = vpack.c.b16 %v3709, %v3708
      %v3727 = vpack.c.b16 %v3711, %v3710
      %3744 = vmatprep.subr.bf16.mxu0 0
      %3745 = vmatpush1.bf16.msra.mxu0 %v3712
      %3746 = vmatprep.subr.bf16.mxu0 0
      %3747 = vmatpush1.bf16.msra.mxu0 %v3713
      %3748 = vmatprep.subr.bf16.mxu0 0
      %3749 = vmatpush1.bf16.msra.mxu0 %v3714
      %3750 = vmatprep.subr.bf16.mxu0 0
      %3751 = vmatpush1.bf16.msra.mxu0 %v3715
      %3752 = vmatprep.subr.bf16.mxu0 0
      %3753 = vmatpush1.bf16.msra.mxu0 %v3716
      %3754 = vmatprep.subr.bf16.mxu0 0
      %3755 = vmatpush1.bf16.msra.mxu0 %v3717
      %3756 = vmatprep.subr.bf16.mxu0 0
      %3757 = vmatpush1.bf16.msra.mxu0 %v3718
      %3758 = vmatprep.subr.bf16.mxu0 0
      %3759 = vmatpush1.bf16.msra.mxu0 %v3719
      %3760 = vmatprep.subr.bf16.mxu0 0
      %3761 = vmatpush1.bf16.msra.mxu0 %v3720
      %3762 = vmatprep.subr.bf16.mxu0 0
      %3763 = vmatpush1.bf16.msra.mxu0 %v3721
      %3764 = vmatprep.subr.bf16.mxu0 0
      %3765 = vmatpush1.bf16.msra.mxu0 %v3722
      %3766 = vmatprep.subr.bf16.mxu0 0
      %3767 = vmatpush1.bf16.msra.mxu0 %v3723
      %3768 = vmatprep.subr.bf16.mxu0 0
      %3769 = vmatpush1.bf16.msra.mxu0 %v3724
      %3770 = vmatprep.subr.bf16.mxu0 0
      %3771 = vmatpush1.bf16.msra.mxu0 %v3725
      %3772 = vmatprep.subr.bf16.mxu0 0
      %3773 = vmatpush1.bf16.msra.mxu0 %v3726
      %3774 = vmatprep.subr.bf16.mxu0 0
      %3775 = vmatpush1.bf16.msra.mxu0 %v3727
      %3776 = vmatprep.mubr.bf16.mxu0 %v3641
      %3777 = vmatmul.mubr.bf16.gmra.mrb[0].mxu0 %v3640
      %v3778 = vpop.f32.mrb[0].mxu0
      %v3779 = vadd.f32 %v3646, %v3778
      %v3780 = vpop.f32.mrb[0].mxu0
      %v3781 = vpop.f32.mrb[0].mxu0
      %v3782 = vpop.f32.mrb[0].mxu0
      %3783 = vdwg.mxu0
      %v3784 = vmax.f32 %v3779, 0.0
      %v3785 = vld [vmem:[#allocation9] sm:$0xf]
      %v3786 = vld [vmem:[#allocation9 + $0x4] sm:$0xf]
      %v3787 = vld [vmem:[#allocation9 + $0x8] sm:$0xf]
      %v3788 = vld [vmem:[#allocation9 + $0xc] sm:$0xf]
      %v3789 = vld [vmem:[#allocation9 + $0x10] sm:$0xf]
      %v3790 = vld [vmem:[#allocation9 + $0x14] sm:$0xf]
      %v3791 = vld [vmem:[#allocation9 + $0x18] sm:$0xf]
      %v3792 = vld [vmem:[#allocation9 + $0x1c] sm:$0xf]
      %v3793 = vld [vmem:[#allocation9 + $0x20] sm:$0xf]
      %v3794 = vld [vmem:[#allocation9 + $0x24] sm:$0xf]
      %v3795 = vld [vmem:[#allocation9 + $0x28] sm:$0xf]
      %v3796 = vld [vmem:[#allocation9 + $0x2c] sm:$0xf]
      %v3797 = vld [vmem:[#allocation9 + $0x30] sm:$0xf]
      %v3798 = vld [vmem:[#allocation9 + $0x34] sm:$0xf]
      %v3799 = vld [vmem:[#allocation9 + $0x38] sm:$0xf]
      %v3800 = vld [vmem:[#allocation9 + $0x3c] sm:$0xf]
      %v3801 = vld [vmem:[%s6] sm:$0x1]
      %v3802 = vpack.c.bf16 %v3784, %v3784
      %v3804 = vlaneseq
      %v3805 = vshrl.u32 %v3804, 7
      %v3806 = vsub.s32 0, %v3805
      %v3807 = vrot.slane %v3801, %v3806
      %v3825 = vunpack.c.l.b16 %v3785
      %v3826 = vunpack.c.l.b16 %v3786
      %v3827 = vunpack.c.l.b16 %v3787
      %v3828 = vunpack.c.l.b16 %v3788
      %v3829 = vunpack.c.l.b16 %v3789
      %v3830 = vunpack.c.l.b16 %v3790
      %v3831 = vunpack.c.l.b16 %v3791
      %v3832 = vunpack.c.l.b16 %v3792
      %v3833 = vunpack.c.l.b16 %v3793
      %v3834 = vunpack.c.l.b16 %v3794
      %v3835 = vunpack.c.l.b16 %v3795
      %v3836 = vunpack.c.l.b16 %v3796
      %v3837 = vunpack.c.l.b16 %v3797
      %v3838 = vunpack.c.l.b16 %v3798
      %v3839 = vunpack.c.l.b16 %v3799
      %v3840 = vunpack.c.l.b16 %v3800
      %v3841 = vpack.c.b16 %v3826, %v3825
      %v3842 = vpack.c.b16 %v3828, %v3827
      %v3843 = vpack.c.b16 %v3830, %v3829
      %v3844 = vpack.c.b16 %v3832, %v3831
      %v3845 = vpack.c.b16 %v3834, %v3833
      %v3846 = vpack.c.b16 %v3836, %v3835
      %v3847 = vpack.c.b16 %v3838, %v3837
      %v3848 = vpack.c.b16 %v3840, %v3839
      %3857 = vmatprep.subr.bf16.mxu0 0
      %3858 = vmatpush1.bf16.msra.mxu0 %v3841
      %3859 = vmatprep.subr.bf16.mxu0 0
      %3860 = vmatpush1.bf16.msra.mxu0 %v3842
      %3861 = vmatprep.subr.bf16.mxu0 0
      %3862 = vmatpush1.bf16.msra.mxu0 %v3843
      %3863 = vmatprep.subr.bf16.mxu0 0
      %3864 = vmatpush1.bf16.msra.mxu0 %v3844
      %3865 = vmatprep.subr.bf16.mxu0 0
      %3866 = vmatpush1.bf16.msra.mxu0 %v3845
      %3867 = vmatprep.subr.bf16.mxu0 0
      %3868 = vmatpush1.bf16.msra.mxu0 %v3846
      %3869 = vmatprep.subr.bf16.mxu0 0
      %3870 = vmatpush1.bf16.msra.mxu0 %v3847
      %3871 = vmatprep.subr.bf16.mxu0 0
      %3872 = vmatpush1.bf16.msra.mxu0 %v3848
      %3873 = vmatprep.subr.bf16.mxu0 0
      %3874 = vmatpush1.bf16.msra.mxu0 0
      %3875 = vmatprep.subr.bf16.mxu0 0
      %3876 = vmatpush1.bf16.msra.mxu0 0
      %3877 = vmatprep.subr.bf16.mxu0 0
      %3878 = vmatpush1.bf16.msra.mxu0 0
      %3879 = vmatprep.subr.bf16.mxu0 0
      %3880 = vmatpush1.bf16.msra.mxu0 0
      %3881 = vmatprep.subr.bf16.mxu0 0
      %3882 = vmatpush1.bf16.msra.mxu0 0
      %3883 = vmatprep.subr.bf16.mxu0 0
      %3884 = vmatpush1.bf16.msra.mxu0 0
      %3885 = vmatprep.subr.bf16.mxu0 0
      %3886 = vmatpush1.bf16.msra.mxu0 0
      %3887 = vmatprep.subr.bf16.mxu0 0
      %3888 = vmatpush1.bf16.msra.mxu0 0
      %3889 = vmatprep.mubr.bf16.mxu0 0
      %3890 = vmatmul.mubr.bf16.gmra.mrb[0].mxu0 %v3802
      %v3891 = vpop.f32.mrb[0].mxu0
      %v3892 = vadd.f32 %v3807, %v3891
      %v3893 = vpop.f32.mrb[0].mxu0
      %v3894 = vpop.f32.mrb[0].mxu0
      %v3895 = vpop.f32.mrb[0].mxu0
      %3896 = vdwg.mxu0
      %3897 = vst [vmem:[#allocation11] sm:$0xff] %v3892
    $region53: #{tpu_custom_call.1} parent=1 // pred_fallthru
      _
    // Predicated region
    $region54: #{tpu_custom_call.1} parent=1 // pred_check
      _
    $region55: #{tpu_custom_call.1} parent=1 // pred_check_branch
      %3899 = sbr.rel (0) target = $region57
    $region56: #{tpu_custom_call.1} parent=1 // pred_region
      %s3901 = ssub.s32 128, 128
      %3902 = vsyncadd [#allocation5], %s3901
      %s3904 = sshll.u32 [#allocation11], 4
      %s3905 = int_to_ptr.vmem [resolvable:$true] %s3904
      %3907 = dma.vmem_to_hbm [thread:$0]  %s3905, 128, %s7, [#allocation5]
    $region57: #{tpu_custom_call.1} parent=1 // pred_fallthru
      _
    // Predicated region
    $region58: #{tpu_custom_call.1} parent=1 // pred_check
      _
    $region59: #{tpu_custom_call.1} parent=1 // pred_check_branch
      %3909 = sbr.rel (0) target = $region61
    $region60: #{tpu_custom_call.1} parent=1 // pred_region
      %3910 = dma.done [#allocation5], 128
    $region61: #{tpu_custom_call.1} parent=1 // pred_fallthru
      _
    %3911 = vsyncpa [#allocation4], 1
    %3912 = vsyncpa [#allocation7], 1
    %3913 = vsyncpa [#allocation10], 1
    %3914 = vsyncpa [#allocation5], 1

</llo_original>
